<compile_context>
chip_gen: v7x
topology: tpu7x:2x2x1
jax: 0.10.0
libtpu: 0.0.40
codegen_flags: <defaults>
</compile_context>

<pallas_src>
import functools
import math

import jax
import jax.numpy as jnp
from jax.experimental import pallas as pl
from jax.experimental.pallas import tpu as pltpu

# ---------------------------------------------------------------------------
# Model hyper-parameters (match nn.TransformerEncoderLayer defaults).
# ---------------------------------------------------------------------------
MAX_LENGTH = 8         # max_length
NUM_HEAD = 4           # num_head
EMB = 32               # embedding_size
HEAD_DIM = EMB // NUM_HEAD
FFN = 2048             # dim_feedforward (PyTorch default)
LN_EPS = 1e-5
NUM_NODE_TYPES = 4
DEFAULT_BLOCK_B = 32   # 32 sequences/step -> M = 256 rows per matmul


def _layer_norm(x, gamma, beta):
    mu = jnp.mean(x, axis=-1, keepdims=True)
    var = jnp.mean((x - mu) ** 2, axis=-1, keepdims=True)
    return (x - mu) * jax.lax.rsqrt(var + LN_EPS) * gamma + beta


# ---------------------------------------------------------------------------
# Pallas kernel: one full encoder layer for a block of B_blk sequences.
# All activation tensors are flattened to (M, E) with M = B_blk * L.
# ---------------------------------------------------------------------------
def encoder_kernel(
    node_ref,      # (M, E)      node embeddings
    aux_ref,       # (M, E)      position + node-type embeddings (pre-gathered)
    mask_ref,      # (B_blk, L)  float32: 1.0 where key is padding
    wqkv_ref,      # (E, 3E)     bf16, in_proj weight pre-transposed
    bqkv_ref,      # (1, 3E)     f32
    wo_ref,        # (E, E)      f32, out_proj weight pre-transposed
    bo_ref,        # (1, E)      f32
    ln1g_ref,      # (1, E)
    ln1b_ref,      # (1, E)
    w1_ref,        # (E, F)      bf16, linear1 weight pre-transposed
    b1_ref,        # (1, F)
    w2_ref,        # (F, E)      bf16, linear2 weight pre-transposed
    b2_ref,        # (1, E)
    ln2g_ref,      # (1, E)
    ln2b_ref,      # (1, E)
    out_ref,       # (M, E)
    *,
    b_blk,
):
    m = b_blk * MAX_LENGTH

    # --- embedding sum -------------------------------------------------------
    x = node_ref[...] + aux_ref[...]                                   # (M, E) f32

    # --- QKV projection (bf16 operands on the MXU, f32 accumulate) -----------
    qkv = jnp.dot(x.astype(jnp.bfloat16), wqkv_ref[...],
                  preferred_element_type=jnp.float32) + bqkv_ref[...]  # (M, 3E)
    q = qkv[:, 0 * EMB:1 * EMB].reshape(b_blk, MAX_LENGTH, EMB)
    k = qkv[:, 1 * EMB:2 * EMB].reshape(b_blk, MAX_LENGTH, EMB)
    v = qkv[:, 2 * EMB:3 * EMB].reshape(b_blk, MAX_LENGTH, EMB)

    key_bias = jnp.where(mask_ref[...] > 0.5, -1e30, 0.0)[:, None, :]  # (B, 1, L)
    scale = 1.0 / math.sqrt(HEAD_DIM)
    wo = wo_ref[...]                                                   # (E, E)

    # --- multi-head attention, batched over the B_blk sequences --------------
    # Output projection folded as a sum of per-head slices of W_out (no concat).
    attn = jnp.zeros((m, EMB), jnp.float32)
    for h in range(NUM_HEAD):
        sl = slice(h * HEAD_DIM, (h + 1) * HEAD_DIM)
        qh, kh, vh = q[:, :, sl], k[:, :, sl], v[:, :, sl]             # (B, L, Dh)
        s = jnp.einsum("bqd,bkd->bqk", qh, kh,
                       preferred_element_type=jnp.float32) * scale     # (B, L, L)
        s = s + key_bias
        s = s - jnp.max(s, axis=-1, keepdims=True)
        p = jnp.exp(s)
        p = p * pl.reciprocal(jnp.sum(p, axis=-1, keepdims=True), approx=True)
        oh = jnp.einsum("bqk,bkd->bqd", p, vh,
                        preferred_element_type=jnp.float32)            # (B, L, Dh)
        attn = attn + jnp.dot(oh.reshape(m, HEAD_DIM), wo[sl, :],
                              preferred_element_type=jnp.float32)
    attn = attn + bo_ref[...]

    # dropout1 is identity in eval mode.
    x1 = _layer_norm(x + attn, ln1g_ref[...], ln1b_ref[...])

    # --- feed-forward block (bf16 operands, f32 accumulate) -------------------
    h1 = jnp.dot(x1.astype(jnp.bfloat16), w1_ref[...],
                 preferred_element_type=jnp.float32) + b1_ref[...]
    h1 = jnp.maximum(h1, 0.0)                                          # ReLU
    ff = jnp.dot(h1.astype(jnp.bfloat16), w2_ref[...],
                 preferred_element_type=jnp.float32) + b2_ref[...]

    # dropout / dropout2 are identity in eval mode.
    out_ref[...] = _layer_norm(x1 + ff, ln2g_ref[...], ln2b_ref[...])


# ---------------------------------------------------------------------------
# Wrapper: embedding gathers (glue), batch blocking / padding, pallas_call.
# ---------------------------------------------------------------------------
@functools.partial(jax.jit, static_argnames=("block_b",))
def forward(node_embeddings, node_types_link, src_mask, params,
            block_b=DEFAULT_BLOCK_B):
    B, L, E = node_embeddings.shape
    assert L == MAX_LENGTH and E == EMB

    # Glue: embedding table lookups (tiny gathers), mask -> float.
    aux = (params["pos_table"][None, :, :]
           + jnp.take(params["type_table"], node_types_link, axis=0))   # (B, L, E)
    mask_f = src_mask.reshape(B, L).astype(jnp.float32)                  # (B, L)
    node = node_embeddings.astype(jnp.float32)

    # Batch blocking: whole batch if small, else 32 sequences per grid step
    # (M = 256 rows: multiple of 128 for v5e MXU, 256 for v6e/v7x MXU).
    if B <= block_b:
        b_blk, b_pad = B, B
    else:
        b_blk = block_b
        b_pad = ((B + b_blk - 1) // b_blk) * b_blk
        pad = b_pad - B
        node = jnp.pad(node, ((0, pad), (0, 0), (0, 0)))
        aux = jnp.pad(aux, ((0, pad), (0, 0), (0, 0)))
        mask_f = jnp.pad(mask_f, ((0, pad), (0, 0)))   # padded rows: nothing masked

    node2 = node.reshape(b_pad * L, E)
    aux2 = aux.reshape(b_pad * L, E)
    m_blk = b_blk * L
    num_blocks = b_pad // b_blk

    row = lambda vv: vv.reshape(1, -1).astype(jnp.float32)
    # bf16 weights for the MXU; accumulation is f32 inside the kernel.
    wqkv = params["w_in"].T.astype(jnp.bfloat16)     # (E, 3E)
    wo = params["w_out"].T.astype(jnp.float32)       # (E, E)  tiny, keep f32
    w1 = params["w1"].T.astype(jnp.bfloat16)         # (E, F)
    w2 = params["w2"].T.astype(jnp.bfloat16)         # (F, E)

    const = lambda shape: pl.BlockSpec(shape, lambda b: tuple(0 for _ in shape))

    out_flat = pl.pallas_call(
        functools.partial(encoder_kernel, b_blk=b_blk),
        out_shape=jax.ShapeDtypeStruct((b_pad * L, E), jnp.float32),
        grid=(num_blocks,),
        in_specs=[
            pl.BlockSpec((m_blk, E), lambda b: (b, 0)),      # node embeddings
            pl.BlockSpec((m_blk, E), lambda b: (b, 0)),      # pos + type embeddings
            pl.BlockSpec((b_blk, L), lambda b: (b, 0)),      # key padding mask
            const((E, 3 * E)), const((1, 3 * E)),            # wqkv, bqkv
            const((E, E)), const((1, E)),                    # wo, bo
            const((1, E)), const((1, E)),                    # ln1 gamma/beta
            const((E, FFN)), const((1, FFN)),                # w1, b1
            const((FFN, E)), const((1, E)),                  # w2, b2
            const((1, E)), const((1, E)),                    # ln2 gamma/beta
        ],
        out_specs=pl.BlockSpec((m_blk, E), lambda b: (b, 0)),
        compiler_params=pltpu.CompilerParams(
            dimension_semantics=("parallel",)),
    )(
        node2, aux2, mask_f,
        wqkv, row(params["b_in"]),
        wo, row(params["b_out"]),
        row(params["ln1_g"]), row(params["ln1_b"]),
        w1, row(params["b1"]),
        w2, row(params["b2"]),
        row(params["ln2_g"]), row(params["ln2_b"]),
    )
    return out_flat.reshape(b_pad, L, E)[:B]


# ---------------------------------------------------------------------------
# Pure-JAX reference (same math, f32) for a correctness check.
# ---------------------------------------------------------------------------
def reference(node_embeddings, node_types_link, src_mask, params):
    B, L, E = node_embeddings.shape
    x = (node_embeddings
         + params["pos_table"][None]
         + jnp.take(params["type_table"], node_types_link, axis=0))
    qkv = x @ params["w_in"].T + params["b_in"]
    q, k, v = qkv[..., :E], qkv[..., E:2 * E], qkv[..., 2 * E:]

    def split(t):  # (B, L, E) -> (B, H, L, Dh)
        return t.reshape(B, L, NUM_HEAD, HEAD_DIM).transpose(0, 2, 1, 3)

    qh, kh, vh = split(q), split(k), split(v)
    s = jnp.einsum("bhqd,bhkd->bhqk", qh, kh) / math.sqrt(HEAD_DIM)
    s = s + jnp.where(src_mask[:, None, None, :], -1e30, 0.0)
    p = jax.nn.softmax(s, axis=-1)
    o = jnp.einsum("bhqk,bhkd->bhqd", p, vh).transpose(0, 2, 1, 3).reshape(B, L, E)
    o = o @ params["w_out"].T + params["b_out"]

    def ln(t, g, b):
        mu = t.mean(-1, keepdims=True)
        var = ((t - mu) ** 2).mean(-1, keepdims=True)
        return (t - mu) * jax.lax.rsqrt(var + LN_EPS) * g + b

    x1 = ln(x + o, params["ln1_g"], params["ln1_b"])
    h = jax.nn.relu(x1 @ params["w1"].T + params["b1"])
    ff = h @ params["w2"].T + params["b2"]
    return ln(x1 + ff, params["ln2_g"], params["ln2_b"])


# ---------------------------------------------------------------------------
# Deterministic parameter init + demo.
# ---------------------------------------------------------------------------
def init_params(key):
    ks = jax.random.split(key, 8)
    scale = 0.02
    return {
        "pos_table": scale * jax.random.normal(ks[0], (MAX_LENGTH, EMB), jnp.float32),
        "type_table": scale * jax.random.normal(ks[1], (NUM_NODE_TYPES, EMB), jnp.float32),
        "w_in": scale * jax.random.normal(ks[2], (3 * EMB, EMB), jnp.float32),
        "b_in": jnp.zeros((3 * EMB,), jnp.float32),
        "w_out": scale * jax.random.normal(ks[3], (EMB, EMB), jnp.float32),
        "b_out": jnp.zeros((EMB,), jnp.float32),
        "ln1_g": jnp.ones((EMB,), jnp.float32),
        "ln1_b": jnp.zeros((EMB,), jnp.float32),
        "w1": scale * jax.random.normal(ks[4], (FFN, EMB), jnp.float32),
        "b1": jnp.zeros((FFN,), jnp.float32),
        "w2": scale * jax.random.normal(ks[5], (EMB, FFN), jnp.float32),
        "b2": jnp.zeros((EMB,), jnp.float32),
        "ln2_g": jnp.ones((EMB,), jnp.float32),
        "ln2_b": jnp.zeros((EMB,), jnp.float32),
    }


if __name__ == "__main__":
    key = jax.random.PRNGKey(0)
    k_p, k_x, k_t = jax.random.split(key, 3)

    B = 2
    params = init_params(k_p)
    node_embeddings = jax.random.normal(k_x, (B, MAX_LENGTH, EMB), jnp.float32)
    node_types_link = jax.random.randint(k_t, (B, MAX_LENGTH), 0, NUM_NODE_TYPES, jnp.int32)
    # src_mask: True = padding.  Pad the last two positions of batch 1.
    src_mask = jnp.zeros((B, MAX_LENGTH), jnp.bool_).at[1, -2:].set(True)

    out = forward(node_embeddings, node_types_link, src_mask, params)
    out = jax.block_until_ready(out)

    ref = reference(node_embeddings, node_types_link, src_mask, params)
    assert out.shape == (B, MAX_LENGTH, EMB)
    # bf16 MXU operands (per perf review) -> compare with a modest tolerance.
    assert jnp.allclose(out, ref, rtol=2e-2, atol=2e-2), "Pallas output mismatch vs reference"

    print("KERNEL_OK")
</pallas_src>

<mosaic_0001>
module attributes {stable_mosaic.version = 11 : i64} {
  func.func @encoder_kernel(%arg0: i32, %arg1: memref<16x32xf32, #tpu.memory_space<vmem>>, %arg2: memref<16x32xf32, #tpu.memory_space<vmem>>, %arg3: memref<2x8xf32, #tpu.memory_space<vmem>>, %arg4: memref<32x96xbf16, #tpu.memory_space<vmem>>, %arg5: memref<1x96xf32, #tpu.memory_space<vmem>>, %arg6: memref<32x32xf32, #tpu.memory_space<vmem>>, %arg7: memref<1x32xf32, #tpu.memory_space<vmem>>, %arg8: memref<1x32xf32, #tpu.memory_space<vmem>>, %arg9: memref<1x32xf32, #tpu.memory_space<vmem>>, %arg10: memref<32x2048xbf16, #tpu.memory_space<vmem>>, %arg11: memref<1x2048xf32, #tpu.memory_space<vmem>>, %arg12: memref<2048x32xbf16, #tpu.memory_space<vmem>>, %arg13: memref<1x32xf32, #tpu.memory_space<vmem>>, %arg14: memref<1x32xf32, #tpu.memory_space<vmem>>, %arg15: memref<1x32xf32, #tpu.memory_space<vmem>>, %arg16: memref<16x32xf32, #tpu.memory_space<vmem>>) attributes {dimension_semantics = [#tpu.dimension_semantics<parallel>], iteration_bounds = array<i64: 1>, scalar_prefetch = 0 : i64, scratch_operands = 0 : i64, tpu.core_type = #tpu.core_type<tc>, window_params = [{transform_indices = @transform_0, window_bounds = array<i64: 16, 32>}, {transform_indices = @transform_1, window_bounds = array<i64: 16, 32>}, {transform_indices = @transform_2, window_bounds = array<i64: 2, 8>}, {pipeline_mode = #tpu.pipeline_mode<synchronous>, transform_indices = @transform_3, window_bounds = array<i64: 32, 96>}, {pipeline_mode = #tpu.pipeline_mode<synchronous>, transform_indices = @transform_4, window_bounds = array<i64: 1, 96>}, {pipeline_mode = #tpu.pipeline_mode<synchronous>, transform_indices = @transform_5, window_bounds = array<i64: 32, 32>}, {pipeline_mode = #tpu.pipeline_mode<synchronous>, transform_indices = @transform_6, window_bounds = array<i64: 1, 32>}, {pipeline_mode = #tpu.pipeline_mode<synchronous>, transform_indices = @transform_7, window_bounds = array<i64: 1, 32>}, {pipeline_mode = #tpu.pipeline_mode<synchronous>, transform_indices = @transform_8, window_bounds = array<i64: 1, 32>}, {pipeline_mode = #tpu.pipeline_mode<synchronous>, transform_indices = @transform_9, window_bounds = array<i64: 32, 2048>}, {pipeline_mode = #tpu.pipeline_mode<synchronous>, transform_indices = @transform_10, window_bounds = array<i64: 1, 2048>}, {pipeline_mode = #tpu.pipeline_mode<synchronous>, transform_indices = @transform_11, window_bounds = array<i64: 2048, 32>}, {pipeline_mode = #tpu.pipeline_mode<synchronous>, transform_indices = @transform_12, window_bounds = array<i64: 1, 32>}, {pipeline_mode = #tpu.pipeline_mode<synchronous>, transform_indices = @transform_13, window_bounds = array<i64: 1, 32>}, {pipeline_mode = #tpu.pipeline_mode<synchronous>, transform_indices = @transform_14, window_bounds = array<i64: 1, 32>}, {transform_indices = @transform_15, window_bounds = array<i64: 16, 32>}]} {
    %c0 = arith.constant 0 : index
    %c0_0 = arith.constant 0 : index
    %0 = vector.load %arg1[%c0, %c0_0] : memref<16x32xf32, #tpu.memory_space<vmem>>, vector<16x32xf32>
    %c0_1 = arith.constant 0 : index
    %c0_2 = arith.constant 0 : index
    %1 = vector.load %arg2[%c0_1, %c0_2] : memref<16x32xf32, #tpu.memory_space<vmem>>, vector<16x32xf32>
    %2 = arith.addf %0, %1 : vector<16x32xf32>
    %3 = arith.truncf %2 : vector<16x32xf32> to vector<16x32xbf16>
    %c0_3 = arith.constant 0 : index
    %c0_4 = arith.constant 0 : index
    %4 = vector.load %arg4[%c0_3, %c0_4] : memref<32x96xbf16, #tpu.memory_space<vmem>>, vector<32x96xbf16>
    %cst = arith.constant dense<0.000000e+00> : vector<16x96xf32>
    %5 = tpu.matmul %3, %4, %cst {dimension_numbers = #tpu.dot_dimension_numbers<[1], [0], [0], [1], [0, 0, 1, 1], [], []>} : vector<16x32xbf16>, vector<32x96xbf16>, vector<16x96xf32> -> vector<16x96xf32>
    %c0_5 = arith.constant 0 : index
    %c0_6 = arith.constant 0 : index
    %6 = vector.load %arg5[%c0_5, %c0_6] : memref<1x96xf32, #tpu.memory_space<vmem>>, vector<1x96xf32>
    %7 = vector.broadcast %6 : vector<1x96xf32> to vector<16x96xf32>
    %8 = arith.addf %5, %7 : vector<16x96xf32>
    %9 = vector.extract_strided_slice %8 {offsets = [0, 0], sizes = [16, 32], strides = [1, 1]} : vector<16x96xf32> to vector<16x32xf32>
    %10 = vector.shape_cast %9 : vector<16x32xf32> to vector<2x8x32xf32>
    %11 = vector.extract_strided_slice %8 {offsets = [0, 32], sizes = [16, 32], strides = [1, 1]} : vector<16x96xf32> to vector<16x32xf32>
    %12 = vector.shape_cast %11 : vector<16x32xf32> to vector<2x8x32xf32>
    %13 = vector.extract_strided_slice %8 {offsets = [0, 64], sizes = [16, 32], strides = [1, 1]} : vector<16x96xf32> to vector<16x32xf32>
    %14 = vector.shape_cast %13 : vector<16x32xf32> to vector<2x8x32xf32>
    %c0_7 = arith.constant 0 : index
    %c0_8 = arith.constant 0 : index
    %15 = vector.load %arg3[%c0_7, %c0_8] : memref<2x8xf32, #tpu.memory_space<vmem>>, vector<2x8xf32>
    %cst_9 = arith.constant 5.000000e-01 : f32
    %16 = vector.broadcast %cst_9 : f32 to vector<2x8xf32>
    %17 = arith.cmpf ogt, %15, %16 : vector<2x8xf32>
    %cst_10 = arith.constant -1.000000e+30 : f32
    %cst_11 = arith.constant 0.000000e+00 : f32
    %18 = vector.broadcast %cst_10 : f32 to vector<2x8xf32>
    %19 = vector.broadcast %cst_11 : f32 to vector<2x8xf32>
    %20 = arith.select %17, %18, %19 : vector<2x8xi1>, vector<2x8xf32>
    %21 = vector.shape_cast %20 : vector<2x8xf32> to vector<2x1x8xf32>
    %c0_12 = arith.constant 0 : index
    %c0_13 = arith.constant 0 : index
    %22 = vector.load %arg6[%c0_12, %c0_13] : memref<32x32xf32, #tpu.memory_space<vmem>>, vector<32x32xf32>
    %cst_14 = arith.constant 0.000000e+00 : f32
    %23 = vector.broadcast %cst_14 : f32 to vector<16x32xf32>
    %24 = vector.extract_strided_slice %10 {offsets = [0, 0, 0], sizes = [2, 8, 8], strides = [1, 1, 1]} : vector<2x8x32xf32> to vector<2x8x8xf32>
    %25 = vector.extract_strided_slice %12 {offsets = [0, 0, 0], sizes = [2, 8, 8], strides = [1, 1, 1]} : vector<2x8x32xf32> to vector<2x8x8xf32>
    %26 = vector.extract_strided_slice %14 {offsets = [0, 0, 0], sizes = [2, 8, 8], strides = [1, 1, 1]} : vector<2x8x32xf32> to vector<2x8x8xf32>
    "tpu.trace_start"() <{level = 10 : i32, message = "bqd,bkd->bqk"}> : () -> ()
    %cst_15 = arith.constant dense<0.000000e+00> : vector<2x8x8xf32>
    %27 = tpu.matmul %24, %25, %cst_15 {dimension_numbers = #tpu.dot_dimension_numbers<[2], [2], [1], [1], [0, 0, 0, 1, 1, 1], [0], [0]>} : vector<2x8x8xf32>, vector<2x8x8xf32>, vector<2x8x8xf32> -> vector<2x8x8xf32>
    "tpu.trace_stop"() : () -> ()
    %cst_16 = arith.constant 0.353553385 : f32
    %28 = vector.broadcast %cst_16 : f32 to vector<2x8x8xf32>
    %29 = arith.mulf %27, %28 : vector<2x8x8xf32>
    %30 = vector.broadcast %21 : vector<2x1x8xf32> to vector<2x8x8xf32>
    %31 = arith.addf %29, %30 : vector<2x8x8xf32>
    %cst_17 = arith.constant dense<0xFF800000> : vector<2x8xf32>
    %32 = vector.multi_reduction <maximumf>, %31, %cst_17 [2] : vector<2x8x8xf32> to vector<2x8xf32>
    %33 = vector.shape_cast %32 : vector<2x8xf32> to vector<2x8x1xf32>
    %34 = vector.broadcast %33 : vector<2x8x1xf32> to vector<2x8x8xf32>
    %35 = arith.subf %31, %34 : vector<2x8x8xf32>
    %36 = math.exp %35 : vector<2x8x8xf32>
    %cst_18 = arith.constant dense<0.000000e+00> : vector<2x8xf32>
    %37 = vector.multi_reduction <add>, %36, %cst_18 [2] : vector<2x8x8xf32> to vector<2x8xf32>
    %38 = vector.shape_cast %37 : vector<2x8xf32> to vector<2x8x1xf32>
    %39 = tpu.reciprocal %38 {approx = true} : vector<2x8x1xf32> -> vector<2x8x1xf32>
    %40 = vector.broadcast %39 : vector<2x8x1xf32> to vector<2x8x8xf32>
    %41 = arith.mulf %36, %40 : vector<2x8x8xf32>
    "tpu.trace_start"() <{level = 10 : i32, message = "bqk,bkd->bqd"}> : () -> ()
    %cst_19 = arith.constant dense<0.000000e+00> : vector<2x8x8xf32>
    %42 = tpu.matmul %41, %26, %cst_19 {dimension_numbers = #tpu.dot_dimension_numbers<[2], [1], [1], [2], [0, 0, 0, 1, 1, 2], [0], [0]>} : vector<2x8x8xf32>, vector<2x8x8xf32>, vector<2x8x8xf32> -> vector<2x8x8xf32>
    "tpu.trace_stop"() : () -> ()
    %43 = vector.shape_cast %42 : vector<2x8x8xf32> to vector<16x8xf32>
    %44 = vector.extract_strided_slice %22 {offsets = [0, 0], sizes = [8, 32], strides = [1, 1]} : vector<32x32xf32> to vector<8x32xf32>
    %cst_20 = arith.constant dense<0.000000e+00> : vector<16x32xf32>
    %45 = tpu.matmul %43, %44, %cst_20 {dimension_numbers = #tpu.dot_dimension_numbers<[1], [0], [0], [1], [0, 0, 1, 1], [], []>} : vector<16x8xf32>, vector<8x32xf32>, vector<16x32xf32> -> vector<16x32xf32>
    %46 = arith.addf %23, %45 : vector<16x32xf32>
    %47 = vector.extract_strided_slice %10 {offsets = [0, 0, 8], sizes = [2, 8, 8], strides = [1, 1, 1]} : vector<2x8x32xf32> to vector<2x8x8xf32>
    %48 = vector.extract_strided_slice %12 {offsets = [0, 0, 8], sizes = [2, 8, 8], strides = [1, 1, 1]} : vector<2x8x32xf32> to vector<2x8x8xf32>
    %49 = vector.extract_strided_slice %14 {offsets = [0, 0, 8], sizes = [2, 8, 8], strides = [1, 1, 1]} : vector<2x8x32xf32> to vector<2x8x8xf32>
    "tpu.trace_start"() <{level = 10 : i32, message = "bqd,bkd->bqk"}> : () -> ()
    %cst_21 = arith.constant dense<0.000000e+00> : vector<2x8x8xf32>
    %50 = tpu.matmul %47, %48, %cst_21 {dimension_numbers = #tpu.dot_dimension_numbers<[2], [2], [1], [1], [0, 0, 0, 1, 1, 1], [0], [0]>} : vector<2x8x8xf32>, vector<2x8x8xf32>, vector<2x8x8xf32> -> vector<2x8x8xf32>
    "tpu.trace_stop"() : () -> ()
    %cst_22 = arith.constant 0.353553385 : f32
    %51 = vector.broadcast %cst_22 : f32 to vector<2x8x8xf32>
    %52 = arith.mulf %50, %51 : vector<2x8x8xf32>
    %53 = vector.broadcast %21 : vector<2x1x8xf32> to vector<2x8x8xf32>
    %54 = arith.addf %52, %53 : vector<2x8x8xf32>
    %cst_23 = arith.constant dense<0xFF800000> : vector<2x8xf32>
    %55 = vector.multi_reduction <maximumf>, %54, %cst_23 [2] : vector<2x8x8xf32> to vector<2x8xf32>
    %56 = vector.shape_cast %55 : vector<2x8xf32> to vector<2x8x1xf32>
    %57 = vector.broadcast %56 : vector<2x8x1xf32> to vector<2x8x8xf32>
    %58 = arith.subf %54, %57 : vector<2x8x8xf32>
    %59 = math.exp %58 : vector<2x8x8xf32>
    %cst_24 = arith.constant dense<0.000000e+00> : vector<2x8xf32>
    %60 = vector.multi_reduction <add>, %59, %cst_24 [2] : vector<2x8x8xf32> to vector<2x8xf32>
    %61 = vector.shape_cast %60 : vector<2x8xf32> to vector<2x8x1xf32>
    %62 = tpu.reciprocal %61 {approx = true} : vector<2x8x1xf32> -> vector<2x8x1xf32>
    %63 = vector.broadcast %62 : vector<2x8x1xf32> to vector<2x8x8xf32>
    %64 = arith.mulf %59, %63 : vector<2x8x8xf32>
    "tpu.trace_start"() <{level = 10 : i32, message = "bqk,bkd->bqd"}> : () -> ()
    %cst_25 = arith.constant dense<0.000000e+00> : vector<2x8x8xf32>
    %65 = tpu.matmul %64, %49, %cst_25 {dimension_numbers = #tpu.dot_dimension_numbers<[2], [1], [1], [2], [0, 0, 0, 1, 1, 2], [0], [0]>} : vector<2x8x8xf32>, vector<2x8x8xf32>, vector<2x8x8xf32> -> vector<2x8x8xf32>
    "tpu.trace_stop"() : () -> ()
    %66 = vector.shape_cast %65 : vector<2x8x8xf32> to vector<16x8xf32>
    %67 = vector.extract_strided_slice %22 {offsets = [8, 0], sizes = [8, 32], strides = [1, 1]} : vector<32x32xf32> to vector<8x32xf32>
    %cst_26 = arith.constant dense<0.000000e+00> : vector<16x32xf32>
    %68 = tpu.matmul %66, %67, %cst_26 {dimension_numbers = #tpu.dot_dimension_numbers<[1], [0], [0], [1], [0, 0, 1, 1], [], []>} : vector<16x8xf32>, vector<8x32xf32>, vector<16x32xf32> -> vector<16x32xf32>
    %69 = arith.addf %46, %68 : vector<16x32xf32>
    %70 = vector.extract_strided_slice %10 {offsets = [0, 0, 16], sizes = [2, 8, 8], strides = [1, 1, 1]} : vector<2x8x32xf32> to vector<2x8x8xf32>
    %71 = vector.extract_strided_slice %12 {offsets = [0, 0, 16], sizes = [2, 8, 8], strides = [1, 1, 1]} : vector<2x8x32xf32> to vector<2x8x8xf32>
    %72 = vector.extract_strided_slice %14 {offsets = [0, 0, 16], sizes = [2, 8, 8], strides = [1, 1, 1]} : vector<2x8x32xf32> to vector<2x8x8xf32>
    "tpu.trace_start"() <{level = 10 : i32, message = "bqd,bkd->bqk"}> : () -> ()
    %cst_27 = arith.constant dense<0.000000e+00> : vector<2x8x8xf32>
    %73 = tpu.matmul %70, %71, %cst_27 {dimension_numbers = #tpu.dot_dimension_numbers<[2], [2], [1], [1], [0, 0, 0, 1, 1, 1], [0], [0]>} : vector<2x8x8xf32>, vector<2x8x8xf32>, vector<2x8x8xf32> -> vector<2x8x8xf32>
    "tpu.trace_stop"() : () -> ()
    %cst_28 = arith.constant 0.353553385 : f32
    %74 = vector.broadcast %cst_28 : f32 to vector<2x8x8xf32>
    %75 = arith.mulf %73, %74 : vector<2x8x8xf32>
    %76 = vector.broadcast %21 : vector<2x1x8xf32> to vector<2x8x8xf32>
    %77 = arith.addf %75, %76 : vector<2x8x8xf32>
    %cst_29 = arith.constant dense<0xFF800000> : vector<2x8xf32>
    %78 = vector.multi_reduction <maximumf>, %77, %cst_29 [2] : vector<2x8x8xf32> to vector<2x8xf32>
    %79 = vector.shape_cast %78 : vector<2x8xf32> to vector<2x8x1xf32>
    %80 = vector.broadcast %79 : vector<2x8x1xf32> to vector<2x8x8xf32>
    %81 = arith.subf %77, %80 : vector<2x8x8xf32>
    %82 = math.exp %81 : vector<2x8x8xf32>
    %cst_30 = arith.constant dense<0.000000e+00> : vector<2x8xf32>
    %83 = vector.multi_reduction <add>, %82, %cst_30 [2] : vector<2x8x8xf32> to vector<2x8xf32>
    %84 = vector.shape_cast %83 : vector<2x8xf32> to vector<2x8x1xf32>
    %85 = tpu.reciprocal %84 {approx = true} : vector<2x8x1xf32> -> vector<2x8x1xf32>
    %86 = vector.broadcast %85 : vector<2x8x1xf32> to vector<2x8x8xf32>
    %87 = arith.mulf %82, %86 : vector<2x8x8xf32>
    "tpu.trace_start"() <{level = 10 : i32, message = "bqk,bkd->bqd"}> : () -> ()
    %cst_31 = arith.constant dense<0.000000e+00> : vector<2x8x8xf32>
    %88 = tpu.matmul %87, %72, %cst_31 {dimension_numbers = #tpu.dot_dimension_numbers<[2], [1], [1], [2], [0, 0, 0, 1, 1, 2], [0], [0]>} : vector<2x8x8xf32>, vector<2x8x8xf32>, vector<2x8x8xf32> -> vector<2x8x8xf32>
    "tpu.trace_stop"() : () -> ()
    %89 = vector.shape_cast %88 : vector<2x8x8xf32> to vector<16x8xf32>
    %90 = vector.extract_strided_slice %22 {offsets = [16, 0], sizes = [8, 32], strides = [1, 1]} : vector<32x32xf32> to vector<8x32xf32>
    %cst_32 = arith.constant dense<0.000000e+00> : vector<16x32xf32>
    %91 = tpu.matmul %89, %90, %cst_32 {dimension_numbers = #tpu.dot_dimension_numbers<[1], [0], [0], [1], [0, 0, 1, 1], [], []>} : vector<16x8xf32>, vector<8x32xf32>, vector<16x32xf32> -> vector<16x32xf32>
    %92 = arith.addf %69, %91 : vector<16x32xf32>
    %93 = vector.extract_strided_slice %10 {offsets = [0, 0, 24], sizes = [2, 8, 8], strides = [1, 1, 1]} : vector<2x8x32xf32> to vector<2x8x8xf32>
    %94 = vector.extract_strided_slice %12 {offsets = [0, 0, 24], sizes = [2, 8, 8], strides = [1, 1, 1]} : vector<2x8x32xf32> to vector<2x8x8xf32>
    %95 = vector.extract_strided_slice %14 {offsets = [0, 0, 24], sizes = [2, 8, 8], strides = [1, 1, 1]} : vector<2x8x32xf32> to vector<2x8x8xf32>
    "tpu.trace_start"() <{level = 10 : i32, message = "bqd,bkd->bqk"}> : () -> ()
    %cst_33 = arith.constant dense<0.000000e+00> : vector<2x8x8xf32>
    %96 = tpu.matmul %93, %94, %cst_33 {dimension_numbers = #tpu.dot_dimension_numbers<[2], [2], [1], [1], [0, 0, 0, 1, 1, 1], [0], [0]>} : vector<2x8x8xf32>, vector<2x8x8xf32>, vector<2x8x8xf32> -> vector<2x8x8xf32>
    "tpu.trace_stop"() : () -> ()
    %cst_34 = arith.constant 0.353553385 : f32
    %97 = vector.broadcast %cst_34 : f32 to vector<2x8x8xf32>
    %98 = arith.mulf %96, %97 : vector<2x8x8xf32>
    %99 = vector.broadcast %21 : vector<2x1x8xf32> to vector<2x8x8xf32>
    %100 = arith.addf %98, %99 : vector<2x8x8xf32>
    %cst_35 = arith.constant dense<0xFF800000> : vector<2x8xf32>
    %101 = vector.multi_reduction <maximumf>, %100, %cst_35 [2] : vector<2x8x8xf32> to vector<2x8xf32>
    %102 = vector.shape_cast %101 : vector<2x8xf32> to vector<2x8x1xf32>
    %103 = vector.broadcast %102 : vector<2x8x1xf32> to vector<2x8x8xf32>
    %104 = arith.subf %100, %103 : vector<2x8x8xf32>
    %105 = math.exp %104 : vector<2x8x8xf32>
    %cst_36 = arith.constant dense<0.000000e+00> : vector<2x8xf32>
    %106 = vector.multi_reduction <add>, %105, %cst_36 [2] : vector<2x8x8xf32> to vector<2x8xf32>
    %107 = vector.shape_cast %106 : vector<2x8xf32> to vector<2x8x1xf32>
    %108 = tpu.reciprocal %107 {approx = true} : vector<2x8x1xf32> -> vector<2x8x1xf32>
    %109 = vector.broadcast %108 : vector<2x8x1xf32> to vector<2x8x8xf32>
    %110 = arith.mulf %105, %109 : vector<2x8x8xf32>
    "tpu.trace_start"() <{level = 10 : i32, message = "bqk,bkd->bqd"}> : () -> ()
    %cst_37 = arith.constant dense<0.000000e+00> : vector<2x8x8xf32>
    %111 = tpu.matmul %110, %95, %cst_37 {dimension_numbers = #tpu.dot_dimension_numbers<[2], [1], [1], [2], [0, 0, 0, 1, 1, 2], [0], [0]>} : vector<2x8x8xf32>, vector<2x8x8xf32>, vector<2x8x8xf32> -> vector<2x8x8xf32>
    "tpu.trace_stop"() : () -> ()
    %112 = vector.shape_cast %111 : vector<2x8x8xf32> to vector<16x8xf32>
    %113 = vector.extract_strided_slice %22 {offsets = [24, 0], sizes = [8, 32], strides = [1, 1]} : vector<32x32xf32> to vector<8x32xf32>
    %cst_38 = arith.constant dense<0.000000e+00> : vector<16x32xf32>
    %114 = tpu.matmul %112, %113, %cst_38 {dimension_numbers = #tpu.dot_dimension_numbers<[1], [0], [0], [1], [0, 0, 1, 1], [], []>} : vector<16x8xf32>, vector<8x32xf32>, vector<16x32xf32> -> vector<16x32xf32>
    %115 = arith.addf %92, %114 : vector<16x32xf32>
    %c0_39 = arith.constant 0 : index
    %c0_40 = arith.constant 0 : index
    %116 = vector.load %arg7[%c0_39, %c0_40] : memref<1x32xf32, #tpu.memory_space<vmem>>, vector<1x32xf32>
    %117 = vector.broadcast %116 : vector<1x32xf32> to vector<16x32xf32>
    %118 = arith.addf %115, %117 : vector<16x32xf32>
    %119 = arith.addf %2, %118 : vector<16x32xf32>
    %c0_41 = arith.constant 0 : index
    %c0_42 = arith.constant 0 : index
    %120 = vector.load %arg8[%c0_41, %c0_42] : memref<1x32xf32, #tpu.memory_space<vmem>>, vector<1x32xf32>
    %c0_43 = arith.constant 0 : index
    %c0_44 = arith.constant 0 : index
    %121 = vector.load %arg9[%c0_43, %c0_44] : memref<1x32xf32, #tpu.memory_space<vmem>>, vector<1x32xf32>
    %cst_45 = arith.constant dense<0.000000e+00> : vector<16xf32>
    %122 = vector.multi_reduction <add>, %119, %cst_45 [1] : vector<16x32xf32> to vector<16xf32>
    %123 = vector.shape_cast %122 : vector<16xf32> to vector<16x1xf32>
    %cst_46 = arith.constant 3.200000e+01 : f32
    %124 = vector.broadcast %cst_46 : f32 to vector<16x1xf32>
    %125 = arith.divf %123, %124 : vector<16x1xf32>
    %126 = vector.broadcast %125 : vector<16x1xf32> to vector<16x32xf32>
    %127 = arith.subf %119, %126 : vector<16x32xf32>
    %128 = arith.mulf %127, %127 : vector<16x32xf32>
    %cst_47 = arith.constant dense<0.000000e+00> : vector<16xf32>
    %129 = vector.multi_reduction <add>, %128, %cst_47 [1] : vector<16x32xf32> to vector<16xf32>
    %130 = vector.shape_cast %129 : vector<16xf32> to vector<16x1xf32>
    %cst_48 = arith.constant 3.200000e+01 : f32
    %131 = vector.broadcast %cst_48 : f32 to vector<16x1xf32>
    %132 = arith.divf %130, %131 : vector<16x1xf32>
    %133 = vector.broadcast %125 : vector<16x1xf32> to vector<16x32xf32>
    %134 = arith.subf %119, %133 : vector<16x32xf32>
    %cst_49 = arith.constant 9.99999974E-6 : f32
    %135 = vector.broadcast %cst_49 : f32 to vector<16x1xf32>
    %136 = arith.addf %132, %135 : vector<16x1xf32>
    %137 = math.rsqrt %136 : vector<16x1xf32>
    %138 = vector.broadcast %137 : vector<16x1xf32> to vector<16x32xf32>
    %139 = arith.mulf %134, %138 : vector<16x32xf32>
    %140 = vector.broadcast %120 : vector<1x32xf32> to vector<16x32xf32>
    %141 = arith.mulf %139, %140 : vector<16x32xf32>
    %142 = vector.broadcast %121 : vector<1x32xf32> to vector<16x32xf32>
    %143 = arith.addf %141, %142 : vector<16x32xf32>
    %144 = arith.truncf %143 : vector<16x32xf32> to vector<16x32xbf16>
    %c0_50 = arith.constant 0 : index
    %c0_51 = arith.constant 0 : index
    %145 = vector.load %arg10[%c0_50, %c0_51] : memref<32x2048xbf16, #tpu.memory_space<vmem>>, vector<32x2048xbf16>
    %cst_52 = arith.constant dense<0.000000e+00> : vector<16x2048xf32>
    %146 = tpu.matmul %144, %145, %cst_52 {dimension_numbers = #tpu.dot_dimension_numbers<[1], [0], [0], [1], [0, 0, 1, 1], [], []>} : vector<16x32xbf16>, vector<32x2048xbf16>, vector<16x2048xf32> -> vector<16x2048xf32>
    %c0_53 = arith.constant 0 : index
    %c0_54 = arith.constant 0 : index
    %147 = vector.load %arg11[%c0_53, %c0_54] : memref<1x2048xf32, #tpu.memory_space<vmem>>, vector<1x2048xf32>
    %148 = vector.broadcast %147 : vector<1x2048xf32> to vector<16x2048xf32>
    %149 = arith.addf %146, %148 : vector<16x2048xf32>
    %cst_55 = arith.constant 0.000000e+00 : f32
    %150 = vector.broadcast %cst_55 : f32 to vector<16x2048xf32>
    %151 = arith.maximumf %149, %150 : vector<16x2048xf32>
    %152 = arith.truncf %151 : vector<16x2048xf32> to vector<16x2048xbf16>
    %c0_56 = arith.constant 0 : index
    %c0_57 = arith.constant 0 : index
    %153 = vector.load %arg12[%c0_56, %c0_57] : memref<2048x32xbf16, #tpu.memory_space<vmem>>, vector<2048x32xbf16>
    %cst_58 = arith.constant dense<0.000000e+00> : vector<16x32xf32>
    %154 = tpu.matmul %152, %153, %cst_58 {dimension_numbers = #tpu.dot_dimension_numbers<[1], [0], [0], [1], [0, 0, 1, 1], [], []>} : vector<16x2048xbf16>, vector<2048x32xbf16>, vector<16x32xf32> -> vector<16x32xf32>
    %c0_59 = arith.constant 0 : index
    %c0_60 = arith.constant 0 : index
    %155 = vector.load %arg13[%c0_59, %c0_60] : memref<1x32xf32, #tpu.memory_space<vmem>>, vector<1x32xf32>
    %156 = vector.broadcast %155 : vector<1x32xf32> to vector<16x32xf32>
    %157 = arith.addf %154, %156 : vector<16x32xf32>
    %158 = arith.addf %143, %157 : vector<16x32xf32>
    %c0_61 = arith.constant 0 : index
    %c0_62 = arith.constant 0 : index
    %159 = vector.load %arg14[%c0_61, %c0_62] : memref<1x32xf32, #tpu.memory_space<vmem>>, vector<1x32xf32>
    %c0_63 = arith.constant 0 : index
    %c0_64 = arith.constant 0 : index
    %160 = vector.load %arg15[%c0_63, %c0_64] : memref<1x32xf32, #tpu.memory_space<vmem>>, vector<1x32xf32>
    %cst_65 = arith.constant dense<0.000000e+00> : vector<16xf32>
    %161 = vector.multi_reduction <add>, %158, %cst_65 [1] : vector<16x32xf32> to vector<16xf32>
    %162 = vector.shape_cast %161 : vector<16xf32> to vector<16x1xf32>
    %cst_66 = arith.constant 3.200000e+01 : f32
    %163 = vector.broadcast %cst_66 : f32 to vector<16x1xf32>
    %164 = arith.divf %162, %163 : vector<16x1xf32>
    %165 = vector.broadcast %164 : vector<16x1xf32> to vector<16x32xf32>
    %166 = arith.subf %158, %165 : vector<16x32xf32>
    %167 = arith.mulf %166, %166 : vector<16x32xf32>
    %cst_67 = arith.constant dense<0.000000e+00> : vector<16xf32>
    %168 = vector.multi_reduction <add>, %167, %cst_67 [1] : vector<16x32xf32> to vector<16xf32>
    %169 = vector.shape_cast %168 : vector<16xf32> to vector<16x1xf32>
    %cst_68 = arith.constant 3.200000e+01 : f32
    %170 = vector.broadcast %cst_68 : f32 to vector<16x1xf32>
    %171 = arith.divf %169, %170 : vector<16x1xf32>
    %172 = vector.broadcast %164 : vector<16x1xf32> to vector<16x32xf32>
    %173 = arith.subf %158, %172 : vector<16x32xf32>
    %cst_69 = arith.constant 9.99999974E-6 : f32
    %174 = vector.broadcast %cst_69 : f32 to vector<16x1xf32>
    %175 = arith.addf %171, %174 : vector<16x1xf32>
    %176 = math.rsqrt %175 : vector<16x1xf32>
    %177 = vector.broadcast %176 : vector<16x1xf32> to vector<16x32xf32>
    %178 = arith.mulf %173, %177 : vector<16x32xf32>
    %179 = vector.broadcast %159 : vector<1x32xf32> to vector<16x32xf32>
    %180 = arith.mulf %178, %179 : vector<16x32xf32>
    %181 = vector.broadcast %160 : vector<1x32xf32> to vector<16x32xf32>
    %182 = arith.addf %180, %181 : vector<16x32xf32>
    %c0_70 = arith.constant 0 : index
    %c0_71 = arith.constant 0 : index
    %183 = vector.load %arg16[%c0_70, %c0_71] : memref<16x32xf32, #tpu.memory_space<vmem>>, vector<16x32xf32>
    tpu.vector_store %arg16[%c0_70, %c0_71], %182 {strides = array<i32>} : memref<16x32xf32, #tpu.memory_space<vmem>>, vector<16x32xf32>,
    return
  }
  func.func @transform_0(%arg0: i32) -> (i32, i32) {
    %c0_i32 = arith.constant 0 : i32
    %c0_i32_0 = arith.constant 0 : i32
    return %arg0, %c0_i32 : i32, i32
  }
  func.func @transform_1(%arg0: i32) -> (i32, i32) {
    %c0_i32 = arith.constant 0 : i32
    %c0_i32_0 = arith.constant 0 : i32
    return %arg0, %c0_i32 : i32, i32
  }
  func.func @transform_2(%arg0: i32) -> (i32, i32) {
    %c0_i32 = arith.constant 0 : i32
    %c0_i32_0 = arith.constant 0 : i32
    return %arg0, %c0_i32 : i32, i32
  }
  func.func @transform_3(%arg0: i32) -> (i32, i32) {
    %c0_i32 = arith.constant 0 : i32
    %c0_i32_0 = arith.constant 0 : i32
    %c0_i32_1 = arith.constant 0 : i32
    return %c0_i32, %c0_i32_0 : i32, i32
  }
  func.func @transform_4(%arg0: i32) -> (i32, i32) {
    %c0_i32 = arith.constant 0 : i32
    %c0_i32_0 = arith.constant 0 : i32
    %c0_i32_1 = arith.constant 0 : i32
    return %c0_i32, %c0_i32_0 : i32, i32
  }
  func.func @transform_5(%arg0: i32) -> (i32, i32) {
    %c0_i32 = arith.constant 0 : i32
    %c0_i32_0 = arith.constant 0 : i32
    %c0_i32_1 = arith.constant 0 : i32
    return %c0_i32, %c0_i32_0 : i32, i32
  }
  func.func @transform_6(%arg0: i32) -> (i32, i32) {
    %c0_i32 = arith.constant 0 : i32
    %c0_i32_0 = arith.constant 0 : i32
    %c0_i32_1 = arith.constant 0 : i32
    return %c0_i32, %c0_i32_0 : i32, i32
  }
  func.func @transform_7(%arg0: i32) -> (i32, i32) {
    %c0_i32 = arith.constant 0 : i32
    %c0_i32_0 = arith.constant 0 : i32
    %c0_i32_1 = arith.constant 0 : i32
    return %c0_i32, %c0_i32_0 : i32, i32
  }
  func.func @transform_8(%arg0: i32) -> (i32, i32) {
    %c0_i32 = arith.constant 0 : i32
    %c0_i32_0 = arith.constant 0 : i32
    %c0_i32_1 = arith.constant 0 : i32
    return %c0_i32, %c0_i32_0 : i32, i32
  }
  func.func @transform_9(%arg0: i32) -> (i32, i32) {
    %c0_i32 = arith.constant 0 : i32
    %c0_i32_0 = arith.constant 0 : i32
    %c0_i32_1 = arith.constant 0 : i32
    return %c0_i32, %c0_i32_0 : i32, i32
  }
  func.func @transform_10(%arg0: i32) -> (i32, i32) {
    %c0_i32 = arith.constant 0 : i32
    %c0_i32_0 = arith.constant 0 : i32
    %c0_i32_1 = arith.constant 0 : i32
    return %c0_i32, %c0_i32_0 : i32, i32
  }
  func.func @transform_11(%arg0: i32) -> (i32, i32) {
    %c0_i32 = arith.constant 0 : i32
    %c0_i32_0 = arith.constant 0 : i32
    %c0_i32_1 = arith.constant 0 : i32
    return %c0_i32, %c0_i32_0 : i32, i32
  }
  func.func @transform_12(%arg0: i32) -> (i32, i32) {
    %c0_i32 = arith.constant 0 : i32
    %c0_i32_0 = arith.constant 0 : i32
    %c0_i32_1 = arith.constant 0 : i32
    return %c0_i32, %c0_i32_0 : i32, i32
  }
  func.func @transform_13(%arg0: i32) -> (i32, i32) {
    %c0_i32 = arith.constant 0 : i32
    %c0_i32_0 = arith.constant 0 : i32
    %c0_i32_1 = arith.constant 0 : i32
    return %c0_i32, %c0_i32_0 : i32, i32
  }
  func.func @transform_14(%arg0: i32) -> (i32, i32) {
    %c0_i32 = arith.constant 0 : i32
    %c0_i32_0 = arith.constant 0 : i32
    %c0_i32_1 = arith.constant 0 : i32
    return %c0_i32, %c0_i32_0 : i32, i32
  }
  func.func @transform_15(%arg0: i32) -> (i32, i32) {
    %c0_i32 = arith.constant 0 : i32
    %c0_i32_0 = arith.constant 0 : i32
    return %arg0, %c0_i32 : i32, i32
  }
}

</mosaic_0001>

<llo_original>
// kernel: forward.1
$region0: #{forward.1}
  #allocation0 [shape = 'u32[]', space=smem, size = 0x4, offset = 0x4, fixed_abs, tag = 'smem constant byte address 0x4 - core index']
  #allocation1 [shape = 'u32[144,128]{1,0:T(1,128)}', space=vmem, size = 0x12000, scoped, tag = 'internal scratch']
  %s0 = inlined_call_operand.vmem [shape: f32[16,32], index: 0, kind: input, shape index: {}]
  %s1 = inlined_call_operand.vmem [shape: f32[16,32], index: 1, kind: input, shape index: {}]
  %s2 = inlined_call_operand.vmem [shape: f32[2,8], index: 2, kind: input, shape index: {}]
  %s3 = inlined_call_operand.vmem [shape: bf16[32,96], index: 3, kind: input, shape index: {}]
  %s4 = inlined_call_operand.vmem [shape: f32[1,96], index: 4, kind: input, shape index: {}]
  %s5 = inlined_call_operand.vmem [shape: f32[32,32], index: 5, kind: input, shape index: {}]
  %s6 = inlined_call_operand.vmem [shape: f32[1,32], index: 6, kind: input, shape index: {}]
  %s7 = inlined_call_operand.vmem [shape: f32[1,32], index: 7, kind: input, shape index: {}]
  %s8 = inlined_call_operand.vmem [shape: f32[1,32], index: 8, kind: input, shape index: {}]
  %s9 = inlined_call_operand.vmem [shape: bf16[32,2048], index: 9, kind: input, shape index: {}]
  %s10 = inlined_call_operand.vmem [shape: f32[1,2048], index: 10, kind: input, shape index: {}]
  %s11 = inlined_call_operand.vmem [shape: bf16[2048,32], index: 11, kind: input, shape index: {}]
  %s12 = inlined_call_operand.vmem [shape: f32[1,32], index: 12, kind: input, shape index: {}]
  %s13 = inlined_call_operand.vmem [shape: f32[1,32], index: 13, kind: input, shape index: {}]
  %s14 = inlined_call_operand.vmem [shape: f32[1,32], index: 14, kind: input, shape index: {}]
  %s15 = inlined_call_operand.hbm [shape: f32[16,32], index: 15, kind: output, shape index: {}]
  %s16 = sld [smem:[#allocation0]]
  $region70: #{forward.1} parent=0
    _
  %s18 = ssub.s32 1, %s16
  %s19 = scalar_select 0, %s18, %s16
  $region1: #{forward.1} parent=0
    #allocation2 [shape = 'u8[8192]{0}', space=vmem, size = 0x2000, scoped, tag = 'output window, operand 0, single buffered']
    #allocation3 [shape = 's32[1]{0}', space=sflag, size = 0x4, scoped, tag = 'scoped memory for forward.1']
    %20 = vsyncpa [#allocation3], 0
    // Predicated region
    $region2: #{forward.1} parent=1 // pred_check
      _
    $region3: #{forward.1} parent=1 // pred_check_branch
      %22 = sbr.rel (0) target = $region5
    $region4: #{forward.1} parent=1 // pred_region
      _
    $region5: #{forward.1} parent=1 // pred_fallthru
      _
    // Predicated region
    $region6: #{forward.1} parent=1 // pred_check
      _
    $region7: #{forward.1} parent=1 // pred_check_branch
      %24 = sbr.rel (0) target = $region9
    $region8: #{forward.1} parent=1 // pred_region
      _
    $region9: #{forward.1} parent=1 // pred_fallthru
      _
    // Predicated region
    $region10: #{forward.1} parent=1 // pred_check
      _
    $region11: #{forward.1} parent=1 // pred_check_branch
      %26 = sbr.rel (0) target = $region13
    $region12: #{forward.1} parent=1 // pred_region
      _
    $region13: #{forward.1} parent=1 // pred_fallthru
      _
    // Predicated region
    $region14: #{forward.1} parent=1 // pred_check
      _
    $region15: #{forward.1} parent=1 // pred_check_branch
      %28 = sbr.rel (0) target = $region17
    $region16: #{forward.1} parent=1 // pred_region
      _
    $region17: #{forward.1} parent=1 // pred_fallthru
      _
    // Predicated region
    $region18: #{forward.1} parent=1 // pred_check
      _
    $region19: #{forward.1} parent=1 // pred_check_branch
      %30 = sbr.rel (0) target = $region21
    $region20: #{forward.1} parent=1 // pred_region
      _
    $region21: #{forward.1} parent=1 // pred_fallthru
      _
    // Predicated region
    $region22: #{forward.1} parent=1 // pred_check
      _
    $region23: #{forward.1} parent=1 // pred_check_branch
      %32 = sbr.rel (0) target = $region25
    $region24: #{forward.1} parent=1 // pred_region
      _
    $region25: #{forward.1} parent=1 // pred_fallthru
      _
    // Predicated region
    $region26: #{forward.1} parent=1 // pred_check
      _
    $region27: #{forward.1} parent=1 // pred_check_branch
      %34 = sbr.rel (0) target = $region29
    $region28: #{forward.1} parent=1 // pred_region
      _
    $region29: #{forward.1} parent=1 // pred_fallthru
      _
    // Predicated region
    $region30: #{forward.1} parent=1 // pred_check
      _
    $region31: #{forward.1} parent=1 // pred_check_branch
      %36 = sbr.rel (0) target = $region33
    $region32: #{forward.1} parent=1 // pred_region
      _
    $region33: #{forward.1} parent=1 // pred_fallthru
      _
    // Predicated region
    $region34: #{forward.1} parent=1 // pred_check
      _
    $region35: #{forward.1} parent=1 // pred_check_branch
      %38 = sbr.rel (0) target = $region37
    $region36: #{forward.1} parent=1 // pred_region
      _
    $region37: #{forward.1} parent=1 // pred_fallthru
      _
    // Predicated region
    $region38: #{forward.1} parent=1 // pred_check
      _
    $region39: #{forward.1} parent=1 // pred_check_branch
      %40 = sbr.rel (0) target = $region41
    $region40: #{forward.1} parent=1 // pred_region
      _
    $region41: #{forward.1} parent=1 // pred_fallthru
      _
    // Predicated region
    $region42: #{forward.1} parent=1 // pred_check
      _
    $region43: #{forward.1} parent=1 // pred_check_branch
      %42 = sbr.rel (0) target = $region45
    $region44: #{forward.1} parent=1 // pred_region
      _
    $region45: #{forward.1} parent=1 // pred_fallthru
      _
    // Predicated region
    $region46: #{forward.1} parent=1 // pred_check
      _
    $region47: #{forward.1} parent=1 // pred_check_branch
      %44 = sbr.rel (0) target = $region49
    $region48: #{forward.1} parent=1 // pred_region
      _
    $region49: #{forward.1} parent=1 // pred_fallthru
      _
    // Predicated region
    $region50: #{forward.1} parent=1 // pred_check
      _
    $region51: #{forward.1} parent=1 // pred_check_branch
      %46 = sbr.rel (0) target = $region53
    $region52: #{forward.1} parent=1 // pred_region
      _
    $region53: #{forward.1} parent=1 // pred_fallthru
      _
    // Predicated region
    $region54: #{forward.1} parent=1 // pred_check
      _
    $region55: #{forward.1} parent=1 // pred_check_branch
      %48 = sbr.rel (0) target = $region57
    $region56: #{forward.1} parent=1 // pred_region
      _
    $region57: #{forward.1} parent=1 // pred_fallthru
      _
    // Predicated region
    $region58: #{forward.1} parent=1 // pred_check
      _
    $region59: #{forward.1} parent=1 // pred_check_branch
      %50 = sbr.rel (0) target = $region61
    $region60: #{forward.1} parent=1 // pred_region
      _
    $region61: #{forward.1} parent=1 // pred_fallthru
      _
    %v52 = vld [vmem:[%s0] sm:$0xff]
    %v53 = vld [vmem:[%s0 + $0x8] sm:$0xff]
    %v54 = vld [vmem:[%s1] sm:$0xff]
    %v55 = vld [vmem:[%s1 + $0x8] sm:$0xff]
    %v56 = vadd.f32 %v52, %v54
    %v57 = vadd.f32 %v53, %v55
    %v58 = vpack.c.bf16 %v57, %v56
    %v59 = vld [vmem:[%s3] sm:$0xf]
    %v60 = vld [vmem:[%s3 + $0x4] sm:$0xf]
    %v61 = vld [vmem:[%s3 + $0x8] sm:$0xf]
    %v62 = vld [vmem:[%s3 + $0xc] sm:$0xf]
    %v63 = vld [vmem:[%s4] sm:$0x1]
    %v65 = vlaneseq
    %v66 = vshrl.u32 %v65, 7
    %v67 = vsub.s32 0, %v66
    %v68 = vrot.slane %v63, %v67
    %v74 = vunpack.c.l.b16 %v59
    %v75 = vunpack.c.l.b16 %v60
    %v76 = vunpack.c.l.b16 %v61
    %v77 = vunpack.c.l.b16 %v62
    %v78 = vpack.c.b16 %v75, %v74
    %v79 = vpack.c.b16 %v77, %v76
    %vm82 = vcmask 261120
    %v84 = vsel %vm82, %v58, 0
    %86 = vmatprep.subr.bf16.mxu0 0
    %87 = vmatpush1.bf16.msra.mxu0 %v78
    %88 = vmatprep.subr.bf16.mxu0 0
    %89 = vmatpush1.bf16.msra.mxu0 %v79
    %90 = vmatprep.subr.bf16.mxu0 0
    %91 = vmatpush1.bf16.msra.mxu0 0
    %92 = vmatprep.subr.bf16.mxu0 0
    %93 = vmatpush1.bf16.msra.mxu0 0
    %94 = vmatprep.subr.bf16.mxu0 0
    %95 = vmatpush1.bf16.msra.mxu0 0
    %96 = vmatprep.subr.bf16.mxu0 0
    %97 = vmatpush1.bf16.msra.mxu0 0
    %98 = vmatprep.subr.bf16.mxu0 0
    %99 = vmatpush1.bf16.msra.mxu0 0
    %100 = vmatprep.subr.bf16.mxu0 0
    %101 = vmatpush1.bf16.msra.mxu0 0
    %102 = vmatprep.subr.bf16.mxu0 0
    %103 = vmatpush1.bf16.msra.mxu0 0
    %104 = vmatprep.subr.bf16.mxu0 0
    %105 = vmatpush1.bf16.msra.mxu0 0
    %106 = vmatprep.subr.bf16.mxu0 0
    %107 = vmatpush1.bf16.msra.mxu0 0
    %108 = vmatprep.subr.bf16.mxu0 0
    %109 = vmatpush1.bf16.msra.mxu0 0
    %110 = vmatprep.subr.bf16.mxu0 0
    %111 = vmatpush1.bf16.msra.mxu0 0
    %112 = vmatprep.subr.bf16.mxu0 0
    %113 = vmatpush1.bf16.msra.mxu0 0
    %114 = vmatprep.subr.bf16.mxu0 0
    %115 = vmatpush1.bf16.msra.mxu0 0
    %116 = vmatprep.subr.bf16.mxu0 0
    %117 = vmatpush1.bf16.msra.mxu0 0
    %118 = vmatprep.mubr.bf16.mxu0 0
    %119 = vmatmul.mubr.bf16.gmra.mrb[0].mxu0 %v84
    %v120 = vpop.f32.mrb[0].mxu0
    %v121 = vadd.f32 %v68, %v120
    %v122 = vpop.f32.mrb[0].mxu0
    %v123 = vpop.f32.mrb[0].mxu0
    %v124 = vadd.f32 %v68, %v123
    %v125 = vpop.f32.mrb[0].mxu0
    %126 = vdwg.mxu0
    %v127 = vld [vmem:[%s2] sm:$0x3]
    %vm128 = vcmp.gt.f32.partialorder %v127, 0.5
    %v129 = vsel %vm128, -1e+30, 0.0
    %v132 = vunpack.c.l.s4 1966171168
    %v133 = vunpack.c.0.s8 %v132
    %v134 = vlaneseq
    %v135 = vshrl.u32 %v134, 7
    %v136 = vsub.s32 %v133, %v135
    %v137 = vrot.slane %v129, %v136
    %v138 = vcombine.high %v137, %v137
    %v140 = vunpack.c.l.s4 1966171168
    %v141 = vunpack.c.0.s8 %v140
    %v142 = vlaneseq
    %v143 = vshrl.u32 %v142, 7
    %v144 = vsub.s32 %v141, %v143
    %v145 = vrot.slane %v137, %v144
    %v147 = vunpack.c.l.s4 1966171168
    %v148 = vunpack.c.0.s8 %v147
    %v149 = vlaneseq
    %v150 = vshrl.u32 %v149, 7
    %v151 = vsub.s32 %v148, %v150
    %v152 = vrot.slane %v138, %v151
    %v153 = vld [vmem:[%s5] sm:$0xff]
    %v154 = vld [vmem:[%s5 + $0x8] sm:$0xff]
    %v155 = vld [vmem:[%s5 + $0x10] sm:$0xff]
    %v156 = vld [vmem:[%s5 + $0x18] sm:$0xff]
    %158 = vrot.lane.b32.xlu0 %v121, 96
    %v159 = vpop.permute.xlu0 %158
    %vm160 = vcmask 64512
    %v161 = vsel %vm160, %v121, 0
    %v163 = vsel %vm160, %v159, 0
    %165 = vmatprep.subr.mxu0 0.0
    %166 = vmatpush1.xpose.msra.mxu0 %v163
    %167 = vmatprep.subr.mxu0 0.0
    %168 = vmatpush1.xpose.msra.mxu0 0.0
    %169 = vmatprep.subr.mxu0 0.0
    %170 = vmatpush1.xpose.msra.mxu0 0.0
    %171 = vmatprep.subr.mxu0 0.0
    %172 = vmatpush1.xpose.msra.mxu0 0.0
    %173 = vmatprep.subr.mxu0 0.0
    %174 = vmatpush1.xpose.msra.mxu0 0.0
    %175 = vmatprep.subr.mxu0 0.0
    %176 = vmatpush1.xpose.msra.mxu0 0.0
    %177 = vmatprep.subr.mxu0 0.0
    %178 = vmatpush1.xpose.msra.mxu0 0.0
    %179 = vmatprep.subr.mxu0 0.0
    %180 = vmatpush1.xpose.msra.mxu0 0.0
    %181 = vmatprep.subr.mxu0 0.0
    %182 = vmatpush1.xpose.msra.mxu0 0.0
    %183 = vmatprep.subr.mxu0 0.0
    %184 = vmatpush1.xpose.msra.mxu0 0.0
    %185 = vmatprep.subr.mxu0 0.0
    %186 = vmatpush1.xpose.msra.mxu0 0.0
    %187 = vmatprep.subr.mxu0 0.0
    %188 = vmatpush1.xpose.msra.mxu0 0.0
    %189 = vmatprep.subr.mxu0 0.0
    %190 = vmatpush1.xpose.msra.mxu0 0.0
    %191 = vmatprep.subr.mxu0 0.0
    %192 = vmatpush1.xpose.msra.mxu0 0.0
    %193 = vmatprep.subr.mxu0 0.0
    %194 = vmatpush1.xpose.msra.mxu0 0.0
    %195 = vmatprep.subr.mxu0 0.0
    %196 = vmatpush1.xpose.msra.mxu0 0.0
    %197 = vmatprep.subr.mxu0 0.0
    %198 = vmatpush1.xpose.msra.mxu0 0.0
    %199 = vmatprep.subr.mxu0 0.0
    %200 = vmatpush1.xpose.msra.mxu0 0.0
    %201 = vmatprep.subr.mxu0 0.0
    %202 = vmatpush1.xpose.msra.mxu0 0.0
    %203 = vmatprep.subr.mxu0 0.0
    %204 = vmatpush1.xpose.msra.mxu0 0.0
    %205 = vmatprep.subr.mxu0 0.0
    %206 = vmatpush1.xpose.msra.mxu0 0.0
    %207 = vmatprep.subr.mxu0 0.0
    %208 = vmatpush1.xpose.msra.mxu0 0.0
    %209 = vmatprep.subr.mxu0 0.0
    %210 = vmatpush1.xpose.msra.mxu0 0.0
    %211 = vmatprep.subr.mxu0 0.0
    %212 = vmatpush1.xpose.msra.mxu0 0.0
    %213 = vmatprep.subr.mxu0 0.0
    %214 = vmatpush1.xpose.msra.mxu0 0.0
    %215 = vmatprep.subr.mxu0 0.0
    %216 = vmatpush1.xpose.msra.mxu0 0.0
    %217 = vmatprep.subr.mxu0 0.0
    %218 = vmatpush1.xpose.msra.mxu0 0.0
    %219 = vmatprep.subr.mxu0 0.0
    %220 = vmatpush1.xpose.msra.mxu0 0.0
    %221 = vmatprep.subr.mxu0 0.0
    %222 = vmatpush1.xpose.msra.mxu0 0.0
    %223 = vmatprep.subr.mxu0 0.0
    %224 = vmatpush1.xpose.msra.mxu0 0.0
    %225 = vmatprep.subr.mxu0 0.0
    %226 = vmatpush1.xpose.msra.mxu0 0.0
    %227 = vmatprep.subr.mxu0 0.0
    %228 = vmatpush1.xpose.msra.mxu0 0.0
    %229 = vmatprep.mubr.f32.mxu0 0.0
    %230 = vmatmul.mubr.f32.gmra.mrb[0].mxu0 %v161
    %v231 = vpop.f32.mrb[0].mxu0
    %v232 = vadd.f32 0.0, %v231
    %v233 = vpop.f32.mrb[0].mxu0
    %234 = vdwg.mxu0
    %236 = vrot.lane.b32.xlu0 %v124, 96
    %v237 = vpop.permute.xlu0 %236
    %v238 = vsel %vm160, %v124, 0
    %v240 = vsel %vm160, %v237, 0
    %242 = vmatprep.subr.mxu0 0.0
    %243 = vmatpush1.xpose.msra.mxu0 %v240
    %244 = vmatprep.subr.mxu0 0.0
    %245 = vmatpush1.xpose.msra.mxu0 0.0
    %246 = vmatprep.subr.mxu0 0.0
    %247 = vmatpush1.xpose.msra.mxu0 0.0
    %248 = vmatprep.subr.mxu0 0.0
    %249 = vmatpush1.xpose.msra.mxu0 0.0
    %250 = vmatprep.subr.mxu0 0.0
    %251 = vmatpush1.xpose.msra.mxu0 0.0
    %252 = vmatprep.subr.mxu0 0.0
    %253 = vmatpush1.xpose.msra.mxu0 0.0
    %254 = vmatprep.subr.mxu0 0.0
    %255 = vmatpush1.xpose.msra.mxu0 0.0
    %256 = vmatprep.subr.mxu0 0.0
    %257 = vmatpush1.xpose.msra.mxu0 0.0
    %258 = vmatprep.subr.mxu0 0.0
    %259 = vmatpush1.xpose.msra.mxu0 0.0
    %260 = vmatprep.subr.mxu0 0.0
    %261 = vmatpush1.xpose.msra.mxu0 0.0
    %262 = vmatprep.subr.mxu0 0.0
    %263 = vmatpush1.xpose.msra.mxu0 0.0
    %264 = vmatprep.subr.mxu0 0.0
    %265 = vmatpush1.xpose.msra.mxu0 0.0
    %266 = vmatprep.subr.mxu0 0.0
    %267 = vmatpush1.xpose.msra.mxu0 0.0
    %268 = vmatprep.subr.mxu0 0.0
    %269 = vmatpush1.xpose.msra.mxu0 0.0
    %270 = vmatprep.subr.mxu0 0.0
    %271 = vmatpush1.xpose.msra.mxu0 0.0
    %272 = vmatprep.subr.mxu0 0.0
    %273 = vmatpush1.xpose.msra.mxu0 0.0
    %274 = vmatprep.subr.mxu0 0.0
    %275 = vmatpush1.xpose.msra.mxu0 0.0
    %276 = vmatprep.subr.mxu0 0.0
    %277 = vmatpush1.xpose.msra.mxu0 0.0
    %278 = vmatprep.subr.mxu0 0.0
    %279 = vmatpush1.xpose.msra.mxu0 0.0
    %280 = vmatprep.subr.mxu0 0.0
    %281 = vmatpush1.xpose.msra.mxu0 0.0
    %282 = vmatprep.subr.mxu0 0.0
    %283 = vmatpush1.xpose.msra.mxu0 0.0
    %284 = vmatprep.subr.mxu0 0.0
    %285 = vmatpush1.xpose.msra.mxu0 0.0
    %286 = vmatprep.subr.mxu0 0.0
    %287 = vmatpush1.xpose.msra.mxu0 0.0
    %288 = vmatprep.subr.mxu0 0.0
    %289 = vmatpush1.xpose.msra.mxu0 0.0
    %290 = vmatprep.subr.mxu0 0.0
    %291 = vmatpush1.xpose.msra.mxu0 0.0
    %292 = vmatprep.subr.mxu0 0.0
    %293 = vmatpush1.xpose.msra.mxu0 0.0
    %294 = vmatprep.subr.mxu0 0.0
    %295 = vmatpush1.xpose.msra.mxu0 0.0
    %296 = vmatprep.subr.mxu0 0.0
    %297 = vmatpush1.xpose.msra.mxu0 0.0
    %298 = vmatprep.subr.mxu0 0.0
    %299 = vmatpush1.xpose.msra.mxu0 0.0
    %300 = vmatprep.subr.mxu0 0.0
    %301 = vmatpush1.xpose.msra.mxu0 0.0
    %302 = vmatprep.subr.mxu0 0.0
    %303 = vmatpush1.xpose.msra.mxu0 0.0
    %304 = vmatprep.subr.mxu0 0.0
    %305 = vmatpush1.xpose.msra.mxu0 0.0
    %306 = vmatprep.mubr.f32.mxu0 0.0
    %307 = vmatmul.mubr.f32.gmra.mrb[0].mxu0 %v238
    %v308 = vpop.f32.mrb[0].mxu0
    %v309 = vadd.f32 0.0, %v308
    %v310 = vpop.f32.mrb[0].mxu0
    %311 = vdwg.mxu0
    %v312 = vmul.f32 %v232, 0.35355338
    %v313 = vmul.f32 %v309, 0.35355338
    %v314 = vlaneseq
    %v315 = vshrl.u32 %v314, 7
    %v316 = vsub.s32 0, %v315
    %v317 = vrot.slane %v145, %v316
    %v318 = vlaneseq
    %v319 = vshrl.u32 %v318, 7
    %v320 = vsub.s32 0, %v319
    %v321 = vrot.slane %v152, %v320
    %v324 = vadd.f32 %v312, %v317
    %v325 = vadd.f32 %v313, %v321
    %v326 = vsel %vm160, %v324, -inf
    %327 = vmax.xlane.f32.xlu0 %v326
    %v328 = vpop.xlane.xlu0 %327
    %v329 = vsel %vm160, %v325, -inf
    %330 = vmax.xlane.f32.xlu0 %v329
    %v331 = vpop.xlane.xlu0 %330
    %v332 = vsub.f32 %v324, %v328
    %v333 = vsub.f32 %v325, %v331
    %v334 = vmul.f32 %v332, 1.442695
    %v335 = vpow.pop %v334
    %v336 = vmul.f32 %v333, 1.442695
    %v337 = vpow.pop %v336
    %v338 = vsel %vm160, %v335, 0.0
    %339 = vadd.xlane.f32.xlu0 %v338
    %v340 = vpop.xlane.xlu0 %339
    %v341 = vsel %vm160, %v337, 0.0
    %342 = vadd.xlane.f32.xlu0 %v341
    %v343 = vpop.xlane.xlu0 %342
    %v344 = vrcp.pop %v340
    %v345 = vrcp.pop %v343
    %v346 = vmul.f32 %v335, %v344
    %v347 = vmul.f32 %v337, %v345
    %348 = vrot.lane.b32.xlu0 %v121, 64
    %v349 = vpop.permute.xlu0 %348
    %v352 = vsel %vm160, %v346, 0
    %354 = vmatprep.subr.mxu0 0.0
    %355 = vmatpush1.msra.mxu0 %v349
    %356 = vmatprep.subr.mxu0 0.0
    %357 = vmatpush1.msra.mxu0 0.0
    %358 = vmatprep.subr.mxu0 0.0
    %359 = vmatpush1.msra.mxu0 0.0
    %360 = vmatprep.subr.mxu0 0.0
    %361 = vmatpush1.msra.mxu0 0.0
    %362 = vmatprep.subr.mxu0 0.0
    %363 = vmatpush1.msra.mxu0 0.0
    %364 = vmatprep.subr.mxu0 0.0
    %365 = vmatpush1.msra.mxu0 0.0
    %366 = vmatprep.subr.mxu0 0.0
    %367 = vmatpush1.msra.mxu0 0.0
    %368 = vmatprep.subr.mxu0 0.0
    %369 = vmatpush1.msra.mxu0 0.0
    %370 = vmatprep.subr.mxu0 0.0
    %371 = vmatpush1.msra.mxu0 0.0
    %372 = vmatprep.subr.mxu0 0.0
    %373 = vmatpush1.msra.mxu0 0.0
    %374 = vmatprep.subr.mxu0 0.0
    %375 = vmatpush1.msra.mxu0 0.0
    %376 = vmatprep.subr.mxu0 0.0
    %377 = vmatpush1.msra.mxu0 0.0
    %378 = vmatprep.subr.mxu0 0.0
    %379 = vmatpush1.msra.mxu0 0.0
    %380 = vmatprep.subr.mxu0 0.0
    %381 = vmatpush1.msra.mxu0 0.0
    %382 = vmatprep.subr.mxu0 0.0
    %383 = vmatpush1.msra.mxu0 0.0
    %384 = vmatprep.subr.mxu0 0.0
    %385 = vmatpush1.msra.mxu0 0.0
    %386 = vmatprep.subr.mxu0 0.0
    %387 = vmatpush1.msra.mxu0 0.0
    %388 = vmatprep.subr.mxu0 0.0
    %389 = vmatpush1.msra.mxu0 0.0
    %390 = vmatprep.subr.mxu0 0.0
    %391 = vmatpush1.msra.mxu0 0.0
    %392 = vmatprep.subr.mxu0 0.0
    %393 = vmatpush1.msra.mxu0 0.0
    %394 = vmatprep.subr.mxu0 0.0
    %395 = vmatpush1.msra.mxu0 0.0
    %396 = vmatprep.subr.mxu0 0.0
    %397 = vmatpush1.msra.mxu0 0.0
    %398 = vmatprep.subr.mxu0 0.0
    %399 = vmatpush1.msra.mxu0 0.0
    %400 = vmatprep.subr.mxu0 0.0
    %401 = vmatpush1.msra.mxu0 0.0
    %402 = vmatprep.subr.mxu0 0.0
    %403 = vmatpush1.msra.mxu0 0.0
    %404 = vmatprep.subr.mxu0 0.0
    %405 = vmatpush1.msra.mxu0 0.0
    %406 = vmatprep.subr.mxu0 0.0
    %407 = vmatpush1.msra.mxu0 0.0
    %408 = vmatprep.subr.mxu0 0.0
    %409 = vmatpush1.msra.mxu0 0.0
    %410 = vmatprep.subr.mxu0 0.0
    %411 = vmatpush1.msra.mxu0 0.0
    %412 = vmatprep.subr.mxu0 0.0
    %413 = vmatpush1.msra.mxu0 0.0
    %414 = vmatprep.subr.mxu0 0.0
    %415 = vmatpush1.msra.mxu0 0.0
    %416 = vmatprep.subr.mxu0 0.0
    %417 = vmatpush1.msra.mxu0 0.0
    %418 = vmatprep.mubr.f32.mxu0 0.0
    %419 = vmatmul.mubr.f32.gmra.mrb[0].mxu0 %v352
    %v420 = vpop.f32.mrb[0].mxu0
    %v421 = vadd.f32 0.0, %v420
    %v422 = vpop.f32.mrb[0].mxu0
    %423 = vdwg.mxu0
    %424 = vrot.lane.b32.xlu0 %v124, 64
    %v425 = vpop.permute.xlu0 %424
    %v428 = vsel %vm160, %v347, 0
    %430 = vmatprep.subr.mxu0 0.0
    %431 = vmatpush1.msra.mxu0 %v425
    %432 = vmatprep.subr.mxu0 0.0
    %433 = vmatpush1.msra.mxu0 0.0
    %434 = vmatprep.subr.mxu0 0.0
    %435 = vmatpush1.msra.mxu0 0.0
    %436 = vmatprep.subr.mxu0 0.0
    %437 = vmatpush1.msra.mxu0 0.0
    %438 = vmatprep.subr.mxu0 0.0
    %439 = vmatpush1.msra.mxu0 0.0
    %440 = vmatprep.subr.mxu0 0.0
    %441 = vmatpush1.msra.mxu0 0.0
    %442 = vmatprep.subr.mxu0 0.0
    %443 = vmatpush1.msra.mxu0 0.0
    %444 = vmatprep.subr.mxu0 0.0
    %445 = vmatpush1.msra.mxu0 0.0
    %446 = vmatprep.subr.mxu0 0.0
    %447 = vmatpush1.msra.mxu0 0.0
    %448 = vmatprep.subr.mxu0 0.0
    %449 = vmatpush1.msra.mxu0 0.0
    %450 = vmatprep.subr.mxu0 0.0
    %451 = vmatpush1.msra.mxu0 0.0
    %452 = vmatprep.subr.mxu0 0.0
    %453 = vmatpush1.msra.mxu0 0.0
    %454 = vmatprep.subr.mxu0 0.0
    %455 = vmatpush1.msra.mxu0 0.0
    %456 = vmatprep.subr.mxu0 0.0
    %457 = vmatpush1.msra.mxu0 0.0
    %458 = vmatprep.subr.mxu0 0.0
    %459 = vmatpush1.msra.mxu0 0.0
    %460 = vmatprep.subr.mxu0 0.0
    %461 = vmatpush1.msra.mxu0 0.0
    %462 = vmatprep.subr.mxu0 0.0
    %463 = vmatpush1.msra.mxu0 0.0
    %464 = vmatprep.subr.mxu0 0.0
    %465 = vmatpush1.msra.mxu0 0.0
    %466 = vmatprep.subr.mxu0 0.0
    %467 = vmatpush1.msra.mxu0 0.0
    %468 = vmatprep.subr.mxu0 0.0
    %469 = vmatpush1.msra.mxu0 0.0
    %470 = vmatprep.subr.mxu0 0.0
    %471 = vmatpush1.msra.mxu0 0.0
    %472 = vmatprep.subr.mxu0 0.0
    %473 = vmatpush1.msra.mxu0 0.0
    %474 = vmatprep.subr.mxu0 0.0
    %475 = vmatpush1.msra.mxu0 0.0
    %476 = vmatprep.subr.mxu0 0.0
    %477 = vmatpush1.msra.mxu0 0.0
    %478 = vmatprep.subr.mxu0 0.0
    %479 = vmatpush1.msra.mxu0 0.0
    %480 = vmatprep.subr.mxu0 0.0
    %481 = vmatpush1.msra.mxu0 0.0
    %482 = vmatprep.subr.mxu0 0.0
    %483 = vmatpush1.msra.mxu0 0.0
    %484 = vmatprep.subr.mxu0 0.0
    %485 = vmatpush1.msra.mxu0 0.0
    %486 = vmatprep.subr.mxu0 0.0
    %487 = vmatpush1.msra.mxu0 0.0
    %488 = vmatprep.subr.mxu0 0.0
    %489 = vmatpush1.msra.mxu0 0.0
    %490 = vmatprep.subr.mxu0 0.0
    %491 = vmatpush1.msra.mxu0 0.0
    %492 = vmatprep.subr.mxu0 0.0
    %493 = vmatpush1.msra.mxu0 0.0
    %494 = vmatprep.mubr.f32.mxu0 0.0
    %495 = vmatmul.mubr.f32.gmra.mrb[0].mxu0 %v428
    %v496 = vpop.f32.mrb[0].mxu0
    %v497 = vadd.f32 0.0, %v496
    %v498 = vpop.f32.mrb[0].mxu0
    %499 = vdwg.mxu0
    %500 = vrot.lane.b32.xlu0 %v121, 120
    %v501 = vpop.permute.xlu0 %500
    %502 = vrot.lane.b32.xlu0 %v121, 88
    %v503 = vpop.permute.xlu0 %502
    %v504 = vsel %vm160, %v501, 0
    %v506 = vsel %vm160, %v503, 0
    %508 = vmatprep.subr.mxu0 0.0
    %509 = vmatpush1.xpose.msra.mxu0 %v506
    %510 = vmatprep.subr.mxu0 0.0
    %511 = vmatpush1.xpose.msra.mxu0 0.0
    %512 = vmatprep.subr.mxu0 0.0
    %513 = vmatpush1.xpose.msra.mxu0 0.0
    %514 = vmatprep.subr.mxu0 0.0
    %515 = vmatpush1.xpose.msra.mxu0 0.0
    %516 = vmatprep.subr.mxu0 0.0
    %517 = vmatpush1.xpose.msra.mxu0 0.0
    %518 = vmatprep.subr.mxu0 0.0
    %519 = vmatpush1.xpose.msra.mxu0 0.0
    %520 = vmatprep.subr.mxu0 0.0
    %521 = vmatpush1.xpose.msra.mxu0 0.0
    %522 = vmatprep.subr.mxu0 0.0
    %523 = vmatpush1.xpose.msra.mxu0 0.0
    %524 = vmatprep.subr.mxu0 0.0
    %525 = vmatpush1.xpose.msra.mxu0 0.0
    %526 = vmatprep.subr.mxu0 0.0
    %527 = vmatpush1.xpose.msra.mxu0 0.0
    %528 = vmatprep.subr.mxu0 0.0
    %529 = vmatpush1.xpose.msra.mxu0 0.0
    %530 = vmatprep.subr.mxu0 0.0
    %531 = vmatpush1.xpose.msra.mxu0 0.0
    %532 = vmatprep.subr.mxu0 0.0
    %533 = vmatpush1.xpose.msra.mxu0 0.0
    %534 = vmatprep.subr.mxu0 0.0
    %535 = vmatpush1.xpose.msra.mxu0 0.0
    %536 = vmatprep.subr.mxu0 0.0
    %537 = vmatpush1.xpose.msra.mxu0 0.0
    %538 = vmatprep.subr.mxu0 0.0
    %539 = vmatpush1.xpose.msra.mxu0 0.0
    %540 = vmatprep.subr.mxu0 0.0
    %541 = vmatpush1.xpose.msra.mxu0 0.0
    %542 = vmatprep.subr.mxu0 0.0
    %543 = vmatpush1.xpose.msra.mxu0 0.0
    %544 = vmatprep.subr.mxu0 0.0
    %545 = vmatpush1.xpose.msra.mxu0 0.0
    %546 = vmatprep.subr.mxu0 0.0
    %547 = vmatpush1.xpose.msra.mxu0 0.0
    %548 = vmatprep.subr.mxu0 0.0
    %549 = vmatpush1.xpose.msra.mxu0 0.0
    %550 = vmatprep.subr.mxu0 0.0
    %551 = vmatpush1.xpose.msra.mxu0 0.0
    %552 = vmatprep.subr.mxu0 0.0
    %553 = vmatpush1.xpose.msra.mxu0 0.0
    %554 = vmatprep.subr.mxu0 0.0
    %555 = vmatpush1.xpose.msra.mxu0 0.0
    %556 = vmatprep.subr.mxu0 0.0
    %557 = vmatpush1.xpose.msra.mxu0 0.0
    %558 = vmatprep.subr.mxu0 0.0
    %559 = vmatpush1.xpose.msra.mxu0 0.0
    %560 = vmatprep.subr.mxu0 0.0
    %561 = vmatpush1.xpose.msra.mxu0 0.0
    %562 = vmatprep.subr.mxu0 0.0
    %563 = vmatpush1.xpose.msra.mxu0 0.0
    %564 = vmatprep.subr.mxu0 0.0
    %565 = vmatpush1.xpose.msra.mxu0 0.0
    %566 = vmatprep.subr.mxu0 0.0
    %567 = vmatpush1.xpose.msra.mxu0 0.0
    %568 = vmatprep.subr.mxu0 0.0
    %569 = vmatpush1.xpose.msra.mxu0 0.0
    %570 = vmatprep.subr.mxu0 0.0
    %571 = vmatpush1.xpose.msra.mxu0 0.0
    %572 = vmatprep.mubr.f32.mxu0 0.0
    %573 = vmatmul.mubr.f32.gmra.mrb[0].mxu0 %v504
    %v574 = vpop.f32.mrb[0].mxu0
    %v575 = vadd.f32 0.0, %v574
    %v576 = vpop.f32.mrb[0].mxu0
    %577 = vdwg.mxu0
    %578 = vrot.lane.b32.xlu0 %v124, 120
    %v579 = vpop.permute.xlu0 %578
    %580 = vrot.lane.b32.xlu0 %v124, 88
    %v581 = vpop.permute.xlu0 %580
    %v582 = vsel %vm160, %v579, 0
    %v584 = vsel %vm160, %v581, 0
    %586 = vmatprep.subr.mxu0 0.0
    %587 = vmatpush1.xpose.msra.mxu0 %v584
    %588 = vmatprep.subr.mxu0 0.0
    %589 = vmatpush1.xpose.msra.mxu0 0.0
    %590 = vmatprep.subr.mxu0 0.0
    %591 = vmatpush1.xpose.msra.mxu0 0.0
    %592 = vmatprep.subr.mxu0 0.0
    %593 = vmatpush1.xpose.msra.mxu0 0.0
    %594 = vmatprep.subr.mxu0 0.0
    %595 = vmatpush1.xpose.msra.mxu0 0.0
    %596 = vmatprep.subr.mxu0 0.0
    %597 = vmatpush1.xpose.msra.mxu0 0.0
    %598 = vmatprep.subr.mxu0 0.0
    %599 = vmatpush1.xpose.msra.mxu0 0.0
    %600 = vmatprep.subr.mxu0 0.0
    %601 = vmatpush1.xpose.msra.mxu0 0.0
    %602 = vmatprep.subr.mxu0 0.0
    %603 = vmatpush1.xpose.msra.mxu0 0.0
    %604 = vmatprep.subr.mxu0 0.0
    %605 = vmatpush1.xpose.msra.mxu0 0.0
    %606 = vmatprep.subr.mxu0 0.0
    %607 = vmatpush1.xpose.msra.mxu0 0.0
    %608 = vmatprep.subr.mxu0 0.0
    %609 = vmatpush1.xpose.msra.mxu0 0.0
    %610 = vmatprep.subr.mxu0 0.0
    %611 = vmatpush1.xpose.msra.mxu0 0.0
    %612 = vmatprep.subr.mxu0 0.0
    %613 = vmatpush1.xpose.msra.mxu0 0.0
    %614 = vmatprep.subr.mxu0 0.0
    %615 = vmatpush1.xpose.msra.mxu0 0.0
    %616 = vmatprep.subr.mxu0 0.0
    %617 = vmatpush1.xpose.msra.mxu0 0.0
    %618 = vmatprep.subr.mxu0 0.0
    %619 = vmatpush1.xpose.msra.mxu0 0.0
    %620 = vmatprep.subr.mxu0 0.0
    %621 = vmatpush1.xpose.msra.mxu0 0.0
    %622 = vmatprep.subr.mxu0 0.0
    %623 = vmatpush1.xpose.msra.mxu0 0.0
    %624 = vmatprep.subr.mxu0 0.0
    %625 = vmatpush1.xpose.msra.mxu0 0.0
    %626 = vmatprep.subr.mxu0 0.0
    %627 = vmatpush1.xpose.msra.mxu0 0.0
    %628 = vmatprep.subr.mxu0 0.0
    %629 = vmatpush1.xpose.msra.mxu0 0.0
    %630 = vmatprep.subr.mxu0 0.0
    %631 = vmatpush1.xpose.msra.mxu0 0.0
    %632 = vmatprep.subr.mxu0 0.0
    %633 = vmatpush1.xpose.msra.mxu0 0.0
    %634 = vmatprep.subr.mxu0 0.0
    %635 = vmatpush1.xpose.msra.mxu0 0.0
    %636 = vmatprep.subr.mxu0 0.0
    %637 = vmatpush1.xpose.msra.mxu0 0.0
    %638 = vmatprep.subr.mxu0 0.0
    %639 = vmatpush1.xpose.msra.mxu0 0.0
    %640 = vmatprep.subr.mxu0 0.0
    %641 = vmatpush1.xpose.msra.mxu0 0.0
    %642 = vmatprep.subr.mxu0 0.0
    %643 = vmatpush1.xpose.msra.mxu0 0.0
    %644 = vmatprep.subr.mxu0 0.0
    %645 = vmatpush1.xpose.msra.mxu0 0.0
    %646 = vmatprep.subr.mxu0 0.0
    %647 = vmatpush1.xpose.msra.mxu0 0.0
    %648 = vmatprep.subr.mxu0 0.0
    %649 = vmatpush1.xpose.msra.mxu0 0.0
    %650 = vmatprep.mubr.f32.mxu0 0.0
    %651 = vmatmul.mubr.f32.gmra.mrb[0].mxu0 %v582
    %v652 = vpop.f32.mrb[0].mxu0
    %v653 = vadd.f32 0.0, %v652
    %v654 = vpop.f32.mrb[0].mxu0
    %655 = vdwg.mxu0
    %v656 = vmul.f32 %v575, 0.35355338
    %v657 = vmul.f32 %v653, 0.35355338
    %v658 = vadd.f32 %v656, %v317
    %v659 = vadd.f32 %v657, %v321
    %v660 = vsel %vm160, %v658, -inf
    %661 = vmax.xlane.f32.xlu0 %v660
    %v662 = vpop.xlane.xlu0 %661
    %v663 = vsel %vm160, %v659, -inf
    %664 = vmax.xlane.f32.xlu0 %v663
    %v665 = vpop.xlane.xlu0 %664
    %v666 = vsub.f32 %v658, %v662
    %v667 = vsub.f32 %v659, %v665
    %v668 = vmul.f32 %v666, 1.442695
    %v669 = vpow.pop %v668
    %v670 = vmul.f32 %v667, 1.442695
    %v671 = vpow.pop %v670
    %v672 = vsel %vm160, %v669, 0.0
    %673 = vadd.xlane.f32.xlu0 %v672
    %v674 = vpop.xlane.xlu0 %673
    %v675 = vsel %vm160, %v671, 0.0
    %676 = vadd.xlane.f32.xlu0 %v675
    %v677 = vpop.xlane.xlu0 %676
    %v678 = vrcp.pop %v674
    %v679 = vrcp.pop %v677
    %v680 = vmul.f32 %v669, %v678
    %v681 = vmul.f32 %v671, %v679
    %682 = vrot.lane.b32.xlu0 %v121, 56
    %v683 = vpop.permute.xlu0 %682
    %v686 = vsel %vm160, %v680, 0
    %688 = vmatprep.subr.mxu0 0.0
    %689 = vmatpush1.msra.mxu0 %v683
    %690 = vmatprep.subr.mxu0 0.0
    %691 = vmatpush1.msra.mxu0 0.0
    %692 = vmatprep.subr.mxu0 0.0
    %693 = vmatpush1.msra.mxu0 0.0
    %694 = vmatprep.subr.mxu0 0.0
    %695 = vmatpush1.msra.mxu0 0.0
    %696 = vmatprep.subr.mxu0 0.0
    %697 = vmatpush1.msra.mxu0 0.0
    %698 = vmatprep.subr.mxu0 0.0
    %699 = vmatpush1.msra.mxu0 0.0
    %700 = vmatprep.subr.mxu0 0.0
    %701 = vmatpush1.msra.mxu0 0.0
    %702 = vmatprep.subr.mxu0 0.0
    %703 = vmatpush1.msra.mxu0 0.0
    %704 = vmatprep.subr.mxu0 0.0
    %705 = vmatpush1.msra.mxu0 0.0
    %706 = vmatprep.subr.mxu0 0.0
    %707 = vmatpush1.msra.mxu0 0.0
    %708 = vmatprep.subr.mxu0 0.0
    %709 = vmatpush1.msra.mxu0 0.0
    %710 = vmatprep.subr.mxu0 0.0
    %711 = vmatpush1.msra.mxu0 0.0
    %712 = vmatprep.subr.mxu0 0.0
    %713 = vmatpush1.msra.mxu0 0.0
    %714 = vmatprep.subr.mxu0 0.0
    %715 = vmatpush1.msra.mxu0 0.0
    %716 = vmatprep.subr.mxu0 0.0
    %717 = vmatpush1.msra.mxu0 0.0
    %718 = vmatprep.subr.mxu0 0.0
    %719 = vmatpush1.msra.mxu0 0.0
    %720 = vmatprep.subr.mxu0 0.0
    %721 = vmatpush1.msra.mxu0 0.0
    %722 = vmatprep.subr.mxu0 0.0
    %723 = vmatpush1.msra.mxu0 0.0
    %724 = vmatprep.subr.mxu0 0.0
    %725 = vmatpush1.msra.mxu0 0.0
    %726 = vmatprep.subr.mxu0 0.0
    %727 = vmatpush1.msra.mxu0 0.0
    %728 = vmatprep.subr.mxu0 0.0
    %729 = vmatpush1.msra.mxu0 0.0
    %730 = vmatprep.subr.mxu0 0.0
    %731 = vmatpush1.msra.mxu0 0.0
    %732 = vmatprep.subr.mxu0 0.0
    %733 = vmatpush1.msra.mxu0 0.0
    %734 = vmatprep.subr.mxu0 0.0
    %735 = vmatpush1.msra.mxu0 0.0
    %736 = vmatprep.subr.mxu0 0.0
    %737 = vmatpush1.msra.mxu0 0.0
    %738 = vmatprep.subr.mxu0 0.0
    %739 = vmatpush1.msra.mxu0 0.0
    %740 = vmatprep.subr.mxu0 0.0
    %741 = vmatpush1.msra.mxu0 0.0
    %742 = vmatprep.subr.mxu0 0.0
    %743 = vmatpush1.msra.mxu0 0.0
    %744 = vmatprep.subr.mxu0 0.0
    %745 = vmatpush1.msra.mxu0 0.0
    %746 = vmatprep.subr.mxu0 0.0
    %747 = vmatpush1.msra.mxu0 0.0
    %748 = vmatprep.subr.mxu0 0.0
    %749 = vmatpush1.msra.mxu0 0.0
    %750 = vmatprep.subr.mxu0 0.0
    %751 = vmatpush1.msra.mxu0 0.0
    %752 = vmatprep.mubr.f32.mxu0 0.0
    %753 = vmatmul.mubr.f32.gmra.mrb[0].mxu0 %v686
    %v754 = vpop.f32.mrb[0].mxu0
    %v755 = vadd.f32 0.0, %v754
    %v756 = vpop.f32.mrb[0].mxu0
    %757 = vdwg.mxu0
    %758 = vrot.lane.b32.xlu0 %v124, 56
    %v759 = vpop.permute.xlu0 %758
    %v762 = vsel %vm160, %v681, 0
    %764 = vmatprep.subr.mxu0 0.0
    %765 = vmatpush1.msra.mxu0 %v759
    %766 = vmatprep.subr.mxu0 0.0
    %767 = vmatpush1.msra.mxu0 0.0
    %768 = vmatprep.subr.mxu0 0.0
    %769 = vmatpush1.msra.mxu0 0.0
    %770 = vmatprep.subr.mxu0 0.0
    %771 = vmatpush1.msra.mxu0 0.0
    %772 = vmatprep.subr.mxu0 0.0
    %773 = vmatpush1.msra.mxu0 0.0
    %774 = vmatprep.subr.mxu0 0.0
    %775 = vmatpush1.msra.mxu0 0.0
    %776 = vmatprep.subr.mxu0 0.0
    %777 = vmatpush1.msra.mxu0 0.0
    %778 = vmatprep.subr.mxu0 0.0
    %779 = vmatpush1.msra.mxu0 0.0
    %780 = vmatprep.subr.mxu0 0.0
    %781 = vmatpush1.msra.mxu0 0.0
    %782 = vmatprep.subr.mxu0 0.0
    %783 = vmatpush1.msra.mxu0 0.0
    %784 = vmatprep.subr.mxu0 0.0
    %785 = vmatpush1.msra.mxu0 0.0
    %786 = vmatprep.subr.mxu0 0.0
    %787 = vmatpush1.msra.mxu0 0.0
    %788 = vmatprep.subr.mxu0 0.0
    %789 = vmatpush1.msra.mxu0 0.0
    %790 = vmatprep.subr.mxu0 0.0
    %791 = vmatpush1.msra.mxu0 0.0
    %792 = vmatprep.subr.mxu0 0.0
    %793 = vmatpush1.msra.mxu0 0.0
    %794 = vmatprep.subr.mxu0 0.0
    %795 = vmatpush1.msra.mxu0 0.0
    %796 = vmatprep.subr.mxu0 0.0
    %797 = vmatpush1.msra.mxu0 0.0
    %798 = vmatprep.subr.mxu0 0.0
    %799 = vmatpush1.msra.mxu0 0.0
    %800 = vmatprep.subr.mxu0 0.0
    %801 = vmatpush1.msra.mxu0 0.0
    %802 = vmatprep.subr.mxu0 0.0
    %803 = vmatpush1.msra.mxu0 0.0
    %804 = vmatprep.subr.mxu0 0.0
    %805 = vmatpush1.msra.mxu0 0.0
    %806 = vmatprep.subr.mxu0 0.0
    %807 = vmatpush1.msra.mxu0 0.0
    %808 = vmatprep.subr.mxu0 0.0
    %809 = vmatpush1.msra.mxu0 0.0
    %810 = vmatprep.subr.mxu0 0.0
    %811 = vmatpush1.msra.mxu0 0.0
    %812 = vmatprep.subr.mxu0 0.0
    %813 = vmatpush1.msra.mxu0 0.0
    %814 = vmatprep.subr.mxu0 0.0
    %815 = vmatpush1.msra.mxu0 0.0
    %816 = vmatprep.subr.mxu0 0.0
    %817 = vmatpush1.msra.mxu0 0.0
    %818 = vmatprep.subr.mxu0 0.0
    %819 = vmatpush1.msra.mxu0 0.0
    %820 = vmatprep.subr.mxu0 0.0
    %821 = vmatpush1.msra.mxu0 0.0
    %822 = vmatprep.subr.mxu0 0.0
    %823 = vmatpush1.msra.mxu0 0.0
    %824 = vmatprep.subr.mxu0 0.0
    %825 = vmatpush1.msra.mxu0 0.0
    %826 = vmatprep.subr.mxu0 0.0
    %827 = vmatpush1.msra.mxu0 0.0
    %828 = vmatprep.mubr.f32.mxu0 0.0
    %829 = vmatmul.mubr.f32.gmra.mrb[0].mxu0 %v762
    %v830 = vpop.f32.mrb[0].mxu0
    %v831 = vadd.f32 0.0, %v830
    %v832 = vpop.f32.mrb[0].mxu0
    %833 = vdwg.mxu0
    %v835 = vsel %vm160, %v755, 0
    %v838 = vsel %vm160, %v831, 0
    %840 = vmatprep.subr.mxu0 0.0
    %841 = vmatpush1.msra.mxu0 %v154
    %842 = vmatprep.subr.mxu0 0.0
    %843 = vmatpush1.msra.mxu0 0.0
    %844 = vmatprep.subr.mxu0 0.0
    %845 = vmatpush1.msra.mxu0 0.0
    %846 = vmatprep.subr.mxu0 0.0
    %847 = vmatpush1.msra.mxu0 0.0
    %848 = vmatprep.subr.mxu0 0.0
    %849 = vmatpush1.msra.mxu0 0.0
    %850 = vmatprep.subr.mxu0 0.0
    %851 = vmatpush1.msra.mxu0 0.0
    %852 = vmatprep.subr.mxu0 0.0
    %853 = vmatpush1.msra.mxu0 0.0
    %854 = vmatprep.subr.mxu0 0.0
    %855 = vmatpush1.msra.mxu0 0.0
    %856 = vmatprep.subr.mxu0 0.0
    %857 = vmatpush1.msra.mxu0 0.0
    %858 = vmatprep.subr.mxu0 0.0
    %859 = vmatpush1.msra.mxu0 0.0
    %860 = vmatprep.subr.mxu0 0.0
    %861 = vmatpush1.msra.mxu0 0.0
    %862 = vmatprep.subr.mxu0 0.0
    %863 = vmatpush1.msra.mxu0 0.0
    %864 = vmatprep.subr.mxu0 0.0
    %865 = vmatpush1.msra.mxu0 0.0
    %866 = vmatprep.subr.mxu0 0.0
    %867 = vmatpush1.msra.mxu0 0.0
    %868 = vmatprep.subr.mxu0 0.0
    %869 = vmatpush1.msra.mxu0 0.0
    %870 = vmatprep.subr.mxu0 0.0
    %871 = vmatpush1.msra.mxu0 0.0
    %872 = vmatprep.subr.mxu0 0.0
    %873 = vmatpush1.msra.mxu0 0.0
    %874 = vmatprep.subr.mxu0 0.0
    %875 = vmatpush1.msra.mxu0 0.0
    %876 = vmatprep.subr.mxu0 0.0
    %877 = vmatpush1.msra.mxu0 0.0
    %878 = vmatprep.subr.mxu0 0.0
    %879 = vmatpush1.msra.mxu0 0.0
    %880 = vmatprep.subr.mxu0 0.0
    %881 = vmatpush1.msra.mxu0 0.0
    %882 = vmatprep.subr.mxu0 0.0
    %883 = vmatpush1.msra.mxu0 0.0
    %884 = vmatprep.subr.mxu0 0.0
    %885 = vmatpush1.msra.mxu0 0.0
    %886 = vmatprep.subr.mxu0 0.0
    %887 = vmatpush1.msra.mxu0 0.0
    %888 = vmatprep.subr.mxu0 0.0
    %889 = vmatpush1.msra.mxu0 0.0
    %890 = vmatprep.subr.mxu0 0.0
    %891 = vmatpush1.msra.mxu0 0.0
    %892 = vmatprep.subr.mxu0 0.0
    %893 = vmatpush1.msra.mxu0 0.0
    %894 = vmatprep.subr.mxu0 0.0
    %895 = vmatpush1.msra.mxu0 0.0
    %896 = vmatprep.subr.mxu0 0.0
    %897 = vmatpush1.msra.mxu0 0.0
    %898 = vmatprep.subr.mxu0 0.0
    %899 = vmatpush1.msra.mxu0 0.0
    %900 = vmatprep.subr.mxu0 0.0
    %901 = vmatpush1.msra.mxu0 0.0
    %902 = vmatprep.subr.mxu0 0.0
    %903 = vmatpush1.msra.mxu0 0.0
    %904 = vmatprep.mubr.f32.mxu0 0.0
    %905 = vmatmul.mubr.f32.gmra.mrb[0].mxu0 %v835
    %v906 = vpop.f32.mrb[0].mxu0
    %v907 = vadd.f32 0.0, %v906
    %v908 = vpop.f32.mrb[0].mxu0
    %909 = vmatprep.mubr.f32.mxu0 0.0
    %910 = vmatmul.mubr.f32.gmra.mrb[0].mxu0 %v838
    %v911 = vpop.f32.mrb[0].mxu0
    %v912 = vadd.f32 0.0, %v911
    %v913 = vpop.f32.mrb[0].mxu0
    %914 = vdwg.mxu0
    %v916 = vsel %vm160, %v421, 0
    %v919 = vsel %vm160, %v497, 0
    %921 = vmatprep.subr.mxu0 0.0
    %922 = vmatpush1.msra.mxu0 %v153
    %923 = vmatprep.subr.mxu0 0.0
    %924 = vmatpush1.msra.mxu0 0.0
    %925 = vmatprep.subr.mxu0 0.0
    %926 = vmatpush1.msra.mxu0 0.0
    %927 = vmatprep.subr.mxu0 0.0
    %928 = vmatpush1.msra.mxu0 0.0
    %929 = vmatprep.subr.mxu0 0.0
    %930 = vmatpush1.msra.mxu0 0.0
    %931 = vmatprep.subr.mxu0 0.0
    %932 = vmatpush1.msra.mxu0 0.0
    %933 = vmatprep.subr.mxu0 0.0
    %934 = vmatpush1.msra.mxu0 0.0
    %935 = vmatprep.subr.mxu0 0.0
    %936 = vmatpush1.msra.mxu0 0.0
    %937 = vmatprep.subr.mxu0 0.0
    %938 = vmatpush1.msra.mxu0 0.0
    %939 = vmatprep.subr.mxu0 0.0
    %940 = vmatpush1.msra.mxu0 0.0
    %941 = vmatprep.subr.mxu0 0.0
    %942 = vmatpush1.msra.mxu0 0.0
    %943 = vmatprep.subr.mxu0 0.0
    %944 = vmatpush1.msra.mxu0 0.0
    %945 = vmatprep.subr.mxu0 0.0
    %946 = vmatpush1.msra.mxu0 0.0
    %947 = vmatprep.subr.mxu0 0.0
    %948 = vmatpush1.msra.mxu0 0.0
    %949 = vmatprep.subr.mxu0 0.0
    %950 = vmatpush1.msra.mxu0 0.0
    %951 = vmatprep.subr.mxu0 0.0
    %952 = vmatpush1.msra.mxu0 0.0
    %953 = vmatprep.subr.mxu0 0.0
    %954 = vmatpush1.msra.mxu0 0.0
    %955 = vmatprep.subr.mxu0 0.0
    %956 = vmatpush1.msra.mxu0 0.0
    %957 = vmatprep.subr.mxu0 0.0
    %958 = vmatpush1.msra.mxu0 0.0
    %959 = vmatprep.subr.mxu0 0.0
    %960 = vmatpush1.msra.mxu0 0.0
    %961 = vmatprep.subr.mxu0 0.0
    %962 = vmatpush1.msra.mxu0 0.0
    %963 = vmatprep.subr.mxu0 0.0
    %964 = vmatpush1.msra.mxu0 0.0
    %965 = vmatprep.subr.mxu0 0.0
    %966 = vmatpush1.msra.mxu0 0.0
    %967 = vmatprep.subr.mxu0 0.0
    %968 = vmatpush1.msra.mxu0 0.0
    %969 = vmatprep.subr.mxu0 0.0
    %970 = vmatpush1.msra.mxu0 0.0
    %971 = vmatprep.subr.mxu0 0.0
    %972 = vmatpush1.msra.mxu0 0.0
    %973 = vmatprep.subr.mxu0 0.0
    %974 = vmatpush1.msra.mxu0 0.0
    %975 = vmatprep.subr.mxu0 0.0
    %976 = vmatpush1.msra.mxu0 0.0
    %977 = vmatprep.subr.mxu0 0.0
    %978 = vmatpush1.msra.mxu0 0.0
    %979 = vmatprep.subr.mxu0 0.0
    %980 = vmatpush1.msra.mxu0 0.0
    %981 = vmatprep.subr.mxu0 0.0
    %982 = vmatpush1.msra.mxu0 0.0
    %983 = vmatprep.subr.mxu0 0.0
    %984 = vmatpush1.msra.mxu0 0.0
    %985 = vmatprep.mubr.f32.mxu0 0.0
    %986 = vmatmul.mubr.f32.gmra.mrb[0].mxu0 %v916
    %v987 = vpop.f32.mrb[0].mxu0
    %v988 = vadd.f32 %v907, %v987
    %v989 = vpop.f32.mrb[0].mxu0
    %990 = vmatprep.mubr.f32.mxu0 0.0
    %991 = vmatmul.mubr.f32.gmra.mrb[0].mxu0 %v919
    %v992 = vpop.f32.mrb[0].mxu0
    %v993 = vadd.f32 %v912, %v992
    %v994 = vpop.f32.mrb[0].mxu0
    %995 = vdwg.mxu0
    %996 = vrot.lane.b32.xlu0 %v121, 112
    %v997 = vpop.permute.xlu0 %996
    %998 = vrot.lane.b32.xlu0 %v121, 80
    %v999 = vpop.permute.xlu0 %998
    %v1000 = vsel %vm160, %v997, 0
    %v1002 = vsel %vm160, %v999, 0
    %1004 = vmatprep.subr.mxu0 0.0
    %1005 = vmatpush1.xpose.msra.mxu0 %v1002
    %1006 = vmatprep.subr.mxu0 0.0
    %1007 = vmatpush1.xpose.msra.mxu0 0.0
    %1008 = vmatprep.subr.mxu0 0.0
    %1009 = vmatpush1.xpose.msra.mxu0 0.0
    %1010 = vmatprep.subr.mxu0 0.0
    %1011 = vmatpush1.xpose.msra.mxu0 0.0
    %1012 = vmatprep.subr.mxu0 0.0
    %1013 = vmatpush1.xpose.msra.mxu0 0.0
    %1014 = vmatprep.subr.mxu0 0.0
    %1015 = vmatpush1.xpose.msra.mxu0 0.0
    %1016 = vmatprep.subr.mxu0 0.0
    %1017 = vmatpush1.xpose.msra.mxu0 0.0
    %1018 = vmatprep.subr.mxu0 0.0
    %1019 = vmatpush1.xpose.msra.mxu0 0.0
    %1020 = vmatprep.subr.mxu0 0.0
    %1021 = vmatpush1.xpose.msra.mxu0 0.0
    %1022 = vmatprep.subr.mxu0 0.0
    %1023 = vmatpush1.xpose.msra.mxu0 0.0
    %1024 = vmatprep.subr.mxu0 0.0
    %1025 = vmatpush1.xpose.msra.mxu0 0.0
    %1026 = vmatprep.subr.mxu0 0.0
    %1027 = vmatpush1.xpose.msra.mxu0 0.0
    %1028 = vmatprep.subr.mxu0 0.0
    %1029 = vmatpush1.xpose.msra.mxu0 0.0
    %1030 = vmatprep.subr.mxu0 0.0
    %1031 = vmatpush1.xpose.msra.mxu0 0.0
    %1032 = vmatprep.subr.mxu0 0.0
    %1033 = vmatpush1.xpose.msra.mxu0 0.0
    %1034 = vmatprep.subr.mxu0 0.0
    %1035 = vmatpush1.xpose.msra.mxu0 0.0
    %1036 = vmatprep.subr.mxu0 0.0
    %1037 = vmatpush1.xpose.msra.mxu0 0.0
    %1038 = vmatprep.subr.mxu0 0.0
    %1039 = vmatpush1.xpose.msra.mxu0 0.0
    %1040 = vmatprep.subr.mxu0 0.0
    %1041 = vmatpush1.xpose.msra.mxu0 0.0
    %1042 = vmatprep.subr.mxu0 0.0
    %1043 = vmatpush1.xpose.msra.mxu0 0.0
    %1044 = vmatprep.subr.mxu0 0.0
    %1045 = vmatpush1.xpose.msra.mxu0 0.0
    %1046 = vmatprep.subr.mxu0 0.0
    %1047 = vmatpush1.xpose.msra.mxu0 0.0
    %1048 = vmatprep.subr.mxu0 0.0
    %1049 = vmatpush1.xpose.msra.mxu0 0.0
    %1050 = vmatprep.subr.mxu0 0.0
    %1051 = vmatpush1.xpose.msra.mxu0 0.0
    %1052 = vmatprep.subr.mxu0 0.0
    %1053 = vmatpush1.xpose.msra.mxu0 0.0
    %1054 = vmatprep.subr.mxu0 0.0
    %1055 = vmatpush1.xpose.msra.mxu0 0.0
    %1056 = vmatprep.subr.mxu0 0.0
    %1057 = vmatpush1.xpose.msra.mxu0 0.0
    %1058 = vmatprep.subr.mxu0 0.0
    %1059 = vmatpush1.xpose.msra.mxu0 0.0
    %1060 = vmatprep.subr.mxu0 0.0
    %1061 = vmatpush1.xpose.msra.mxu0 0.0
    %1062 = vmatprep.subr.mxu0 0.0
    %1063 = vmatpush1.xpose.msra.mxu0 0.0
    %1064 = vmatprep.subr.mxu0 0.0
    %1065 = vmatpush1.xpose.msra.mxu0 0.0
    %1066 = vmatprep.subr.mxu0 0.0
    %1067 = vmatpush1.xpose.msra.mxu0 0.0
    %1068 = vmatprep.mubr.f32.mxu0 0.0
    %1069 = vmatmul.mubr.f32.gmra.mrb[0].mxu0 %v1000
    %v1070 = vpop.f32.mrb[0].mxu0
    %v1071 = vadd.f32 0.0, %v1070
    %v1072 = vpop.f32.mrb[0].mxu0
    %1073 = vdwg.mxu0
    %1074 = vrot.lane.b32.xlu0 %v124, 112
    %v1075 = vpop.permute.xlu0 %1074
    %1076 = vrot.lane.b32.xlu0 %v124, 80
    %v1077 = vpop.permute.xlu0 %1076
    %v1078 = vsel %vm160, %v1075, 0
    %v1080 = vsel %vm160, %v1077, 0
    %1082 = vmatprep.subr.mxu0 0.0
    %1083 = vmatpush1.xpose.msra.mxu0 %v1080
    %1084 = vmatprep.subr.mxu0 0.0
    %1085 = vmatpush1.xpose.msra.mxu0 0.0
    %1086 = vmatprep.subr.mxu0 0.0
    %1087 = vmatpush1.xpose.msra.mxu0 0.0
    %1088 = vmatprep.subr.mxu0 0.0
    %1089 = vmatpush1.xpose.msra.mxu0 0.0
    %1090 = vmatprep.subr.mxu0 0.0
    %1091 = vmatpush1.xpose.msra.mxu0 0.0
    %1092 = vmatprep.subr.mxu0 0.0
    %1093 = vmatpush1.xpose.msra.mxu0 0.0
    %1094 = vmatprep.subr.mxu0 0.0
    %1095 = vmatpush1.xpose.msra.mxu0 0.0
    %1096 = vmatprep.subr.mxu0 0.0
    %1097 = vmatpush1.xpose.msra.mxu0 0.0
    %1098 = vmatprep.subr.mxu0 0.0
    %1099 = vmatpush1.xpose.msra.mxu0 0.0
    %1100 = vmatprep.subr.mxu0 0.0
    %1101 = vmatpush1.xpose.msra.mxu0 0.0
    %1102 = vmatprep.subr.mxu0 0.0
    %1103 = vmatpush1.xpose.msra.mxu0 0.0
    %1104 = vmatprep.subr.mxu0 0.0
    %1105 = vmatpush1.xpose.msra.mxu0 0.0
    %1106 = vmatprep.subr.mxu0 0.0
    %1107 = vmatpush1.xpose.msra.mxu0 0.0
    %1108 = vmatprep.subr.mxu0 0.0
    %1109 = vmatpush1.xpose.msra.mxu0 0.0
    %1110 = vmatprep.subr.mxu0 0.0
    %1111 = vmatpush1.xpose.msra.mxu0 0.0
    %1112 = vmatprep.subr.mxu0 0.0
    %1113 = vmatpush1.xpose.msra.mxu0 0.0
    %1114 = vmatprep.subr.mxu0 0.0
    %1115 = vmatpush1.xpose.msra.mxu0 0.0
    %1116 = vmatprep.subr.mxu0 0.0
    %1117 = vmatpush1.xpose.msra.mxu0 0.0
    %1118 = vmatprep.subr.mxu0 0.0
    %1119 = vmatpush1.xpose.msra.mxu0 0.0
    %1120 = vmatprep.subr.mxu0 0.0
    %1121 = vmatpush1.xpose.msra.mxu0 0.0
    %1122 = vmatprep.subr.mxu0 0.0
    %1123 = vmatpush1.xpose.msra.mxu0 0.0
    %1124 = vmatprep.subr.mxu0 0.0
    %1125 = vmatpush1.xpose.msra.mxu0 0.0
    %1126 = vmatprep.subr.mxu0 0.0
    %1127 = vmatpush1.xpose.msra.mxu0 0.0
    %1128 = vmatprep.subr.mxu0 0.0
    %1129 = vmatpush1.xpose.msra.mxu0 0.0
    %1130 = vmatprep.subr.mxu0 0.0
    %1131 = vmatpush1.xpose.msra.mxu0 0.0
    %1132 = vmatprep.subr.mxu0 0.0
    %1133 = vmatpush1.xpose.msra.mxu0 0.0
    %1134 = vmatprep.subr.mxu0 0.0
    %1135 = vmatpush1.xpose.msra.mxu0 0.0
    %1136 = vmatprep.subr.mxu0 0.0
    %1137 = vmatpush1.xpose.msra.mxu0 0.0
    %1138 = vmatprep.subr.mxu0 0.0
    %1139 = vmatpush1.xpose.msra.mxu0 0.0
    %1140 = vmatprep.subr.mxu0 0.0
    %1141 = vmatpush1.xpose.msra.mxu0 0.0
    %1142 = vmatprep.subr.mxu0 0.0
    %1143 = vmatpush1.xpose.msra.mxu0 0.0
    %1144 = vmatprep.subr.mxu0 0.0
    %1145 = vmatpush1.xpose.msra.mxu0 0.0
    %1146 = vmatprep.mubr.f32.mxu0 0.0
    %1147 = vmatmul.mubr.f32.gmra.mrb[0].mxu0 %v1078
    %v1148 = vpop.f32.mrb[0].mxu0
    %v1149 = vadd.f32 0.0, %v1148
    %v1150 = vpop.f32.mrb[0].mxu0
    %1151 = vdwg.mxu0
    %v1152 = vmul.f32 %v1071, 0.35355338
    %v1153 = vmul.f32 %v1149, 0.35355338
    %v1154 = vadd.f32 %v1152, %v317
    %v1155 = vadd.f32 %v1153, %v321
    %v1156 = vsel %vm160, %v1154, -inf
    %1157 = vmax.xlane.f32.xlu0 %v1156
    %v1158 = vpop.xlane.xlu0 %1157
    %v1159 = vsel %vm160, %v1155, -inf
    %1160 = vmax.xlane.f32.xlu0 %v1159
    %v1161 = vpop.xlane.xlu0 %1160
    %v1162 = vsub.f32 %v1154, %v1158
    %v1163 = vsub.f32 %v1155, %v1161
    %v1164 = vmul.f32 %v1162, 1.442695
    %v1165 = vpow.pop %v1164
    %v1166 = vmul.f32 %v1163, 1.442695
    %v1167 = vpow.pop %v1166
    %v1168 = vsel %vm160, %v1165, 0.0
    %1169 = vadd.xlane.f32.xlu0 %v1168
    %v1170 = vpop.xlane.xlu0 %1169
    %v1171 = vsel %vm160, %v1167, 0.0
    %1172 = vadd.xlane.f32.xlu0 %v1171
    %v1173 = vpop.xlane.xlu0 %1172
    %v1174 = vrcp.pop %v1170
    %v1175 = vrcp.pop %v1173
    %v1176 = vmul.f32 %v1165, %v1174
    %v1177 = vmul.f32 %v1167, %v1175
    %1178 = vrot.lane.b32.xlu0 %v121, 48
    %v1179 = vpop.permute.xlu0 %1178
    %v1182 = vsel %vm160, %v1176, 0
    %1184 = vmatprep.subr.mxu0 0.0
    %1185 = vmatpush1.msra.mxu0 %v1179
    %1186 = vmatprep.subr.mxu0 0.0
    %1187 = vmatpush1.msra.mxu0 0.0
    %1188 = vmatprep.subr.mxu0 0.0
    %1189 = vmatpush1.msra.mxu0 0.0
    %1190 = vmatprep.subr.mxu0 0.0
    %1191 = vmatpush1.msra.mxu0 0.0
    %1192 = vmatprep.subr.mxu0 0.0
    %1193 = vmatpush1.msra.mxu0 0.0
    %1194 = vmatprep.subr.mxu0 0.0
    %1195 = vmatpush1.msra.mxu0 0.0
    %1196 = vmatprep.subr.mxu0 0.0
    %1197 = vmatpush1.msra.mxu0 0.0
    %1198 = vmatprep.subr.mxu0 0.0
    %1199 = vmatpush1.msra.mxu0 0.0
    %1200 = vmatprep.subr.mxu0 0.0
    %1201 = vmatpush1.msra.mxu0 0.0
    %1202 = vmatprep.subr.mxu0 0.0
    %1203 = vmatpush1.msra.mxu0 0.0
    %1204 = vmatprep.subr.mxu0 0.0
    %1205 = vmatpush1.msra.mxu0 0.0
    %1206 = vmatprep.subr.mxu0 0.0
    %1207 = vmatpush1.msra.mxu0 0.0
    %1208 = vmatprep.subr.mxu0 0.0
    %1209 = vmatpush1.msra.mxu0 0.0
    %1210 = vmatprep.subr.mxu0 0.0
    %1211 = vmatpush1.msra.mxu0 0.0
    %1212 = vmatprep.subr.mxu0 0.0
    %1213 = vmatpush1.msra.mxu0 0.0
    %1214 = vmatprep.subr.mxu0 0.0
    %1215 = vmatpush1.msra.mxu0 0.0
    %1216 = vmatprep.subr.mxu0 0.0
    %1217 = vmatpush1.msra.mxu0 0.0
    %1218 = vmatprep.subr.mxu0 0.0
    %1219 = vmatpush1.msra.mxu0 0.0
    %1220 = vmatprep.subr.mxu0 0.0
    %1221 = vmatpush1.msra.mxu0 0.0
    %1222 = vmatprep.subr.mxu0 0.0
    %1223 = vmatpush1.msra.mxu0 0.0
    %1224 = vmatprep.subr.mxu0 0.0
    %1225 = vmatpush1.msra.mxu0 0.0
    %1226 = vmatprep.subr.mxu0 0.0
    %1227 = vmatpush1.msra.mxu0 0.0
    %1228 = vmatprep.subr.mxu0 0.0
    %1229 = vmatpush1.msra.mxu0 0.0
    %1230 = vmatprep.subr.mxu0 0.0
    %1231 = vmatpush1.msra.mxu0 0.0
    %1232 = vmatprep.subr.mxu0 0.0
    %1233 = vmatpush1.msra.mxu0 0.0
    %1234 = vmatprep.subr.mxu0 0.0
    %1235 = vmatpush1.msra.mxu0 0.0
    %1236 = vmatprep.subr.mxu0 0.0
    %1237 = vmatpush1.msra.mxu0 0.0
    %1238 = vmatprep.subr.mxu0 0.0
    %1239 = vmatpush1.msra.mxu0 0.0
    %1240 = vmatprep.subr.mxu0 0.0
    %1241 = vmatpush1.msra.mxu0 0.0
    %1242 = vmatprep.subr.mxu0 0.0
    %1243 = vmatpush1.msra.mxu0 0.0
    %1244 = vmatprep.subr.mxu0 0.0
    %1245 = vmatpush1.msra.mxu0 0.0
    %1246 = vmatprep.subr.mxu0 0.0
    %1247 = vmatpush1.msra.mxu0 0.0
    %1248 = vmatprep.mubr.f32.mxu0 0.0
    %1249 = vmatmul.mubr.f32.gmra.mrb[0].mxu0 %v1182
    %v1250 = vpop.f32.mrb[0].mxu0
    %v1251 = vadd.f32 0.0, %v1250
    %v1252 = vpop.f32.mrb[0].mxu0
    %1253 = vdwg.mxu0
    %1254 = vrot.lane.b32.xlu0 %v124, 48
    %v1255 = vpop.permute.xlu0 %1254
    %v1258 = vsel %vm160, %v1177, 0
    %1260 = vmatprep.subr.mxu0 0.0
    %1261 = vmatpush1.msra.mxu0 %v1255
    %1262 = vmatprep.subr.mxu0 0.0
    %1263 = vmatpush1.msra.mxu0 0.0
    %1264 = vmatprep.subr.mxu0 0.0
    %1265 = vmatpush1.msra.mxu0 0.0
    %1266 = vmatprep.subr.mxu0 0.0
    %1267 = vmatpush1.msra.mxu0 0.0
    %1268 = vmatprep.subr.mxu0 0.0
    %1269 = vmatpush1.msra.mxu0 0.0
    %1270 = vmatprep.subr.mxu0 0.0
    %1271 = vmatpush1.msra.mxu0 0.0
    %1272 = vmatprep.subr.mxu0 0.0
    %1273 = vmatpush1.msra.mxu0 0.0
    %1274 = vmatprep.subr.mxu0 0.0
    %1275 = vmatpush1.msra.mxu0 0.0
    %1276 = vmatprep.subr.mxu0 0.0
    %1277 = vmatpush1.msra.mxu0 0.0
    %1278 = vmatprep.subr.mxu0 0.0
    %1279 = vmatpush1.msra.mxu0 0.0
    %1280 = vmatprep.subr.mxu0 0.0
    %1281 = vmatpush1.msra.mxu0 0.0
    %1282 = vmatprep.subr.mxu0 0.0
    %1283 = vmatpush1.msra.mxu0 0.0
    %1284 = vmatprep.subr.mxu0 0.0
    %1285 = vmatpush1.msra.mxu0 0.0
    %1286 = vmatprep.subr.mxu0 0.0
    %1287 = vmatpush1.msra.mxu0 0.0
    %1288 = vmatprep.subr.mxu0 0.0
    %1289 = vmatpush1.msra.mxu0 0.0
    %1290 = vmatprep.subr.mxu0 0.0
    %1291 = vmatpush1.msra.mxu0 0.0
    %1292 = vmatprep.subr.mxu0 0.0
    %1293 = vmatpush1.msra.mxu0 0.0
    %1294 = vmatprep.subr.mxu0 0.0
    %1295 = vmatpush1.msra.mxu0 0.0
    %1296 = vmatprep.subr.mxu0 0.0
    %1297 = vmatpush1.msra.mxu0 0.0
    %1298 = vmatprep.subr.mxu0 0.0
    %1299 = vmatpush1.msra.mxu0 0.0
    %1300 = vmatprep.subr.mxu0 0.0
    %1301 = vmatpush1.msra.mxu0 0.0
    %1302 = vmatprep.subr.mxu0 0.0
    %1303 = vmatpush1.msra.mxu0 0.0
    %1304 = vmatprep.subr.mxu0 0.0
    %1305 = vmatpush1.msra.mxu0 0.0
    %1306 = vmatprep.subr.mxu0 0.0
    %1307 = vmatpush1.msra.mxu0 0.0
    %1308 = vmatprep.subr.mxu0 0.0
    %1309 = vmatpush1.msra.mxu0 0.0
    %1310 = vmatprep.subr.mxu0 0.0
    %1311 = vmatpush1.msra.mxu0 0.0
    %1312 = vmatprep.subr.mxu0 0.0
    %1313 = vmatpush1.msra.mxu0 0.0
    %1314 = vmatprep.subr.mxu0 0.0
    %1315 = vmatpush1.msra.mxu0 0.0
    %1316 = vmatprep.subr.mxu0 0.0
    %1317 = vmatpush1.msra.mxu0 0.0
    %1318 = vmatprep.subr.mxu0 0.0
    %1319 = vmatpush1.msra.mxu0 0.0
    %1320 = vmatprep.subr.mxu0 0.0
    %1321 = vmatpush1.msra.mxu0 0.0
    %1322 = vmatprep.subr.mxu0 0.0
    %1323 = vmatpush1.msra.mxu0 0.0
    %1324 = vmatprep.mubr.f32.mxu0 0.0
    %1325 = vmatmul.mubr.f32.gmra.mrb[0].mxu0 %v1258
    %v1326 = vpop.f32.mrb[0].mxu0
    %v1327 = vadd.f32 0.0, %v1326
    %v1328 = vpop.f32.mrb[0].mxu0
    %1329 = vdwg.mxu0
    %v1331 = vsel %vm160, %v1251, 0
    %v1334 = vsel %vm160, %v1327, 0
    %1336 = vmatprep.subr.mxu0 0.0
    %1337 = vmatpush1.msra.mxu0 %v155
    %1338 = vmatprep.subr.mxu0 0.0
    %1339 = vmatpush1.msra.mxu0 0.0
    %1340 = vmatprep.subr.mxu0 0.0
    %1341 = vmatpush1.msra.mxu0 0.0
    %1342 = vmatprep.subr.mxu0 0.0
    %1343 = vmatpush1.msra.mxu0 0.0
    %1344 = vmatprep.subr.mxu0 0.0
    %1345 = vmatpush1.msra.mxu0 0.0
    %1346 = vmatprep.subr.mxu0 0.0
    %1347 = vmatpush1.msra.mxu0 0.0
    %1348 = vmatprep.subr.mxu0 0.0
    %1349 = vmatpush1.msra.mxu0 0.0
    %1350 = vmatprep.subr.mxu0 0.0
    %1351 = vmatpush1.msra.mxu0 0.0
    %1352 = vmatprep.subr.mxu0 0.0
    %1353 = vmatpush1.msra.mxu0 0.0
    %1354 = vmatprep.subr.mxu0 0.0
    %1355 = vmatpush1.msra.mxu0 0.0
    %1356 = vmatprep.subr.mxu0 0.0
    %1357 = vmatpush1.msra.mxu0 0.0
    %1358 = vmatprep.subr.mxu0 0.0
    %1359 = vmatpush1.msra.mxu0 0.0
    %1360 = vmatprep.subr.mxu0 0.0
    %1361 = vmatpush1.msra.mxu0 0.0
    %1362 = vmatprep.subr.mxu0 0.0
    %1363 = vmatpush1.msra.mxu0 0.0
    %1364 = vmatprep.subr.mxu0 0.0
    %1365 = vmatpush1.msra.mxu0 0.0
    %1366 = vmatprep.subr.mxu0 0.0
    %1367 = vmatpush1.msra.mxu0 0.0
    %1368 = vmatprep.subr.mxu0 0.0
    %1369 = vmatpush1.msra.mxu0 0.0
    %1370 = vmatprep.subr.mxu0 0.0
    %1371 = vmatpush1.msra.mxu0 0.0
    %1372 = vmatprep.subr.mxu0 0.0
    %1373 = vmatpush1.msra.mxu0 0.0
    %1374 = vmatprep.subr.mxu0 0.0
    %1375 = vmatpush1.msra.mxu0 0.0
    %1376 = vmatprep.subr.mxu0 0.0
    %1377 = vmatpush1.msra.mxu0 0.0
    %1378 = vmatprep.subr.mxu0 0.0
    %1379 = vmatpush1.msra.mxu0 0.0
    %1380 = vmatprep.subr.mxu0 0.0
    %1381 = vmatpush1.msra.mxu0 0.0
    %1382 = vmatprep.subr.mxu0 0.0
    %1383 = vmatpush1.msra.mxu0 0.0
    %1384 = vmatprep.subr.mxu0 0.0
    %1385 = vmatpush1.msra.mxu0 0.0
    %1386 = vmatprep.subr.mxu0 0.0
    %1387 = vmatpush1.msra.mxu0 0.0
    %1388 = vmatprep.subr.mxu0 0.0
    %1389 = vmatpush1.msra.mxu0 0.0
    %1390 = vmatprep.subr.mxu0 0.0
    %1391 = vmatpush1.msra.mxu0 0.0
    %1392 = vmatprep.subr.mxu0 0.0
    %1393 = vmatpush1.msra.mxu0 0.0
    %1394 = vmatprep.subr.mxu0 0.0
    %1395 = vmatpush1.msra.mxu0 0.0
    %1396 = vmatprep.subr.mxu0 0.0
    %1397 = vmatpush1.msra.mxu0 0.0
    %1398 = vmatprep.subr.mxu0 0.0
    %1399 = vmatpush1.msra.mxu0 0.0
    %1400 = vmatprep.mubr.f32.mxu0 0.0
    %1401 = vmatmul.mubr.f32.gmra.mrb[0].mxu0 %v1331
    %v1402 = vpop.f32.mrb[0].mxu0
    %v1403 = vadd.f32 0.0, %v1402
    %v1404 = vpop.f32.mrb[0].mxu0
    %1405 = vmatprep.mubr.f32.mxu0 0.0
    %1406 = vmatmul.mubr.f32.gmra.mrb[0].mxu0 %v1334
    %v1407 = vpop.f32.mrb[0].mxu0
    %v1408 = vadd.f32 0.0, %v1407
    %v1409 = vpop.f32.mrb[0].mxu0
    %1410 = vdwg.mxu0
    %v1411 = vadd.f32 %v988, %v1403
    %v1412 = vadd.f32 %v993, %v1408
    %1413 = vrot.lane.b32.xlu0 %v121, 104
    %v1414 = vpop.permute.xlu0 %1413
    %1415 = vrot.lane.b32.xlu0 %v121, 72
    %v1416 = vpop.permute.xlu0 %1415
    %v1417 = vsel %vm160, %v1414, 0
    %v1419 = vsel %vm160, %v1416, 0
    %1421 = vmatprep.subr.mxu0 0.0
    %1422 = vmatpush1.xpose.msra.mxu0 %v1419
    %1423 = vmatprep.subr.mxu0 0.0
    %1424 = vmatpush1.xpose.msra.mxu0 0.0
    %1425 = vmatprep.subr.mxu0 0.0
    %1426 = vmatpush1.xpose.msra.mxu0 0.0
    %1427 = vmatprep.subr.mxu0 0.0
    %1428 = vmatpush1.xpose.msra.mxu0 0.0
    %1429 = vmatprep.subr.mxu0 0.0
    %1430 = vmatpush1.xpose.msra.mxu0 0.0
    %1431 = vmatprep.subr.mxu0 0.0
    %1432 = vmatpush1.xpose.msra.mxu0 0.0
    %1433 = vmatprep.subr.mxu0 0.0
    %1434 = vmatpush1.xpose.msra.mxu0 0.0
    %1435 = vmatprep.subr.mxu0 0.0
    %1436 = vmatpush1.xpose.msra.mxu0 0.0
    %1437 = vmatprep.subr.mxu0 0.0
    %1438 = vmatpush1.xpose.msra.mxu0 0.0
    %1439 = vmatprep.subr.mxu0 0.0
    %1440 = vmatpush1.xpose.msra.mxu0 0.0
    %1441 = vmatprep.subr.mxu0 0.0
    %1442 = vmatpush1.xpose.msra.mxu0 0.0
    %1443 = vmatprep.subr.mxu0 0.0
    %1444 = vmatpush1.xpose.msra.mxu0 0.0
    %1445 = vmatprep.subr.mxu0 0.0
    %1446 = vmatpush1.xpose.msra.mxu0 0.0
    %1447 = vmatprep.subr.mxu0 0.0
    %1448 = vmatpush1.xpose.msra.mxu0 0.0
    %1449 = vmatprep.subr.mxu0 0.0
    %1450 = vmatpush1.xpose.msra.mxu0 0.0
    %1451 = vmatprep.subr.mxu0 0.0
    %1452 = vmatpush1.xpose.msra.mxu0 0.0
    %1453 = vmatprep.subr.mxu0 0.0
    %1454 = vmatpush1.xpose.msra.mxu0 0.0
    %1455 = vmatprep.subr.mxu0 0.0
    %1456 = vmatpush1.xpose.msra.mxu0 0.0
    %1457 = vmatprep.subr.mxu0 0.0
    %1458 = vmatpush1.xpose.msra.mxu0 0.0
    %1459 = vmatprep.subr.mxu0 0.0
    %1460 = vmatpush1.xpose.msra.mxu0 0.0
    %1461 = vmatprep.subr.mxu0 0.0
    %1462 = vmatpush1.xpose.msra.mxu0 0.0
    %1463 = vmatprep.subr.mxu0 0.0
    %1464 = vmatpush1.xpose.msra.mxu0 0.0
    %1465 = vmatprep.subr.mxu0 0.0
    %1466 = vmatpush1.xpose.msra.mxu0 0.0
    %1467 = vmatprep.subr.mxu0 0.0
    %1468 = vmatpush1.xpose.msra.mxu0 0.0
    %1469 = vmatprep.subr.mxu0 0.0
    %1470 = vmatpush1.xpose.msra.mxu0 0.0
    %1471 = vmatprep.subr.mxu0 0.0
    %1472 = vmatpush1.xpose.msra.mxu0 0.0
    %1473 = vmatprep.subr.mxu0 0.0
    %1474 = vmatpush1.xpose.msra.mxu0 0.0
    %1475 = vmatprep.subr.mxu0 0.0
    %1476 = vmatpush1.xpose.msra.mxu0 0.0
    %1477 = vmatprep.subr.mxu0 0.0
    %1478 = vmatpush1.xpose.msra.mxu0 0.0
    %1479 = vmatprep.subr.mxu0 0.0
    %1480 = vmatpush1.xpose.msra.mxu0 0.0
    %1481 = vmatprep.subr.mxu0 0.0
    %1482 = vmatpush1.xpose.msra.mxu0 0.0
    %1483 = vmatprep.subr.mxu0 0.0
    %1484 = vmatpush1.xpose.msra.mxu0 0.0
    %1485 = vmatprep.mubr.f32.mxu0 0.0
    %1486 = vmatmul.mubr.f32.gmra.mrb[0].mxu0 %v1417
    %v1487 = vpop.f32.mrb[0].mxu0
    %v1488 = vadd.f32 0.0, %v1487
    %v1489 = vpop.f32.mrb[0].mxu0
    %1490 = vdwg.mxu0
    %1491 = vrot.lane.b32.xlu0 %v124, 104
    %v1492 = vpop.permute.xlu0 %1491
    %1493 = vrot.lane.b32.xlu0 %v124, 72
    %v1494 = vpop.permute.xlu0 %1493
    %v1495 = vsel %vm160, %v1492, 0
    %v1497 = vsel %vm160, %v1494, 0
    %1499 = vmatprep.subr.mxu0 0.0
    %1500 = vmatpush1.xpose.msra.mxu0 %v1497
    %1501 = vmatprep.subr.mxu0 0.0
    %1502 = vmatpush1.xpose.msra.mxu0 0.0
    %1503 = vmatprep.subr.mxu0 0.0
    %1504 = vmatpush1.xpose.msra.mxu0 0.0
    %1505 = vmatprep.subr.mxu0 0.0
    %1506 = vmatpush1.xpose.msra.mxu0 0.0
    %1507 = vmatprep.subr.mxu0 0.0
    %1508 = vmatpush1.xpose.msra.mxu0 0.0
    %1509 = vmatprep.subr.mxu0 0.0
    %1510 = vmatpush1.xpose.msra.mxu0 0.0
    %1511 = vmatprep.subr.mxu0 0.0
    %1512 = vmatpush1.xpose.msra.mxu0 0.0
    %1513 = vmatprep.subr.mxu0 0.0
    %1514 = vmatpush1.xpose.msra.mxu0 0.0
    %1515 = vmatprep.subr.mxu0 0.0
    %1516 = vmatpush1.xpose.msra.mxu0 0.0
    %1517 = vmatprep.subr.mxu0 0.0
    %1518 = vmatpush1.xpose.msra.mxu0 0.0
    %1519 = vmatprep.subr.mxu0 0.0
    %1520 = vmatpush1.xpose.msra.mxu0 0.0
    %1521 = vmatprep.subr.mxu0 0.0
    %1522 = vmatpush1.xpose.msra.mxu0 0.0
    %1523 = vmatprep.subr.mxu0 0.0
    %1524 = vmatpush1.xpose.msra.mxu0 0.0
    %1525 = vmatprep.subr.mxu0 0.0
    %1526 = vmatpush1.xpose.msra.mxu0 0.0
    %1527 = vmatprep.subr.mxu0 0.0
    %1528 = vmatpush1.xpose.msra.mxu0 0.0
    %1529 = vmatprep.subr.mxu0 0.0
    %1530 = vmatpush1.xpose.msra.mxu0 0.0
    %1531 = vmatprep.subr.mxu0 0.0
    %1532 = vmatpush1.xpose.msra.mxu0 0.0
    %1533 = vmatprep.subr.mxu0 0.0
    %1534 = vmatpush1.xpose.msra.mxu0 0.0
    %1535 = vmatprep.subr.mxu0 0.0
    %1536 = vmatpush1.xpose.msra.mxu0 0.0
    %1537 = vmatprep.subr.mxu0 0.0
    %1538 = vmatpush1.xpose.msra.mxu0 0.0
    %1539 = vmatprep.subr.mxu0 0.0
    %1540 = vmatpush1.xpose.msra.mxu0 0.0
    %1541 = vmatprep.subr.mxu0 0.0
    %1542 = vmatpush1.xpose.msra.mxu0 0.0
    %1543 = vmatprep.subr.mxu0 0.0
    %1544 = vmatpush1.xpose.msra.mxu0 0.0
    %1545 = vmatprep.subr.mxu0 0.0
    %1546 = vmatpush1.xpose.msra.mxu0 0.0
    %1547 = vmatprep.subr.mxu0 0.0
    %1548 = vmatpush1.xpose.msra.mxu0 0.0
    %1549 = vmatprep.subr.mxu0 0.0
    %1550 = vmatpush1.xpose.msra.mxu0 0.0
    %1551 = vmatprep.subr.mxu0 0.0
    %1552 = vmatpush1.xpose.msra.mxu0 0.0
    %1553 = vmatprep.subr.mxu0 0.0
    %1554 = vmatpush1.xpose.msra.mxu0 0.0
    %1555 = vmatprep.subr.mxu0 0.0
    %1556 = vmatpush1.xpose.msra.mxu0 0.0
    %1557 = vmatprep.subr.mxu0 0.0
    %1558 = vmatpush1.xpose.msra.mxu0 0.0
    %1559 = vmatprep.subr.mxu0 0.0
    %1560 = vmatpush1.xpose.msra.mxu0 0.0
    %1561 = vmatprep.subr.mxu0 0.0
    %1562 = vmatpush1.xpose.msra.mxu0 0.0
    %1563 = vmatprep.mubr.f32.mxu0 0.0
    %1564 = vmatmul.mubr.f32.gmra.mrb[0].mxu0 %v1495
    %v1565 = vpop.f32.mrb[0].mxu0
    %v1566 = vadd.f32 0.0, %v1565
    %v1567 = vpop.f32.mrb[0].mxu0
    %1568 = vdwg.mxu0
    %v1569 = vmul.f32 %v1488, 0.35355338
    %v1570 = vmul.f32 %v1566, 0.35355338
    %v1571 = vadd.f32 %v1569, %v317
    %v1572 = vadd.f32 %v1570, %v321
    %v1573 = vsel %vm160, %v1571, -inf
    %1574 = vmax.xlane.f32.xlu0 %v1573
    %v1575 = vpop.xlane.xlu0 %1574
    %v1576 = vsel %vm160, %v1572, -inf
    %1577 = vmax.xlane.f32.xlu0 %v1576
    %v1578 = vpop.xlane.xlu0 %1577
    %v1579 = vsub.f32 %v1571, %v1575
    %v1580 = vsub.f32 %v1572, %v1578
    %v1581 = vmul.f32 %v1579, 1.442695
    %v1582 = vpow.pop %v1581
    %v1583 = vmul.f32 %v1580, 1.442695
    %v1584 = vpow.pop %v1583
    %v1585 = vsel %vm160, %v1582, 0.0
    %1586 = vadd.xlane.f32.xlu0 %v1585
    %v1587 = vpop.xlane.xlu0 %1586
    %v1588 = vsel %vm160, %v1584, 0.0
    %1589 = vadd.xlane.f32.xlu0 %v1588
    %v1590 = vpop.xlane.xlu0 %1589
    %v1591 = vrcp.pop %v1587
    %v1592 = vrcp.pop %v1590
    %v1593 = vmul.f32 %v1582, %v1591
    %v1594 = vmul.f32 %v1584, %v1592
    %1595 = vrot.lane.b32.xlu0 %v121, 40
    %v1596 = vpop.permute.xlu0 %1595
    %v1599 = vsel %vm160, %v1593, 0
    %1601 = vmatprep.subr.mxu0 0.0
    %1602 = vmatpush1.msra.mxu0 %v1596
    %1603 = vmatprep.subr.mxu0 0.0
    %1604 = vmatpush1.msra.mxu0 0.0
    %1605 = vmatprep.subr.mxu0 0.0
    %1606 = vmatpush1.msra.mxu0 0.0
    %1607 = vmatprep.subr.mxu0 0.0
    %1608 = vmatpush1.msra.mxu0 0.0
    %1609 = vmatprep.subr.mxu0 0.0
    %1610 = vmatpush1.msra.mxu0 0.0
    %1611 = vmatprep.subr.mxu0 0.0
    %1612 = vmatpush1.msra.mxu0 0.0
    %1613 = vmatprep.subr.mxu0 0.0
    %1614 = vmatpush1.msra.mxu0 0.0
    %1615 = vmatprep.subr.mxu0 0.0
    %1616 = vmatpush1.msra.mxu0 0.0
    %1617 = vmatprep.subr.mxu0 0.0
    %1618 = vmatpush1.msra.mxu0 0.0
    %1619 = vmatprep.subr.mxu0 0.0
    %1620 = vmatpush1.msra.mxu0 0.0
    %1621 = vmatprep.subr.mxu0 0.0
    %1622 = vmatpush1.msra.mxu0 0.0
    %1623 = vmatprep.subr.mxu0 0.0
    %1624 = vmatpush1.msra.mxu0 0.0
    %1625 = vmatprep.subr.mxu0 0.0
    %1626 = vmatpush1.msra.mxu0 0.0
    %1627 = vmatprep.subr.mxu0 0.0
    %1628 = vmatpush1.msra.mxu0 0.0
    %1629 = vmatprep.subr.mxu0 0.0
    %1630 = vmatpush1.msra.mxu0 0.0
    %1631 = vmatprep.subr.mxu0 0.0
    %1632 = vmatpush1.msra.mxu0 0.0
    %1633 = vmatprep.subr.mxu0 0.0
    %1634 = vmatpush1.msra.mxu0 0.0
    %1635 = vmatprep.subr.mxu0 0.0
    %1636 = vmatpush1.msra.mxu0 0.0
    %1637 = vmatprep.subr.mxu0 0.0
    %1638 = vmatpush1.msra.mxu0 0.0
    %1639 = vmatprep.subr.mxu0 0.0
    %1640 = vmatpush1.msra.mxu0 0.0
    %1641 = vmatprep.subr.mxu0 0.0
    %1642 = vmatpush1.msra.mxu0 0.0
    %1643 = vmatprep.subr.mxu0 0.0
    %1644 = vmatpush1.msra.mxu0 0.0
    %1645 = vmatprep.subr.mxu0 0.0
    %1646 = vmatpush1.msra.mxu0 0.0
    %1647 = vmatprep.subr.mxu0 0.0
    %1648 = vmatpush1.msra.mxu0 0.0
    %1649 = vmatprep.subr.mxu0 0.0
    %1650 = vmatpush1.msra.mxu0 0.0
    %1651 = vmatprep.subr.mxu0 0.0
    %1652 = vmatpush1.msra.mxu0 0.0
    %1653 = vmatprep.subr.mxu0 0.0
    %1654 = vmatpush1.msra.mxu0 0.0
    %1655 = vmatprep.subr.mxu0 0.0
    %1656 = vmatpush1.msra.mxu0 0.0
    %1657 = vmatprep.subr.mxu0 0.0
    %1658 = vmatpush1.msra.mxu0 0.0
    %1659 = vmatprep.subr.mxu0 0.0
    %1660 = vmatpush1.msra.mxu0 0.0
    %1661 = vmatprep.subr.mxu0 0.0
    %1662 = vmatpush1.msra.mxu0 0.0
    %1663 = vmatprep.subr.mxu0 0.0
    %1664 = vmatpush1.msra.mxu0 0.0
    %1665 = vmatprep.mubr.f32.mxu0 0.0
    %1666 = vmatmul.mubr.f32.gmra.mrb[0].mxu0 %v1599
    %v1667 = vpop.f32.mrb[0].mxu0
    %v1668 = vadd.f32 0.0, %v1667
    %v1669 = vpop.f32.mrb[0].mxu0
    %1670 = vdwg.mxu0
    %1671 = vrot.lane.b32.xlu0 %v124, 40
    %v1672 = vpop.permute.xlu0 %1671
    %v1675 = vsel %vm160, %v1594, 0
    %1677 = vmatprep.subr.mxu0 0.0
    %1678 = vmatpush1.msra.mxu0 %v1672
    %1679 = vmatprep.subr.mxu0 0.0
    %1680 = vmatpush1.msra.mxu0 0.0
    %1681 = vmatprep.subr.mxu0 0.0
    %1682 = vmatpush1.msra.mxu0 0.0
    %1683 = vmatprep.subr.mxu0 0.0
    %1684 = vmatpush1.msra.mxu0 0.0
    %1685 = vmatprep.subr.mxu0 0.0
    %1686 = vmatpush1.msra.mxu0 0.0
    %1687 = vmatprep.subr.mxu0 0.0
    %1688 = vmatpush1.msra.mxu0 0.0
    %1689 = vmatprep.subr.mxu0 0.0
    %1690 = vmatpush1.msra.mxu0 0.0
    %1691 = vmatprep.subr.mxu0 0.0
    %1692 = vmatpush1.msra.mxu0 0.0
    %1693 = vmatprep.subr.mxu0 0.0
    %1694 = vmatpush1.msra.mxu0 0.0
    %1695 = vmatprep.subr.mxu0 0.0
    %1696 = vmatpush1.msra.mxu0 0.0
    %1697 = vmatprep.subr.mxu0 0.0
    %1698 = vmatpush1.msra.mxu0 0.0
    %1699 = vmatprep.subr.mxu0 0.0
    %1700 = vmatpush1.msra.mxu0 0.0
    %1701 = vmatprep.subr.mxu0 0.0
    %1702 = vmatpush1.msra.mxu0 0.0
    %1703 = vmatprep.subr.mxu0 0.0
    %1704 = vmatpush1.msra.mxu0 0.0
    %1705 = vmatprep.subr.mxu0 0.0
    %1706 = vmatpush1.msra.mxu0 0.0
    %1707 = vmatprep.subr.mxu0 0.0
    %1708 = vmatpush1.msra.mxu0 0.0
    %1709 = vmatprep.subr.mxu0 0.0
    %1710 = vmatpush1.msra.mxu0 0.0
    %1711 = vmatprep.subr.mxu0 0.0
    %1712 = vmatpush1.msra.mxu0 0.0
    %1713 = vmatprep.subr.mxu0 0.0
    %1714 = vmatpush1.msra.mxu0 0.0
    %1715 = vmatprep.subr.mxu0 0.0
    %1716 = vmatpush1.msra.mxu0 0.0
    %1717 = vmatprep.subr.mxu0 0.0
    %1718 = vmatpush1.msra.mxu0 0.0
    %1719 = vmatprep.subr.mxu0 0.0
    %1720 = vmatpush1.msra.mxu0 0.0
    %1721 = vmatprep.subr.mxu0 0.0
    %1722 = vmatpush1.msra.mxu0 0.0
    %1723 = vmatprep.subr.mxu0 0.0
    %1724 = vmatpush1.msra.mxu0 0.0
    %1725 = vmatprep.subr.mxu0 0.0
    %1726 = vmatpush1.msra.mxu0 0.0
    %1727 = vmatprep.subr.mxu0 0.0
    %1728 = vmatpush1.msra.mxu0 0.0
    %1729 = vmatprep.subr.mxu0 0.0
    %1730 = vmatpush1.msra.mxu0 0.0
    %1731 = vmatprep.subr.mxu0 0.0
    %1732 = vmatpush1.msra.mxu0 0.0
    %1733 = vmatprep.subr.mxu0 0.0
    %1734 = vmatpush1.msra.mxu0 0.0
    %1735 = vmatprep.subr.mxu0 0.0
    %1736 = vmatpush1.msra.mxu0 0.0
    %1737 = vmatprep.subr.mxu0 0.0
    %1738 = vmatpush1.msra.mxu0 0.0
    %1739 = vmatprep.subr.mxu0 0.0
    %1740 = vmatpush1.msra.mxu0 0.0
    %1741 = vmatprep.mubr.f32.mxu0 0.0
    %1742 = vmatmul.mubr.f32.gmra.mrb[0].mxu0 %v1675
    %v1743 = vpop.f32.mrb[0].mxu0
    %v1744 = vadd.f32 0.0, %v1743
    %v1745 = vpop.f32.mrb[0].mxu0
    %1746 = vdwg.mxu0
    %v1748 = vsel %vm160, %v1668, 0
    %v1751 = vsel %vm160, %v1744, 0
    %1753 = vmatprep.subr.mxu0 0.0
    %1754 = vmatpush1.msra.mxu0 %v156
    %1755 = vmatprep.subr.mxu0 0.0
    %1756 = vmatpush1.msra.mxu0 0.0
    %1757 = vmatprep.subr.mxu0 0.0
    %1758 = vmatpush1.msra.mxu0 0.0
    %1759 = vmatprep.subr.mxu0 0.0
    %1760 = vmatpush1.msra.mxu0 0.0
    %1761 = vmatprep.subr.mxu0 0.0
    %1762 = vmatpush1.msra.mxu0 0.0
    %1763 = vmatprep.subr.mxu0 0.0
    %1764 = vmatpush1.msra.mxu0 0.0
    %1765 = vmatprep.subr.mxu0 0.0
    %1766 = vmatpush1.msra.mxu0 0.0
    %1767 = vmatprep.subr.mxu0 0.0
    %1768 = vmatpush1.msra.mxu0 0.0
    %1769 = vmatprep.subr.mxu0 0.0
    %1770 = vmatpush1.msra.mxu0 0.0
    %1771 = vmatprep.subr.mxu0 0.0
    %1772 = vmatpush1.msra.mxu0 0.0
    %1773 = vmatprep.subr.mxu0 0.0
    %1774 = vmatpush1.msra.mxu0 0.0
    %1775 = vmatprep.subr.mxu0 0.0
    %1776 = vmatpush1.msra.mxu0 0.0
    %1777 = vmatprep.subr.mxu0 0.0
    %1778 = vmatpush1.msra.mxu0 0.0
    %1779 = vmatprep.subr.mxu0 0.0
    %1780 = vmatpush1.msra.mxu0 0.0
    %1781 = vmatprep.subr.mxu0 0.0
    %1782 = vmatpush1.msra.mxu0 0.0
    %1783 = vmatprep.subr.mxu0 0.0
    %1784 = vmatpush1.msra.mxu0 0.0
    %1785 = vmatprep.subr.mxu0 0.0
    %1786 = vmatpush1.msra.mxu0 0.0
    %1787 = vmatprep.subr.mxu0 0.0
    %1788 = vmatpush1.msra.mxu0 0.0
    %1789 = vmatprep.subr.mxu0 0.0
    %1790 = vmatpush1.msra.mxu0 0.0
    %1791 = vmatprep.subr.mxu0 0.0
    %1792 = vmatpush1.msra.mxu0 0.0
    %1793 = vmatprep.subr.mxu0 0.0
    %1794 = vmatpush1.msra.mxu0 0.0
    %1795 = vmatprep.subr.mxu0 0.0
    %1796 = vmatpush1.msra.mxu0 0.0
    %1797 = vmatprep.subr.mxu0 0.0
    %1798 = vmatpush1.msra.mxu0 0.0
    %1799 = vmatprep.subr.mxu0 0.0
    %1800 = vmatpush1.msra.mxu0 0.0
    %1801 = vmatprep.subr.mxu0 0.0
    %1802 = vmatpush1.msra.mxu0 0.0
    %1803 = vmatprep.subr.mxu0 0.0
    %1804 = vmatpush1.msra.mxu0 0.0
    %1805 = vmatprep.subr.mxu0 0.0
    %1806 = vmatpush1.msra.mxu0 0.0
    %1807 = vmatprep.subr.mxu0 0.0
    %1808 = vmatpush1.msra.mxu0 0.0
    %1809 = vmatprep.subr.mxu0 0.0
    %1810 = vmatpush1.msra.mxu0 0.0
    %1811 = vmatprep.subr.mxu0 0.0
    %1812 = vmatpush1.msra.mxu0 0.0
    %1813 = vmatprep.subr.mxu0 0.0
    %1814 = vmatpush1.msra.mxu0 0.0
    %1815 = vmatprep.subr.mxu0 0.0
    %1816 = vmatpush1.msra.mxu0 0.0
    %1817 = vmatprep.mubr.f32.mxu0 0.0
    %1818 = vmatmul.mubr.f32.gmra.mrb[0].mxu0 %v1748
    %v1819 = vpop.f32.mrb[0].mxu0
    %v1820 = vadd.f32 0.0, %v1819
    %v1821 = vpop.f32.mrb[0].mxu0
    %1822 = vmatprep.mubr.f32.mxu0 0.0
    %1823 = vmatmul.mubr.f32.gmra.mrb[0].mxu0 %v1751
    %v1824 = vpop.f32.mrb[0].mxu0
    %v1825 = vadd.f32 0.0, %v1824
    %v1826 = vpop.f32.mrb[0].mxu0
    %1827 = vdwg.mxu0
    %v1828 = vadd.f32 %v1411, %v1820
    %v1829 = vadd.f32 %v1412, %v1825
    %v1830 = vld [vmem:[%s6] sm:$0x1]
    %v1832 = vlaneseq
    %v1833 = vshrl.u32 %v1832, 7
    %v1834 = vsub.s32 0, %v1833
    %v1835 = vrot.slane %v1830, %v1834
    %v1837 = vadd.f32 %v1828, %v1835
    %v1838 = vadd.f32 %v1829, %v1835
    %v1839 = vadd.f32 %v56, %v1837
    %v1840 = vadd.f32 %v57, %v1838
    %v1841 = vld [vmem:[%s7] sm:$0x1]
    %v1842 = vld [vmem:[%s8] sm:$0x1]
    %v1843 = vsel %vm82, %v1839, 0.0
    %1844 = vadd.xlane.f32.xlu0 %v1843
    %v1845 = vpop.xlane.xlu0 %1844
    %v1846 = vsel %vm82, %v1840, 0.0
    %1847 = vadd.xlane.f32.xlu0 %v1846
    %v1848 = vpop.xlane.xlu0 %1847
    %v1849 = vrcp.pop 32.0
    %v1850 = vmul.f32 %v1845, %v1849
    %v1851 = vmul.f32 %v1848, %v1849
    %v1852 = vsub.f32 %v1839, %v1850
    %v1853 = vsub.f32 %v1840, %v1851
    %v1854 = vmul.f32 %v1852, %v1852
    %v1855 = vmul.f32 %v1853, %v1853
    %v1856 = vsel %vm82, %v1854, 0.0
    %1857 = vadd.xlane.f32.xlu0 %v1856
    %v1858 = vpop.xlane.xlu0 %1857
    %v1859 = vsel %vm82, %v1855, 0.0
    %1860 = vadd.xlane.f32.xlu0 %v1859
    %v1861 = vpop.xlane.xlu0 %1860
    %v1862 = vmul.f32 %v1858, %v1849
    %v1863 = vmul.f32 %v1861, %v1849
    %v1864 = vadd.f32 %v1862, 1e-05
    %v1865 = vadd.f32 %v1863, 1e-05
    %v1866 = vrsqrt.pop %v1864
    %v1867 = vrsqrt.pop %v1865
    %v1868 = vmul.f32 %v1852, %v1866
    %v1869 = vmul.f32 %v1853, %v1867
    %v1871 = vlaneseq
    %v1872 = vshrl.u32 %v1871, 7
    %v1873 = vsub.s32 0, %v1872
    %v1874 = vrot.slane %v1841, %v1873
    %v1876 = vmul.f32 %v1868, %v1874
    %v1877 = vmul.f32 %v1869, %v1874
    %v1879 = vlaneseq
    %v1880 = vshrl.u32 %v1879, 7
    %v1881 = vsub.s32 0, %v1880
    %v1882 = vrot.slane %v1842, %v1881
    %v1884 = vadd.f32 %v1876, %v1882
    %v1885 = vadd.f32 %v1877, %v1882
    %v1886 = vpack.c.bf16 %v1885, %v1884
    %v1887 = vld [vmem:[%s9] sm:$0xff]
    %v1888 = vld [vmem:[%s9 + $0x8] sm:$0xff]
    %v1889 = vld [vmem:[%s9 + $0x10] sm:$0xff]
    %v1890 = vld [vmem:[%s9 + $0x18] sm:$0xff]
    %v1891 = vld [vmem:[%s9 + $0x20] sm:$0xff]
    %v1892 = vld [vmem:[%s9 + $0x28] sm:$0xff]
    %v1893 = vld [vmem:[%s9 + $0x30] sm:$0xff]
    %v1894 = vld [vmem:[%s9 + $0x38] sm:$0xff]
    %v1895 = vld [vmem:[%s9 + $0x40] sm:$0xff]
    %v1896 = vld [vmem:[%s9 + $0x48] sm:$0xff]
    %v1897 = vld [vmem:[%s9 + $0x50] sm:$0xff]
    %v1898 = vld [vmem:[%s9 + $0x58] sm:$0xff]
    %v1899 = vld [vmem:[%s9 + $0x60] sm:$0xff]
    %v1900 = vld [vmem:[%s9 + $0x68] sm:$0xff]
    %v1901 = vld [vmem:[%s9 + $0x70] sm:$0xff]
    %v1902 = vld [vmem:[%s9 + $0x78] sm:$0xff]
    %v1903 = vld [vmem:[%s9 + $0x80] sm:$0xff]
    %v1904 = vld [vmem:[%s9 + $0x88] sm:$0xff]
    %v1905 = vld [vmem:[%s9 + $0x90] sm:$0xff]
    %v1906 = vld [vmem:[%s9 + $0x98] sm:$0xff]
    %v1907 = vld [vmem:[%s9 + $0xa0] sm:$0xff]
    %v1908 = vld [vmem:[%s9 + $0xa8] sm:$0xff]
    %v1909 = vld [vmem:[%s9 + $0xb0] sm:$0xff]
    %v1910 = vld [vmem:[%s9 + $0xb8] sm:$0xff]
    %v1911 = vld [vmem:[%s9 + $0xc0] sm:$0xff]
    %v1912 = vld [vmem:[%s9 + $0xc8] sm:$0xff]
    %v1913 = vld [vmem:[%s9 + $0xd0] sm:$0xff]
    %v1914 = vld [vmem:[%s9 + $0xd8] sm:$0xff]
    %v1915 = vld [vmem:[%s9 + $0xe0] sm:$0xff]
    %v1916 = vld [vmem:[%s9 + $0xe8] sm:$0xff]
    %v1917 = vld [vmem:[%s9 + $0xf0] sm:$0xff]
    %v1918 = vld [vmem:[%s9 + $0xf8] sm:$0xff]
    %v1919 = vld [vmem:[%s10] sm:$0xff]
    %v1920 = vld [vmem:[%s10 + $0x8] sm:$0xff]
    %v1923 = vlaneseq
    %v1924 = vshrl.u32 %v1923, 7
    %v1925 = vsub.s32 0, %v1924
    %v1926 = vrot.slane %v1919, %v1925
    %v1927 = vlaneseq
    %v1928 = vshrl.u32 %v1927, 7
    %v1929 = vsub.s32 1, %v1928
    %v1930 = vrot.slane %v1919, %v1929
    %v1931 = vlaneseq
    %v1932 = vshrl.u32 %v1931, 7
    %v1933 = vsub.s32 2, %v1932
    %v1934 = vrot.slane %v1919, %v1933
    %v1935 = vlaneseq
    %v1936 = vshrl.u32 %v1935, 7
    %v1937 = vsub.s32 3, %v1936
    %v1938 = vrot.slane %v1919, %v1937
    %v1939 = vlaneseq
    %v1940 = vshrl.u32 %v1939, 7
    %v1941 = vsub.s32 4, %v1940
    %v1942 = vrot.slane %v1919, %v1941
    %v1943 = vlaneseq
    %v1944 = vshrl.u32 %v1943, 7
    %v1945 = vsub.s32 5, %v1944
    %v1946 = vrot.slane %v1919, %v1945
    %v1947 = vlaneseq
    %v1948 = vshrl.u32 %v1947, 7
    %v1949 = vsub.s32 6, %v1948
    %v1950 = vrot.slane %v1919, %v1949
    %v1951 = vlaneseq
    %v1952 = vshrl.u32 %v1951, 7
    %v1953 = vsub.s32 7, %v1952
    %v1954 = vrot.slane %v1919, %v1953
    %v1955 = vlaneseq
    %v1956 = vshrl.u32 %v1955, 7
    %v1957 = vsub.s32 0, %v1956
    %v1958 = vrot.slane %v1920, %v1957
    %v1959 = vlaneseq
    %v1960 = vshrl.u32 %v1959, 7
    %v1961 = vsub.s32 1, %v1960
    %v1962 = vrot.slane %v1920, %v1961
    %v1963 = vlaneseq
    %v1964 = vshrl.u32 %v1963, 7
    %v1965 = vsub.s32 2, %v1964
    %v1966 = vrot.slane %v1920, %v1965
    %v1967 = vlaneseq
    %v1968 = vshrl.u32 %v1967, 7
    %v1969 = vsub.s32 3, %v1968
    %v1970 = vrot.slane %v1920, %v1969
    %v1971 = vlaneseq
    %v1972 = vshrl.u32 %v1971, 7
    %v1973 = vsub.s32 4, %v1972
    %v1974 = vrot.slane %v1920, %v1973
    %v1975 = vlaneseq
    %v1976 = vshrl.u32 %v1975, 7
    %v1977 = vsub.s32 5, %v1976
    %v1978 = vrot.slane %v1920, %v1977
    %v1979 = vlaneseq
    %v1980 = vshrl.u32 %v1979, 7
    %v1981 = vsub.s32 6, %v1980
    %v1982 = vrot.slane %v1920, %v1981
    %v1983 = vlaneseq
    %v1984 = vshrl.u32 %v1983, 7
    %v1985 = vsub.s32 7, %v1984
    %v1986 = vrot.slane %v1920, %v1985
    %v2035 = vunpack.c.l.b16 %v1887
    %v2036 = vunpack.c.h.b16 %v1887
    %v2037 = vunpack.c.l.b16 %v1888
    %v2038 = vunpack.c.h.b16 %v1888
    %v2039 = vunpack.c.l.b16 %v1889
    %v2040 = vunpack.c.h.b16 %v1889
    %v2041 = vunpack.c.l.b16 %v1890
    %v2042 = vunpack.c.h.b16 %v1890
    %v2043 = vunpack.c.l.b16 %v1891
    %v2044 = vunpack.c.h.b16 %v1891
    %v2045 = vunpack.c.l.b16 %v1892
    %v2046 = vunpack.c.h.b16 %v1892
    %v2047 = vunpack.c.l.b16 %v1893
    %v2048 = vunpack.c.h.b16 %v1893
    %v2049 = vunpack.c.l.b16 %v1894
    %v2050 = vunpack.c.h.b16 %v1894
    %v2051 = vunpack.c.l.b16 %v1895
    %v2052 = vunpack.c.h.b16 %v1895
    %v2053 = vunpack.c.l.b16 %v1896
    %v2054 = vunpack.c.h.b16 %v1896
    %v2055 = vunpack.c.l.b16 %v1897
    %v2056 = vunpack.c.h.b16 %v1897
    %v2057 = vunpack.c.l.b16 %v1898
    %v2058 = vunpack.c.h.b16 %v1898
    %v2059 = vunpack.c.l.b16 %v1899
    %v2060 = vunpack.c.h.b16 %v1899
    %v2061 = vunpack.c.l.b16 %v1900
    %v2062 = vunpack.c.h.b16 %v1900
    %v2063 = vunpack.c.l.b16 %v1901
    %v2064 = vunpack.c.h.b16 %v1901
    %v2065 = vunpack.c.l.b16 %v1902
    %v2066 = vunpack.c.h.b16 %v1902
    %v2067 = vunpack.c.l.b16 %v1903
    %v2068 = vunpack.c.h.b16 %v1903
    %v2069 = vunpack.c.l.b16 %v1904
    %v2070 = vunpack.c.h.b16 %v1904
    %v2071 = vunpack.c.l.b16 %v1905
    %v2072 = vunpack.c.h.b16 %v1905
    %v2073 = vunpack.c.l.b16 %v1906
    %v2074 = vunpack.c.h.b16 %v1906
    %v2075 = vunpack.c.l.b16 %v1907
    %v2076 = vunpack.c.h.b16 %v1907
    %v2077 = vunpack.c.l.b16 %v1908
    %v2078 = vunpack.c.h.b16 %v1908
    %v2079 = vunpack.c.l.b16 %v1909
    %v2080 = vunpack.c.h.b16 %v1909
    %v2081 = vunpack.c.l.b16 %v1910
    %v2082 = vunpack.c.h.b16 %v1910
    %v2083 = vunpack.c.l.b16 %v1911
    %v2084 = vunpack.c.h.b16 %v1911
    %v2085 = vunpack.c.l.b16 %v1912
    %v2086 = vunpack.c.h.b16 %v1912
    %v2087 = vunpack.c.l.b16 %v1913
    %v2088 = vunpack.c.h.b16 %v1913
    %v2089 = vunpack.c.l.b16 %v1914
    %v2090 = vunpack.c.h.b16 %v1914
    %v2091 = vunpack.c.l.b16 %v1915
    %v2092 = vunpack.c.h.b16 %v1915
    %v2093 = vunpack.c.l.b16 %v1916
    %v2094 = vunpack.c.h.b16 %v1916
    %v2095 = vunpack.c.l.b16 %v1917
    %v2096 = vunpack.c.h.b16 %v1917
    %v2097 = vunpack.c.l.b16 %v1918
    %v2098 = vunpack.c.h.b16 %v1918
    %v2099 = vpack.c.b16 %v2051, %v2035
    %v2100 = vpack.c.b16 %v2052, %v2036
    %v2101 = vpack.c.b16 %v2053, %v2037
    %v2102 = vpack.c.b16 %v2054, %v2038
    %v2103 = vpack.c.b16 %v2055, %v2039
    %v2104 = vpack.c.b16 %v2056, %v2040
    %v2105 = vpack.c.b16 %v2057, %v2041
    %v2106 = vpack.c.b16 %v2058, %v2042
    %v2107 = vpack.c.b16 %v2059, %v2043
    %v2108 = vpack.c.b16 %v2060, %v2044
    %v2109 = vpack.c.b16 %v2061, %v2045
    %v2110 = vpack.c.b16 %v2062, %v2046
    %v2111 = vpack.c.b16 %v2063, %v2047
    %v2112 = vpack.c.b16 %v2064, %v2048
    %v2113 = vpack.c.b16 %v2065, %v2049
    %v2114 = vpack.c.b16 %v2066, %v2050
    %v2115 = vpack.c.b16 %v2083, %v2067
    %v2116 = vpack.c.b16 %v2084, %v2068
    %v2117 = vpack.c.b16 %v2085, %v2069
    %v2118 = vpack.c.b16 %v2086, %v2070
    %v2119 = vpack.c.b16 %v2087, %v2071
    %v2120 = vpack.c.b16 %v2088, %v2072
    %v2121 = vpack.c.b16 %v2089, %v2073
    %v2122 = vpack.c.b16 %v2090, %v2074
    %v2123 = vpack.c.b16 %v2091, %v2075
    %v2124 = vpack.c.b16 %v2092, %v2076
    %v2125 = vpack.c.b16 %v2093, %v2077
    %v2126 = vpack.c.b16 %v2094, %v2078
    %v2127 = vpack.c.b16 %v2095, %v2079
    %v2128 = vpack.c.b16 %v2096, %v2080
    %v2129 = vpack.c.b16 %v2097, %v2081
    %v2130 = vpack.c.b16 %v2098, %v2082
    %v2164 = vsel %vm82, %v1886, 0
    %2166 = vmatprep.subr.bf16.mxu0 %v2100
    %2167 = vmatpush1.bf16.msra.mxu0 %v2099
    %2168 = vmatprep.subr.bf16.mxu0 %v2116
    %2169 = vmatpush1.bf16.msra.mxu0 %v2115
    %2170 = vmatprep.subr.bf16.mxu0 0
    %2171 = vmatpush1.bf16.msra.mxu0 0
    %2172 = vmatprep.subr.bf16.mxu0 0
    %2173 = vmatpush1.bf16.msra.mxu0 0
    %2174 = vmatprep.subr.bf16.mxu0 0
    %2175 = vmatpush1.bf16.msra.mxu0 0
    %2176 = vmatprep.subr.bf16.mxu0 0
    %2177 = vmatpush1.bf16.msra.mxu0 0
    %2178 = vmatprep.subr.bf16.mxu0 0
    %2179 = vmatpush1.bf16.msra.mxu0 0
    %2180 = vmatprep.subr.bf16.mxu0 0
    %2181 = vmatpush1.bf16.msra.mxu0 0
    %2182 = vmatprep.subr.bf16.mxu0 0
    %2183 = vmatpush1.bf16.msra.mxu0 0
    %2184 = vmatprep.subr.bf16.mxu0 0
    %2185 = vmatpush1.bf16.msra.mxu0 0
    %2186 = vmatprep.subr.bf16.mxu0 0
    %2187 = vmatpush1.bf16.msra.mxu0 0
    %2188 = vmatprep.subr.bf16.mxu0 0
    %2189 = vmatpush1.bf16.msra.mxu0 0
    %2190 = vmatprep.subr.bf16.mxu0 0
    %2191 = vmatpush1.bf16.msra.mxu0 0
    %2192 = vmatprep.subr.bf16.mxu0 0
    %2193 = vmatpush1.bf16.msra.mxu0 0
    %2194 = vmatprep.subr.bf16.mxu0 0
    %2195 = vmatpush1.bf16.msra.mxu0 0
    %2196 = vmatprep.subr.bf16.mxu0 0
    %2197 = vmatpush1.bf16.msra.mxu0 0
    %2198 = vmatprep.mubr.bf16.mxu0 0
    %2199 = vmatmul.mubr.bf16.gmra.mrb[0].mxu0 %v2164
    %v2200 = vpop.f32.mrb[0].mxu0
    %v2201 = vadd.f32 %v1926, %v2200
    %v2202 = vpop.f32.mrb[0].mxu0
    %v2203 = vadd.f32 %v1930, %v2202
    %v2204 = vpop.f32.mrb[0].mxu0
    %v2205 = vadd.f32 %v1926, %v2204
    %v2206 = vpop.f32.mrb[0].mxu0
    %v2207 = vadd.f32 %v1930, %v2206
    %2208 = vdwg.mxu0
    %2209 = vmatprep.subr.bf16.mxu0 %v2102
    %2210 = vmatpush1.bf16.msra.mxu0 %v2101
    %2211 = vmatprep.subr.bf16.mxu0 %v2118
    %2212 = vmatpush1.bf16.msra.mxu0 %v2117
    %2213 = vmatprep.subr.bf16.mxu0 0
    %2214 = vmatpush1.bf16.msra.mxu0 0
    %2215 = vmatprep.subr.bf16.mxu0 0
    %2216 = vmatpush1.bf16.msra.mxu0 0
    %2217 = vmatprep.subr.bf16.mxu0 0
    %2218 = vmatpush1.bf16.msra.mxu0 0
    %2219 = vmatprep.subr.bf16.mxu0 0
    %2220 = vmatpush1.bf16.msra.mxu0 0
    %2221 = vmatprep.subr.bf16.mxu0 0
    %2222 = vmatpush1.bf16.msra.mxu0 0
    %2223 = vmatprep.subr.bf16.mxu0 0
    %2224 = vmatpush1.bf16.msra.mxu0 0
    %2225 = vmatprep.subr.bf16.mxu0 0
    %2226 = vmatpush1.bf16.msra.mxu0 0
    %2227 = vmatprep.subr.bf16.mxu0 0
    %2228 = vmatpush1.bf16.msra.mxu0 0
    %2229 = vmatprep.subr.bf16.mxu0 0
    %2230 = vmatpush1.bf16.msra.mxu0 0
    %2231 = vmatprep.subr.bf16.mxu0 0
    %2232 = vmatpush1.bf16.msra.mxu0 0
    %2233 = vmatprep.subr.bf16.mxu0 0
    %2234 = vmatpush1.bf16.msra.mxu0 0
    %2235 = vmatprep.subr.bf16.mxu0 0
    %2236 = vmatpush1.bf16.msra.mxu0 0
    %2237 = vmatprep.subr.bf16.mxu0 0
    %2238 = vmatpush1.bf16.msra.mxu0 0
    %2239 = vmatprep.subr.bf16.mxu0 0
    %2240 = vmatpush1.bf16.msra.mxu0 0
    %2241 = vmatprep.mubr.bf16.mxu0 0
    %2242 = vmatmul.mubr.bf16.gmra.mrb[0].mxu0 %v2164
    %v2243 = vpop.f32.mrb[0].mxu0
    %v2244 = vadd.f32 %v1934, %v2243
    %v2245 = vpop.f32.mrb[0].mxu0
    %v2246 = vadd.f32 %v1938, %v2245
    %v2247 = vpop.f32.mrb[0].mxu0
    %v2248 = vadd.f32 %v1934, %v2247
    %v2249 = vpop.f32.mrb[0].mxu0
    %v2250 = vadd.f32 %v1938, %v2249
    %2251 = vdwg.mxu0
    %2252 = vmatprep.subr.bf16.mxu0 %v2104
    %2253 = vmatpush1.bf16.msra.mxu0 %v2103
    %2254 = vmatprep.subr.bf16.mxu0 %v2120
    %2255 = vmatpush1.bf16.msra.mxu0 %v2119
    %2256 = vmatprep.subr.bf16.mxu0 0
    %2257 = vmatpush1.bf16.msra.mxu0 0
    %2258 = vmatprep.subr.bf16.mxu0 0
    %2259 = vmatpush1.bf16.msra.mxu0 0
    %2260 = vmatprep.subr.bf16.mxu0 0
    %2261 = vmatpush1.bf16.msra.mxu0 0
    %2262 = vmatprep.subr.bf16.mxu0 0
    %2263 = vmatpush1.bf16.msra.mxu0 0
    %2264 = vmatprep.subr.bf16.mxu0 0
    %2265 = vmatpush1.bf16.msra.mxu0 0
    %2266 = vmatprep.subr.bf16.mxu0 0
    %2267 = vmatpush1.bf16.msra.mxu0 0
    %2268 = vmatprep.subr.bf16.mxu0 0
    %2269 = vmatpush1.bf16.msra.mxu0 0
    %2270 = vmatprep.subr.bf16.mxu0 0
    %2271 = vmatpush1.bf16.msra.mxu0 0
    %2272 = vmatprep.subr.bf16.mxu0 0
    %2273 = vmatpush1.bf16.msra.mxu0 0
    %2274 = vmatprep.subr.bf16.mxu0 0
    %2275 = vmatpush1.bf16.msra.mxu0 0
    %2276 = vmatprep.subr.bf16.mxu0 0
    %2277 = vmatpush1.bf16.msra.mxu0 0
    %2278 = vmatprep.subr.bf16.mxu0 0
    %2279 = vmatpush1.bf16.msra.mxu0 0
    %2280 = vmatprep.subr.bf16.mxu0 0
    %2281 = vmatpush1.bf16.msra.mxu0 0
    %2282 = vmatprep.subr.bf16.mxu0 0
    %2283 = vmatpush1.bf16.msra.mxu0 0
    %2284 = vmatprep.mubr.bf16.mxu0 0
    %2285 = vmatmul.mubr.bf16.gmra.mrb[0].mxu0 %v2164
    %v2286 = vpop.f32.mrb[0].mxu0
    %v2287 = vadd.f32 %v1942, %v2286
    %v2288 = vpop.f32.mrb[0].mxu0
    %v2289 = vadd.f32 %v1946, %v2288
    %v2290 = vpop.f32.mrb[0].mxu0
    %v2291 = vadd.f32 %v1942, %v2290
    %v2292 = vpop.f32.mrb[0].mxu0
    %v2293 = vadd.f32 %v1946, %v2292
    %2294 = vdwg.mxu0
    %2295 = vmatprep.subr.bf16.mxu0 %v2106
    %2296 = vmatpush1.bf16.msra.mxu0 %v2105
    %2297 = vmatprep.subr.bf16.mxu0 %v2122
    %2298 = vmatpush1.bf16.msra.mxu0 %v2121
    %2299 = vmatprep.subr.bf16.mxu0 0
    %2300 = vmatpush1.bf16.msra.mxu0 0
    %2301 = vmatprep.subr.bf16.mxu0 0
    %2302 = vmatpush1.bf16.msra.mxu0 0
    %2303 = vmatprep.subr.bf16.mxu0 0
    %2304 = vmatpush1.bf16.msra.mxu0 0
    %2305 = vmatprep.subr.bf16.mxu0 0
    %2306 = vmatpush1.bf16.msra.mxu0 0
    %2307 = vmatprep.subr.bf16.mxu0 0
    %2308 = vmatpush1.bf16.msra.mxu0 0
    %2309 = vmatprep.subr.bf16.mxu0 0
    %2310 = vmatpush1.bf16.msra.mxu0 0
    %2311 = vmatprep.subr.bf16.mxu0 0
    %2312 = vmatpush1.bf16.msra.mxu0 0
    %2313 = vmatprep.subr.bf16.mxu0 0
    %2314 = vmatpush1.bf16.msra.mxu0 0
    %2315 = vmatprep.subr.bf16.mxu0 0
    %2316 = vmatpush1.bf16.msra.mxu0 0
    %2317 = vmatprep.subr.bf16.mxu0 0
    %2318 = vmatpush1.bf16.msra.mxu0 0
    %2319 = vmatprep.subr.bf16.mxu0 0
    %2320 = vmatpush1.bf16.msra.mxu0 0
    %2321 = vmatprep.subr.bf16.mxu0 0
    %2322 = vmatpush1.bf16.msra.mxu0 0
    %2323 = vmatprep.subr.bf16.mxu0 0
    %2324 = vmatpush1.bf16.msra.mxu0 0
    %2325 = vmatprep.subr.bf16.mxu0 0
    %2326 = vmatpush1.bf16.msra.mxu0 0
    %2327 = vmatprep.mubr.bf16.mxu0 0
    %2328 = vmatmul.mubr.bf16.gmra.mrb[0].mxu0 %v2164
    %v2329 = vpop.f32.mrb[0].mxu0
    %v2330 = vadd.f32 %v1950, %v2329
    %v2331 = vpop.f32.mrb[0].mxu0
    %v2332 = vadd.f32 %v1954, %v2331
    %v2333 = vpop.f32.mrb[0].mxu0
    %v2334 = vadd.f32 %v1950, %v2333
    %v2335 = vpop.f32.mrb[0].mxu0
    %v2336 = vadd.f32 %v1954, %v2335
    %2337 = vdwg.mxu0
    %2338 = vmatprep.subr.bf16.mxu0 %v2108
    %2339 = vmatpush1.bf16.msra.mxu0 %v2107
    %2340 = vmatprep.subr.bf16.mxu0 %v2124
    %2341 = vmatpush1.bf16.msra.mxu0 %v2123
    %2342 = vmatprep.subr.bf16.mxu0 0
    %2343 = vmatpush1.bf16.msra.mxu0 0
    %2344 = vmatprep.subr.bf16.mxu0 0
    %2345 = vmatpush1.bf16.msra.mxu0 0
    %2346 = vmatprep.subr.bf16.mxu0 0
    %2347 = vmatpush1.bf16.msra.mxu0 0
    %2348 = vmatprep.subr.bf16.mxu0 0
    %2349 = vmatpush1.bf16.msra.mxu0 0
    %2350 = vmatprep.subr.bf16.mxu0 0
    %2351 = vmatpush1.bf16.msra.mxu0 0
    %2352 = vmatprep.subr.bf16.mxu0 0
    %2353 = vmatpush1.bf16.msra.mxu0 0
    %2354 = vmatprep.subr.bf16.mxu0 0
    %2355 = vmatpush1.bf16.msra.mxu0 0
    %2356 = vmatprep.subr.bf16.mxu0 0
    %2357 = vmatpush1.bf16.msra.mxu0 0
    %2358 = vmatprep.subr.bf16.mxu0 0
    %2359 = vmatpush1.bf16.msra.mxu0 0
    %2360 = vmatprep.subr.bf16.mxu0 0
    %2361 = vmatpush1.bf16.msra.mxu0 0
    %2362 = vmatprep.subr.bf16.mxu0 0
    %2363 = vmatpush1.bf16.msra.mxu0 0
    %2364 = vmatprep.subr.bf16.mxu0 0
    %2365 = vmatpush1.bf16.msra.mxu0 0
    %2366 = vmatprep.subr.bf16.mxu0 0
    %2367 = vmatpush1.bf16.msra.mxu0 0
    %2368 = vmatprep.subr.bf16.mxu0 0
    %2369 = vmatpush1.bf16.msra.mxu0 0
    %2370 = vmatprep.mubr.bf16.mxu0 0
    %2371 = vmatmul.mubr.bf16.gmra.mrb[0].mxu0 %v2164
    %v2372 = vpop.f32.mrb[0].mxu0
    %v2373 = vadd.f32 %v1958, %v2372
    %v2374 = vpop.f32.mrb[0].mxu0
    %v2375 = vadd.f32 %v1962, %v2374
    %v2376 = vpop.f32.mrb[0].mxu0
    %v2377 = vadd.f32 %v1958, %v2376
    %v2378 = vpop.f32.mrb[0].mxu0
    %v2379 = vadd.f32 %v1962, %v2378
    %2380 = vdwg.mxu0
    %2381 = vmatprep.subr.bf16.mxu0 %v2110
    %2382 = vmatpush1.bf16.msra.mxu0 %v2109
    %2383 = vmatprep.subr.bf16.mxu0 %v2126
    %2384 = vmatpush1.bf16.msra.mxu0 %v2125
    %2385 = vmatprep.subr.bf16.mxu0 0
    %2386 = vmatpush1.bf16.msra.mxu0 0
    %2387 = vmatprep.subr.bf16.mxu0 0
    %2388 = vmatpush1.bf16.msra.mxu0 0
    %2389 = vmatprep.subr.bf16.mxu0 0
    %2390 = vmatpush1.bf16.msra.mxu0 0
    %2391 = vmatprep.subr.bf16.mxu0 0
    %2392 = vmatpush1.bf16.msra.mxu0 0
    %2393 = vmatprep.subr.bf16.mxu0 0
    %2394 = vmatpush1.bf16.msra.mxu0 0
    %2395 = vmatprep.subr.bf16.mxu0 0
    %2396 = vmatpush1.bf16.msra.mxu0 0
    %2397 = vmatprep.subr.bf16.mxu0 0
    %2398 = vmatpush1.bf16.msra.mxu0 0
    %2399 = vmatprep.subr.bf16.mxu0 0
    %2400 = vmatpush1.bf16.msra.mxu0 0
    %2401 = vmatprep.subr.bf16.mxu0 0
    %2402 = vmatpush1.bf16.msra.mxu0 0
    %2403 = vmatprep.subr.bf16.mxu0 0
    %2404 = vmatpush1.bf16.msra.mxu0 0
    %2405 = vmatprep.subr.bf16.mxu0 0
    %2406 = vmatpush1.bf16.msra.mxu0 0
    %2407 = vmatprep.subr.bf16.mxu0 0
    %2408 = vmatpush1.bf16.msra.mxu0 0
    %2409 = vmatprep.subr.bf16.mxu0 0
    %2410 = vmatpush1.bf16.msra.mxu0 0
    %2411 = vmatprep.subr.bf16.mxu0 0
    %2412 = vmatpush1.bf16.msra.mxu0 0
    %2413 = vmatprep.mubr.bf16.mxu0 0
    %2414 = vmatmul.mubr.bf16.gmra.mrb[0].mxu0 %v2164
    %v2415 = vpop.f32.mrb[0].mxu0
    %v2416 = vadd.f32 %v1966, %v2415
    %v2417 = vpop.f32.mrb[0].mxu0
    %v2418 = vadd.f32 %v1970, %v2417
    %v2419 = vpop.f32.mrb[0].mxu0
    %v2420 = vadd.f32 %v1966, %v2419
    %v2421 = vpop.f32.mrb[0].mxu0
    %v2422 = vadd.f32 %v1970, %v2421
    %2423 = vdwg.mxu0
    %2424 = vmatprep.subr.bf16.mxu0 %v2112
    %2425 = vmatpush1.bf16.msra.mxu0 %v2111
    %2426 = vmatprep.subr.bf16.mxu0 %v2128
    %2427 = vmatpush1.bf16.msra.mxu0 %v2127
    %2428 = vmatprep.subr.bf16.mxu0 0
    %2429 = vmatpush1.bf16.msra.mxu0 0
    %2430 = vmatprep.subr.bf16.mxu0 0
    %2431 = vmatpush1.bf16.msra.mxu0 0
    %2432 = vmatprep.subr.bf16.mxu0 0
    %2433 = vmatpush1.bf16.msra.mxu0 0
    %2434 = vmatprep.subr.bf16.mxu0 0
    %2435 = vmatpush1.bf16.msra.mxu0 0
    %2436 = vmatprep.subr.bf16.mxu0 0
    %2437 = vmatpush1.bf16.msra.mxu0 0
    %2438 = vmatprep.subr.bf16.mxu0 0
    %2439 = vmatpush1.bf16.msra.mxu0 0
    %2440 = vmatprep.subr.bf16.mxu0 0
    %2441 = vmatpush1.bf16.msra.mxu0 0
    %2442 = vmatprep.subr.bf16.mxu0 0
    %2443 = vmatpush1.bf16.msra.mxu0 0
    %2444 = vmatprep.subr.bf16.mxu0 0
    %2445 = vmatpush1.bf16.msra.mxu0 0
    %2446 = vmatprep.subr.bf16.mxu0 0
    %2447 = vmatpush1.bf16.msra.mxu0 0
    %2448 = vmatprep.subr.bf16.mxu0 0
    %2449 = vmatpush1.bf16.msra.mxu0 0
    %2450 = vmatprep.subr.bf16.mxu0 0
    %2451 = vmatpush1.bf16.msra.mxu0 0
    %2452 = vmatprep.subr.bf16.mxu0 0
    %2453 = vmatpush1.bf16.msra.mxu0 0
    %2454 = vmatprep.subr.bf16.mxu0 0
    %2455 = vmatpush1.bf16.msra.mxu0 0
    %2456 = vmatprep.mubr.bf16.mxu0 0
    %2457 = vmatmul.mubr.bf16.gmra.mrb[0].mxu0 %v2164
    %v2458 = vpop.f32.mrb[0].mxu0
    %v2459 = vadd.f32 %v1974, %v2458
    %v2460 = vpop.f32.mrb[0].mxu0
    %v2461 = vadd.f32 %v1978, %v2460
    %v2462 = vpop.f32.mrb[0].mxu0
    %v2463 = vadd.f32 %v1974, %v2462
    %v2464 = vpop.f32.mrb[0].mxu0
    %v2465 = vadd.f32 %v1978, %v2464
    %2466 = vdwg.mxu0
    %2467 = vmatprep.subr.bf16.mxu0 %v2114
    %2468 = vmatpush1.bf16.msra.mxu0 %v2113
    %2469 = vmatprep.subr.bf16.mxu0 %v2130
    %2470 = vmatpush1.bf16.msra.mxu0 %v2129
    %2471 = vmatprep.subr.bf16.mxu0 0
    %2472 = vmatpush1.bf16.msra.mxu0 0
    %2473 = vmatprep.subr.bf16.mxu0 0
    %2474 = vmatpush1.bf16.msra.mxu0 0
    %2475 = vmatprep.subr.bf16.mxu0 0
    %2476 = vmatpush1.bf16.msra.mxu0 0
    %2477 = vmatprep.subr.bf16.mxu0 0
    %2478 = vmatpush1.bf16.msra.mxu0 0
    %2479 = vmatprep.subr.bf16.mxu0 0
    %2480 = vmatpush1.bf16.msra.mxu0 0
    %2481 = vmatprep.subr.bf16.mxu0 0
    %2482 = vmatpush1.bf16.msra.mxu0 0
    %2483 = vmatprep.subr.bf16.mxu0 0
    %2484 = vmatpush1.bf16.msra.mxu0 0
    %2485 = vmatprep.subr.bf16.mxu0 0
    %2486 = vmatpush1.bf16.msra.mxu0 0
    %2487 = vmatprep.subr.bf16.mxu0 0
    %2488 = vmatpush1.bf16.msra.mxu0 0
    %2489 = vmatprep.subr.bf16.mxu0 0
    %2490 = vmatpush1.bf16.msra.mxu0 0
    %2491 = vmatprep.subr.bf16.mxu0 0
    %2492 = vmatpush1.bf16.msra.mxu0 0
    %2493 = vmatprep.subr.bf16.mxu0 0
    %2494 = vmatpush1.bf16.msra.mxu0 0
    %2495 = vmatprep.subr.bf16.mxu0 0
    %2496 = vmatpush1.bf16.msra.mxu0 0
    %2497 = vmatprep.subr.bf16.mxu0 0
    %2498 = vmatpush1.bf16.msra.mxu0 0
    %2499 = vmatprep.mubr.bf16.mxu0 0
    %2500 = vmatmul.mubr.bf16.gmra.mrb[0].mxu0 %v2164
    %v2501 = vpop.f32.mrb[0].mxu0
    %v2502 = vadd.f32 %v1982, %v2501
    %v2503 = vpop.f32.mrb[0].mxu0
    %v2504 = vadd.f32 %v1986, %v2503
    %v2505 = vpop.f32.mrb[0].mxu0
    %v2506 = vadd.f32 %v1982, %v2505
    %v2507 = vpop.f32.mrb[0].mxu0
    %v2508 = vadd.f32 %v1986, %v2507
    %2509 = vdwg.mxu0
    %v2510 = vmax.f32 %v2201, 0.0
    %v2511 = vmax.f32 %v2203, 0.0
    %v2512 = vmax.f32 %v2244, 0.0
    %v2513 = vmax.f32 %v2246, 0.0
    %v2514 = vmax.f32 %v2287, 0.0
    %v2515 = vmax.f32 %v2289, 0.0
    %v2516 = vmax.f32 %v2330, 0.0
    %v2517 = vmax.f32 %v2332, 0.0
    %v2518 = vmax.f32 %v2373, 0.0
    %v2519 = vmax.f32 %v2375, 0.0
    %v2520 = vmax.f32 %v2416, 0.0
    %v2521 = vmax.f32 %v2418, 0.0
    %v2522 = vmax.f32 %v2459, 0.0
    %v2523 = vmax.f32 %v2461, 0.0
    %v2524 = vmax.f32 %v2502, 0.0
    %v2525 = vmax.f32 %v2504, 0.0
    %v2526 = vmax.f32 %v2205, 0.0
    %v2527 = vmax.f32 %v2207, 0.0
    %v2528 = vmax.f32 %v2248, 0.0
    %v2529 = vmax.f32 %v2250, 0.0
    %v2530 = vmax.f32 %v2291, 0.0
    %v2531 = vmax.f32 %v2293, 0.0
    %v2532 = vmax.f32 %v2334, 0.0
    %v2533 = vmax.f32 %v2336, 0.0
    %v2534 = vmax.f32 %v2377, 0.0
    %v2535 = vmax.f32 %v2379, 0.0
    %v2536 = vmax.f32 %v2420, 0.0
    %v2537 = vmax.f32 %v2422, 0.0
    %v2538 = vmax.f32 %v2463, 0.0
    %v2539 = vmax.f32 %v2465, 0.0
    %v2540 = vmax.f32 %v2506, 0.0
    %v2541 = vmax.f32 %v2508, 0.0
    %v2542 = vpack.c.bf16 %v2526, %v2510
    %v2543 = vpack.c.bf16 %v2527, %v2511
    %v2544 = vpack.c.bf16 %v2528, %v2512
    %v2545 = vpack.c.bf16 %v2529, %v2513
    %v2546 = vpack.c.bf16 %v2530, %v2514
    %v2547 = vpack.c.bf16 %v2531, %v2515
    %v2548 = vpack.c.bf16 %v2532, %v2516
    %v2549 = vpack.c.bf16 %v2533, %v2517
    %v2550 = vpack.c.bf16 %v2534, %v2518
    %v2551 = vpack.c.bf16 %v2535, %v2519
    %v2552 = vpack.c.bf16 %v2536, %v2520
    %v2553 = vpack.c.bf16 %v2537, %v2521
    %v2554 = vpack.c.bf16 %v2538, %v2522
    %v2555 = vpack.c.bf16 %v2539, %v2523
    %v2556 = vpack.c.bf16 %v2540, %v2524
    %v2557 = vpack.c.bf16 %v2541, %v2525
    %v2558 = vld [vmem:[%s11] sm:$0xf]
    %v2559 = vld [vmem:[%s11 + $0x4] sm:$0xf]
    %v2560 = vld [vmem:[%s11 + $0x8] sm:$0xf]
    %v2561 = vld [vmem:[%s11 + $0xc] sm:$0xf]
    %v2562 = vld [vmem:[%s11 + $0x10] sm:$0xf]
    %v2563 = vld [vmem:[%s11 + $0x14] sm:$0xf]
    %v2564 = vld [vmem:[%s11 + $0x18] sm:$0xf]
    %v2565 = vld [vmem:[%s11 + $0x1c] sm:$0xf]
    %v2566 = vld [vmem:[%s11 + $0x20] sm:$0xf]
    %v2567 = vld [vmem:[%s11 + $0x24] sm:$0xf]
    %v2568 = vld [vmem:[%s11 + $0x28] sm:$0xf]
    %v2569 = vld [vmem:[%s11 + $0x2c] sm:$0xf]
    %v2570 = vld [vmem:[%s11 + $0x30] sm:$0xf]
    %v2571 = vld [vmem:[%s11 + $0x34] sm:$0xf]
    %v2572 = vld [vmem:[%s11 + $0x38] sm:$0xf]
    %v2573 = vld [vmem:[%s11 + $0x3c] sm:$0xf]
    %v2574 = vld [vmem:[%s11 + $0x40] sm:$0xf]
    %v2575 = vld [vmem:[%s11 + $0x44] sm:$0xf]
    %v2576 = vld [vmem:[%s11 + $0x48] sm:$0xf]
    %v2577 = vld [vmem:[%s11 + $0x4c] sm:$0xf]
    %v2578 = vld [vmem:[%s11 + $0x50] sm:$0xf]
    %v2579 = vld [vmem:[%s11 + $0x54] sm:$0xf]
    %v2580 = vld [vmem:[%s11 + $0x58] sm:$0xf]
    %v2581 = vld [vmem:[%s11 + $0x5c] sm:$0xf]
    %v2582 = vld [vmem:[%s11 + $0x60] sm:$0xf]
    %v2583 = vld [vmem:[%s11 + $0x64] sm:$0xf]
    %v2584 = vld [vmem:[%s11 + $0x68] sm:$0xf]
    %v2585 = vld [vmem:[%s11 + $0x6c] sm:$0xf]
    %v2586 = vld [vmem:[%s11 + $0x70] sm:$0xf]
    %v2587 = vld [vmem:[%s11 + $0x74] sm:$0xf]
    %v2588 = vld [vmem:[%s11 + $0x78] sm:$0xf]
    %v2589 = vld [vmem:[%s11 + $0x7c] sm:$0xf]
    %v2590 = vld [vmem:[%s11 + $0x80] sm:$0xf]
    %v2591 = vld [vmem:[%s11 + $0x84] sm:$0xf]
    %v2592 = vld [vmem:[%s11 + $0x88] sm:$0xf]
    %v2593 = vld [vmem:[%s11 + $0x8c] sm:$0xf]
    %v2594 = vld [vmem:[%s11 + $0x90] sm:$0xf]
    %v2595 = vld [vmem:[%s11 + $0x94] sm:$0xf]
    %v2596 = vld [vmem:[%s11 + $0x98] sm:$0xf]
    %v2597 = vld [vmem:[%s11 + $0x9c] sm:$0xf]
    %v2598 = vld [vmem:[%s11 + $0xa0] sm:$0xf]
    %v2599 = vld [vmem:[%s11 + $0xa4] sm:$0xf]
    %v2600 = vld [vmem:[%s11 + $0xa8] sm:$0xf]
    %v2601 = vld [vmem:[%s11 + $0xac] sm:$0xf]
    %v2602 = vld [vmem:[%s11 + $0xb0] sm:$0xf]
    %v2603 = vld [vmem:[%s11 + $0xb4] sm:$0xf]
    %v2604 = vld [vmem:[%s11 + $0xb8] sm:$0xf]
    %v2605 = vld [vmem:[%s11 + $0xbc] sm:$0xf]
    %v2606 = vld [vmem:[%s11 + $0xc0] sm:$0xf]
    %v2607 = vld [vmem:[%s11 + $0xc4] sm:$0xf]
    %v2608 = vld [vmem:[%s11 + $0xc8] sm:$0xf]
    %v2609 = vld [vmem:[%s11 + $0xcc] sm:$0xf]
    %v2610 = vld [vmem:[%s11 + $0xd0] sm:$0xf]
    %v2611 = vld [vmem:[%s11 + $0xd4] sm:$0xf]
    %v2612 = vld [vmem:[%s11 + $0xd8] sm:$0xf]
    %v2613 = vld [vmem:[%s11 + $0xdc] sm:$0xf]
    %v2614 = vld [vmem:[%s11 + $0xe0] sm:$0xf]
    %v2615 = vld [vmem:[%s11 + $0xe4] sm:$0xf]
    %v2616 = vld [vmem:[%s11 + $0xe8] sm:$0xf]
    %v2617 = vld [vmem:[%s11 + $0xec] sm:$0xf]
    %v2618 = vld [vmem:[%s11 + $0xf0] sm:$0xf]
    %v2619 = vld [vmem:[%s11 + $0xf4] sm:$0xf]
    %v2620 = vld [vmem:[%s11 + $0xf8] sm:$0xf]
    %v2621 = vld [vmem:[%s11 + $0xfc] sm:$0xf]
    %v2622 = vld [vmem:[%s11 + $0x100] sm:$0xf]
    %v2623 = vld [vmem:[%s11 + $0x104] sm:$0xf]
    %v2624 = vld [vmem:[%s11 + $0x108] sm:$0xf]
    %v2625 = vld [vmem:[%s11 + $0x10c] sm:$0xf]
    %v2626 = vld [vmem:[%s11 + $0x110] sm:$0xf]
    %v2627 = vld [vmem:[%s11 + $0x114] sm:$0xf]
    %v2628 = vld [vmem:[%s11 + $0x118] sm:$0xf]
    %v2629 = vld [vmem:[%s11 + $0x11c] sm:$0xf]
    %v2630 = vld [vmem:[%s11 + $0x120] sm:$0xf]
    %v2631 = vld [vmem:[%s11 + $0x124] sm:$0xf]
    %v2632 = vld [vmem:[%s11 + $0x128] sm:$0xf]
    %v2633 = vld [vmem:[%s11 + $0x12c] sm:$0xf]
    %v2634 = vld [vmem:[%s11 + $0x130] sm:$0xf]
    %v2635 = vld [vmem:[%s11 + $0x134] sm:$0xf]
    %v2636 = vld [vmem:[%s11 + $0x138] sm:$0xf]
    %v2637 = vld [vmem:[%s11 + $0x13c] sm:$0xf]
    %v2638 = vld [vmem:[%s11 + $0x140] sm:$0xf]
    %v2639 = vld [vmem:[%s11 + $0x144] sm:$0xf]
    %v2640 = vld [vmem:[%s11 + $0x148] sm:$0xf]
    %v2641 = vld [vmem:[%s11 + $0x14c] sm:$0xf]
    %v2642 = vld [vmem:[%s11 + $0x150] sm:$0xf]
    %v2643 = vld [vmem:[%s11 + $0x154] sm:$0xf]
    %v2644 = vld [vmem:[%s11 + $0x158] sm:$0xf]
    %v2645 = vld [vmem:[%s11 + $0x15c] sm:$0xf]
    %v2646 = vld [vmem:[%s11 + $0x160] sm:$0xf]
    %v2647 = vld [vmem:[%s11 + $0x164] sm:$0xf]
    %v2648 = vld [vmem:[%s11 + $0x168] sm:$0xf]
    %v2649 = vld [vmem:[%s11 + $0x16c] sm:$0xf]
    %v2650 = vld [vmem:[%s11 + $0x170] sm:$0xf]
    %v2651 = vld [vmem:[%s11 + $0x174] sm:$0xf]
    %v2652 = vld [vmem:[%s11 + $0x178] sm:$0xf]
    %v2653 = vld [vmem:[%s11 + $0x17c] sm:$0xf]
    %v2654 = vld [vmem:[%s11 + $0x180] sm:$0xf]
    %v2655 = vld [vmem:[%s11 + $0x184] sm:$0xf]
    %v2656 = vld [vmem:[%s11 + $0x188] sm:$0xf]
    %v2657 = vld [vmem:[%s11 + $0x18c] sm:$0xf]
    %v2658 = vld [vmem:[%s11 + $0x190] sm:$0xf]
    %v2659 = vld [vmem:[%s11 + $0x194] sm:$0xf]
    %v2660 = vld [vmem:[%s11 + $0x198] sm:$0xf]
    %v2661 = vld [vmem:[%s11 + $0x19c] sm:$0xf]
    %v2662 = vld [vmem:[%s11 + $0x1a0] sm:$0xf]
    %v2663 = vld [vmem:[%s11 + $0x1a4] sm:$0xf]
    %v2664 = vld [vmem:[%s11 + $0x1a8] sm:$0xf]
    %v2665 = vld [vmem:[%s11 + $0x1ac] sm:$0xf]
    %v2666 = vld [vmem:[%s11 + $0x1b0] sm:$0xf]
    %v2667 = vld [vmem:[%s11 + $0x1b4] sm:$0xf]
    %v2668 = vld [vmem:[%s11 + $0x1b8] sm:$0xf]
    %v2669 = vld [vmem:[%s11 + $0x1bc] sm:$0xf]
    %v2670 = vld [vmem:[%s11 + $0x1c0] sm:$0xf]
    %v2671 = vld [vmem:[%s11 + $0x1c4] sm:$0xf]
    %v2672 = vld [vmem:[%s11 + $0x1c8] sm:$0xf]
    %v2673 = vld [vmem:[%s11 + $0x1cc] sm:$0xf]
    %v2674 = vld [vmem:[%s11 + $0x1d0] sm:$0xf]
    %v2675 = vld [vmem:[%s11 + $0x1d4] sm:$0xf]
    %v2676 = vld [vmem:[%s11 + $0x1d8] sm:$0xf]
    %v2677 = vld [vmem:[%s11 + $0x1dc] sm:$0xf]
    %v2678 = vld [vmem:[%s11 + $0x1e0] sm:$0xf]
    %v2679 = vld [vmem:[%s11 + $0x1e4] sm:$0xf]
    %v2680 = vld [vmem:[%s11 + $0x1e8] sm:$0xf]
    %v2681 = vld [vmem:[%s11 + $0x1ec] sm:$0xf]
    %v2682 = vld [vmem:[%s11 + $0x1f0] sm:$0xf]
    %v2683 = vld [vmem:[%s11 + $0x1f4] sm:$0xf]
    %v2684 = vld [vmem:[%s11 + $0x1f8] sm:$0xf]
    %v2685 = vld [vmem:[%s11 + $0x1fc] sm:$0xf]
    %v2686 = vld [vmem:[%s11 + $0x200] sm:$0xf]
    %v2687 = vld [vmem:[%s11 + $0x204] sm:$0xf]
    %v2688 = vld [vmem:[%s11 + $0x208] sm:$0xf]
    %v2689 = vld [vmem:[%s11 + $0x20c] sm:$0xf]
    %v2690 = vld [vmem:[%s11 + $0x210] sm:$0xf]
    %v2691 = vld [vmem:[%s11 + $0x214] sm:$0xf]
    %v2692 = vld [vmem:[%s11 + $0x218] sm:$0xf]
    %v2693 = vld [vmem:[%s11 + $0x21c] sm:$0xf]
    %v2694 = vld [vmem:[%s11 + $0x220] sm:$0xf]
    %v2695 = vld [vmem:[%s11 + $0x224] sm:$0xf]
    %v2696 = vld [vmem:[%s11 + $0x228] sm:$0xf]
    %v2697 = vld [vmem:[%s11 + $0x22c] sm:$0xf]
    %v2698 = vld [vmem:[%s11 + $0x230] sm:$0xf]
    %v2699 = vld [vmem:[%s11 + $0x234] sm:$0xf]
    %v2700 = vld [vmem:[%s11 + $0x238] sm:$0xf]
    %v2701 = vld [vmem:[%s11 + $0x23c] sm:$0xf]
    %v2702 = vld [vmem:[%s11 + $0x240] sm:$0xf]
    %v2703 = vld [vmem:[%s11 + $0x244] sm:$0xf]
    %v2704 = vld [vmem:[%s11 + $0x248] sm:$0xf]
    %v2705 = vld [vmem:[%s11 + $0x24c] sm:$0xf]
    %v2706 = vld [vmem:[%s11 + $0x250] sm:$0xf]
    %v2707 = vld [vmem:[%s11 + $0x254] sm:$0xf]
    %v2708 = vld [vmem:[%s11 + $0x258] sm:$0xf]
    %v2709 = vld [vmem:[%s11 + $0x25c] sm:$0xf]
    %v2710 = vld [vmem:[%s11 + $0x260] sm:$0xf]
    %v2711 = vld [vmem:[%s11 + $0x264] sm:$0xf]
    %v2712 = vld [vmem:[%s11 + $0x268] sm:$0xf]
    %v2713 = vld [vmem:[%s11 + $0x26c] sm:$0xf]
    %v2714 = vld [vmem:[%s11 + $0x270] sm:$0xf]
    %v2715 = vld [vmem:[%s11 + $0x274] sm:$0xf]
    %v2716 = vld [vmem:[%s11 + $0x278] sm:$0xf]
    %v2717 = vld [vmem:[%s11 + $0x27c] sm:$0xf]
    %v2718 = vld [vmem:[%s11 + $0x280] sm:$0xf]
    %v2719 = vld [vmem:[%s11 + $0x284] sm:$0xf]
    %v2720 = vld [vmem:[%s11 + $0x288] sm:$0xf]
    %v2721 = vld [vmem:[%s11 + $0x28c] sm:$0xf]
    %v2722 = vld [vmem:[%s11 + $0x290] sm:$0xf]
    %v2723 = vld [vmem:[%s11 + $0x294] sm:$0xf]
    %v2724 = vld [vmem:[%s11 + $0x298] sm:$0xf]
    %v2725 = vld [vmem:[%s11 + $0x29c] sm:$0xf]
    %v2726 = vld [vmem:[%s11 + $0x2a0] sm:$0xf]
    %v2727 = vld [vmem:[%s11 + $0x2a4] sm:$0xf]
    %v2728 = vld [vmem:[%s11 + $0x2a8] sm:$0xf]
    %v2729 = vld [vmem:[%s11 + $0x2ac] sm:$0xf]
    %v2730 = vld [vmem:[%s11 + $0x2b0] sm:$0xf]
    %v2731 = vld [vmem:[%s11 + $0x2b4] sm:$0xf]
    %v2732 = vld [vmem:[%s11 + $0x2b8] sm:$0xf]
    %v2733 = vld [vmem:[%s11 + $0x2bc] sm:$0xf]
    %v2734 = vld [vmem:[%s11 + $0x2c0] sm:$0xf]
    %v2735 = vld [vmem:[%s11 + $0x2c4] sm:$0xf]
    %v2736 = vld [vmem:[%s11 + $0x2c8] sm:$0xf]
    %v2737 = vld [vmem:[%s11 + $0x2cc] sm:$0xf]
    %v2738 = vld [vmem:[%s11 + $0x2d0] sm:$0xf]
    %v2739 = vld [vmem:[%s11 + $0x2d4] sm:$0xf]
    %v2740 = vld [vmem:[%s11 + $0x2d8] sm:$0xf]
    %v2741 = vld [vmem:[%s11 + $0x2dc] sm:$0xf]
    %v2742 = vld [vmem:[%s11 + $0x2e0] sm:$0xf]
    %v2743 = vld [vmem:[%s11 + $0x2e4] sm:$0xf]
    %v2744 = vld [vmem:[%s11 + $0x2e8] sm:$0xf]
    %v2745 = vld [vmem:[%s11 + $0x2ec] sm:$0xf]
    %v2746 = vld [vmem:[%s11 + $0x2f0] sm:$0xf]
    %v2747 = vld [vmem:[%s11 + $0x2f4] sm:$0xf]
    %v2748 = vld [vmem:[%s11 + $0x2f8] sm:$0xf]
    %v2749 = vld [vmem:[%s11 + $0x2fc] sm:$0xf]
    %v2750 = vld [vmem:[%s11 + $0x300] sm:$0xf]
    %v2751 = vld [vmem:[%s11 + $0x304] sm:$0xf]
    %v2752 = vld [vmem:[%s11 + $0x308] sm:$0xf]
    %v2753 = vld [vmem:[%s11 + $0x30c] sm:$0xf]
    %v2754 = vld [vmem:[%s11 + $0x310] sm:$0xf]
    %v2755 = vld [vmem:[%s11 + $0x314] sm:$0xf]
    %v2756 = vld [vmem:[%s11 + $0x318] sm:$0xf]
    %v2757 = vld [vmem:[%s11 + $0x31c] sm:$0xf]
    %v2758 = vld [vmem:[%s11 + $0x320] sm:$0xf]
    %v2759 = vld [vmem:[%s11 + $0x324] sm:$0xf]
    %v2760 = vld [vmem:[%s11 + $0x328] sm:$0xf]
    %v2761 = vld [vmem:[%s11 + $0x32c] sm:$0xf]
    %v2762 = vld [vmem:[%s11 + $0x330] sm:$0xf]
    %v2763 = vld [vmem:[%s11 + $0x334] sm:$0xf]
    %v2764 = vld [vmem:[%s11 + $0x338] sm:$0xf]
    %v2765 = vld [vmem:[%s11 + $0x33c] sm:$0xf]
    %v2766 = vld [vmem:[%s11 + $0x340] sm:$0xf]
    %v2767 = vld [vmem:[%s11 + $0x344] sm:$0xf]
    %v2768 = vld [vmem:[%s11 + $0x348] sm:$0xf]
    %v2769 = vld [vmem:[%s11 + $0x34c] sm:$0xf]
    %v2770 = vld [vmem:[%s11 + $0x350] sm:$0xf]
    %v2771 = vld [vmem:[%s11 + $0x354] sm:$0xf]
    %v2772 = vld [vmem:[%s11 + $0x358] sm:$0xf]
    %v2773 = vld [vmem:[%s11 + $0x35c] sm:$0xf]
    %v2774 = vld [vmem:[%s11 + $0x360] sm:$0xf]
    %v2775 = vld [vmem:[%s11 + $0x364] sm:$0xf]
    %v2776 = vld [vmem:[%s11 + $0x368] sm:$0xf]
    %v2777 = vld [vmem:[%s11 + $0x36c] sm:$0xf]
    %v2778 = vld [vmem:[%s11 + $0x370] sm:$0xf]
    %v2779 = vld [vmem:[%s11 + $0x374] sm:$0xf]
    %v2780 = vld [vmem:[%s11 + $0x378] sm:$0xf]
    %v2781 = vld [vmem:[%s11 + $0x37c] sm:$0xf]
    %v2782 = vld [vmem:[%s11 + $0x380] sm:$0xf]
    %v2783 = vld [vmem:[%s11 + $0x384] sm:$0xf]
    %v2784 = vld [vmem:[%s11 + $0x388] sm:$0xf]
    %v2785 = vld [vmem:[%s11 + $0x38c] sm:$0xf]
    %v2786 = vld [vmem:[%s11 + $0x390] sm:$0xf]
    %v2787 = vld [vmem:[%s11 + $0x394] sm:$0xf]
    %v2788 = vld [vmem:[%s11 + $0x398] sm:$0xf]
    %v2789 = vld [vmem:[%s11 + $0x39c] sm:$0xf]
    %v2790 = vld [vmem:[%s11 + $0x3a0] sm:$0xf]
    %v2791 = vld [vmem:[%s11 + $0x3a4] sm:$0xf]
    %v2792 = vld [vmem:[%s11 + $0x3a8] sm:$0xf]
    %v2793 = vld [vmem:[%s11 + $0x3ac] sm:$0xf]
    %v2794 = vld [vmem:[%s11 + $0x3b0] sm:$0xf]
    %v2795 = vld [vmem:[%s11 + $0x3b4] sm:$0xf]
    %v2796 = vld [vmem:[%s11 + $0x3b8] sm:$0xf]
    %v2797 = vld [vmem:[%s11 + $0x3bc] sm:$0xf]
    %v2798 = vld [vmem:[%s11 + $0x3c0] sm:$0xf]
    %v2799 = vld [vmem:[%s11 + $0x3c4] sm:$0xf]
    %v2800 = vld [vmem:[%s11 + $0x3c8] sm:$0xf]
    %v2801 = vld [vmem:[%s11 + $0x3cc] sm:$0xf]
    %v2802 = vld [vmem:[%s11 + $0x3d0] sm:$0xf]
    %v2803 = vld [vmem:[%s11 + $0x3d4] sm:$0xf]
    %v2804 = vld [vmem:[%s11 + $0x3d8] sm:$0xf]
    %v2805 = vld [vmem:[%s11 + $0x3dc] sm:$0xf]
    %v2806 = vld [vmem:[%s11 + $0x3e0] sm:$0xf]
    %v2807 = vld [vmem:[%s11 + $0x3e4] sm:$0xf]
    %v2808 = vld [vmem:[%s11 + $0x3e8] sm:$0xf]
    %v2809 = vld [vmem:[%s11 + $0x3ec] sm:$0xf]
    %v2810 = vld [vmem:[%s11 + $0x3f0] sm:$0xf]
    %v2811 = vld [vmem:[%s11 + $0x3f4] sm:$0xf]
    %v2812 = vld [vmem:[%s11 + $0x3f8] sm:$0xf]
    %v2813 = vld [vmem:[%s11 + $0x3fc] sm:$0xf]
    %v2814 = vld [vmem:[%s12] sm:$0x1]
    %v2816 = vlaneseq
    %v2817 = vshrl.u32 %v2816, 7
    %v2818 = vsub.s32 0, %v2817
    %v2819 = vrot.slane %v2814, %v2818
    %v3077 = vunpack.c.l.b16 %v2558
    %v3078 = vunpack.c.l.b16 %v2559
    %v3079 = vunpack.c.l.b16 %v2560
    %v3080 = vunpack.c.l.b16 %v2561
    %v3081 = vunpack.c.l.b16 %v2562
    %v3082 = vunpack.c.l.b16 %v2563
    %v3083 = vunpack.c.l.b16 %v2564
    %v3084 = vunpack.c.l.b16 %v2565
    %v3085 = vunpack.c.l.b16 %v2566
    %v3086 = vunpack.c.l.b16 %v2567
    %v3087 = vunpack.c.l.b16 %v2568
    %v3088 = vunpack.c.l.b16 %v2569
    %v3089 = vunpack.c.l.b16 %v2570
    %v3090 = vunpack.c.l.b16 %v2571
    %v3091 = vunpack.c.l.b16 %v2572
    %v3092 = vunpack.c.l.b16 %v2573
    %v3093 = vunpack.c.l.b16 %v2574
    %v3094 = vunpack.c.l.b16 %v2575
    %v3095 = vunpack.c.l.b16 %v2576
    %v3096 = vunpack.c.l.b16 %v2577
    %v3097 = vunpack.c.l.b16 %v2578
    %v3098 = vunpack.c.l.b16 %v2579
    %v3099 = vunpack.c.l.b16 %v2580
    %v3100 = vunpack.c.l.b16 %v2581
    %v3101 = vunpack.c.l.b16 %v2582
    %v3102 = vunpack.c.l.b16 %v2583
    %v3103 = vunpack.c.l.b16 %v2584
    %v3104 = vunpack.c.l.b16 %v2585
    %v3105 = vunpack.c.l.b16 %v2586
    %v3106 = vunpack.c.l.b16 %v2587
    %v3107 = vunpack.c.l.b16 %v2588
    %v3108 = vunpack.c.l.b16 %v2589
    %v3109 = vunpack.c.l.b16 %v2590
    %v3110 = vunpack.c.l.b16 %v2591
    %v3111 = vunpack.c.l.b16 %v2592
    %v3112 = vunpack.c.l.b16 %v2593
    %v3113 = vunpack.c.l.b16 %v2594
    %v3114 = vunpack.c.l.b16 %v2595
    %v3115 = vunpack.c.l.b16 %v2596
    %v3116 = vunpack.c.l.b16 %v2597
    %v3117 = vunpack.c.l.b16 %v2598
    %v3118 = vunpack.c.l.b16 %v2599
    %v3119 = vunpack.c.l.b16 %v2600
    %v3120 = vunpack.c.l.b16 %v2601
    %v3121 = vunpack.c.l.b16 %v2602
    %v3122 = vunpack.c.l.b16 %v2603
    %v3123 = vunpack.c.l.b16 %v2604
    %v3124 = vunpack.c.l.b16 %v2605
    %v3125 = vunpack.c.l.b16 %v2606
    %v3126 = vunpack.c.l.b16 %v2607
    %v3127 = vunpack.c.l.b16 %v2608
    %v3128 = vunpack.c.l.b16 %v2609
    %v3129 = vunpack.c.l.b16 %v2610
    %v3130 = vunpack.c.l.b16 %v2611
    %v3131 = vunpack.c.l.b16 %v2612
    %v3132 = vunpack.c.l.b16 %v2613
    %v3133 = vunpack.c.l.b16 %v2614
    %v3134 = vunpack.c.l.b16 %v2615
    %v3135 = vunpack.c.l.b16 %v2616
    %v3136 = vunpack.c.l.b16 %v2617
    %v3137 = vunpack.c.l.b16 %v2618
    %v3138 = vunpack.c.l.b16 %v2619
    %v3139 = vunpack.c.l.b16 %v2620
    %v3140 = vunpack.c.l.b16 %v2621
    %v3141 = vunpack.c.l.b16 %v2622
    %v3142 = vunpack.c.l.b16 %v2623
    %v3143 = vunpack.c.l.b16 %v2624
    %v3144 = vunpack.c.l.b16 %v2625
    %v3145 = vunpack.c.l.b16 %v2626
    %v3146 = vunpack.c.l.b16 %v2627
    %v3147 = vunpack.c.l.b16 %v2628
    %v3148 = vunpack.c.l.b16 %v2629
    %v3149 = vunpack.c.l.b16 %v2630
    %v3150 = vunpack.c.l.b16 %v2631
    %v3151 = vunpack.c.l.b16 %v2632
    %v3152 = vunpack.c.l.b16 %v2633
    %v3153 = vunpack.c.l.b16 %v2634
    %v3154 = vunpack.c.l.b16 %v2635
    %v3155 = vunpack.c.l.b16 %v2636
    %v3156 = vunpack.c.l.b16 %v2637
    %v3157 = vunpack.c.l.b16 %v2638
    %v3158 = vunpack.c.l.b16 %v2639
    %v3159 = vunpack.c.l.b16 %v2640
    %v3160 = vunpack.c.l.b16 %v2641
    %v3161 = vunpack.c.l.b16 %v2642
    %v3162 = vunpack.c.l.b16 %v2643
    %v3163 = vunpack.c.l.b16 %v2644
    %v3164 = vunpack.c.l.b16 %v2645
    %v3165 = vunpack.c.l.b16 %v2646
    %v3166 = vunpack.c.l.b16 %v2647
    %v3167 = vunpack.c.l.b16 %v2648
    %v3168 = vunpack.c.l.b16 %v2649
    %v3169 = vunpack.c.l.b16 %v2650
    %v3170 = vunpack.c.l.b16 %v2651
    %v3171 = vunpack.c.l.b16 %v2652
    %v3172 = vunpack.c.l.b16 %v2653
    %v3173 = vunpack.c.l.b16 %v2654
    %v3174 = vunpack.c.l.b16 %v2655
    %v3175 = vunpack.c.l.b16 %v2656
    %v3176 = vunpack.c.l.b16 %v2657
    %v3177 = vunpack.c.l.b16 %v2658
    %v3178 = vunpack.c.l.b16 %v2659
    %v3179 = vunpack.c.l.b16 %v2660
    %v3180 = vunpack.c.l.b16 %v2661
    %v3181 = vunpack.c.l.b16 %v2662
    %v3182 = vunpack.c.l.b16 %v2663
    %v3183 = vunpack.c.l.b16 %v2664
    %v3184 = vunpack.c.l.b16 %v2665
    %v3185 = vunpack.c.l.b16 %v2666
    %v3186 = vunpack.c.l.b16 %v2667
    %v3187 = vunpack.c.l.b16 %v2668
    %v3188 = vunpack.c.l.b16 %v2669
    %v3189 = vunpack.c.l.b16 %v2670
    %v3190 = vunpack.c.l.b16 %v2671
    %v3191 = vunpack.c.l.b16 %v2672
    %v3192 = vunpack.c.l.b16 %v2673
    %v3193 = vunpack.c.l.b16 %v2674
    %v3194 = vunpack.c.l.b16 %v2675
    %v3195 = vunpack.c.l.b16 %v2676
    %v3196 = vunpack.c.l.b16 %v2677
    %v3197 = vunpack.c.l.b16 %v2678
    %v3198 = vunpack.c.l.b16 %v2679
    %v3199 = vunpack.c.l.b16 %v2680
    %v3200 = vunpack.c.l.b16 %v2681
    %v3201 = vunpack.c.l.b16 %v2682
    %v3202 = vunpack.c.l.b16 %v2683
    %v3203 = vunpack.c.l.b16 %v2684
    %v3204 = vunpack.c.l.b16 %v2685
    %v3205 = vunpack.c.l.b16 %v2686
    %v3206 = vunpack.c.l.b16 %v2687
    %v3207 = vunpack.c.l.b16 %v2688
    %v3208 = vunpack.c.l.b16 %v2689
    %v3209 = vunpack.c.l.b16 %v2690
    %v3210 = vunpack.c.l.b16 %v2691
    %v3211 = vunpack.c.l.b16 %v2692
    %v3212 = vunpack.c.l.b16 %v2693
    %v3213 = vunpack.c.l.b16 %v2694
    %v3214 = vunpack.c.l.b16 %v2695
    %v3215 = vunpack.c.l.b16 %v2696
    %v3216 = vunpack.c.l.b16 %v2697
    %v3217 = vunpack.c.l.b16 %v2698
    %v3218 = vunpack.c.l.b16 %v2699
    %v3219 = vunpack.c.l.b16 %v2700
    %v3220 = vunpack.c.l.b16 %v2701
    %v3221 = vunpack.c.l.b16 %v2702
    %v3222 = vunpack.c.l.b16 %v2703
    %v3223 = vunpack.c.l.b16 %v2704
    %v3224 = vunpack.c.l.b16 %v2705
    %v3225 = vunpack.c.l.b16 %v2706
    %v3226 = vunpack.c.l.b16 %v2707
    %v3227 = vunpack.c.l.b16 %v2708
    %v3228 = vunpack.c.l.b16 %v2709
    %v3229 = vunpack.c.l.b16 %v2710
    %v3230 = vunpack.c.l.b16 %v2711
    %v3231 = vunpack.c.l.b16 %v2712
    %v3232 = vunpack.c.l.b16 %v2713
    %v3233 = vunpack.c.l.b16 %v2714
    %v3234 = vunpack.c.l.b16 %v2715
    %v3235 = vunpack.c.l.b16 %v2716
    %v3236 = vunpack.c.l.b16 %v2717
    %v3237 = vunpack.c.l.b16 %v2718
    %v3238 = vunpack.c.l.b16 %v2719
    %v3239 = vunpack.c.l.b16 %v2720
    %v3240 = vunpack.c.l.b16 %v2721
    %v3241 = vunpack.c.l.b16 %v2722
    %v3242 = vunpack.c.l.b16 %v2723
    %v3243 = vunpack.c.l.b16 %v2724
    %v3244 = vunpack.c.l.b16 %v2725
    %v3245 = vunpack.c.l.b16 %v2726
    %v3246 = vunpack.c.l.b16 %v2727
    %v3247 = vunpack.c.l.b16 %v2728
    %v3248 = vunpack.c.l.b16 %v2729
    %v3249 = vunpack.c.l.b16 %v2730
    %v3250 = vunpack.c.l.b16 %v2731
    %v3251 = vunpack.c.l.b16 %v2732
    %v3252 = vunpack.c.l.b16 %v2733
    %v3253 = vunpack.c.l.b16 %v2734
    %v3254 = vunpack.c.l.b16 %v2735
    %v3255 = vunpack.c.l.b16 %v2736
    %v3256 = vunpack.c.l.b16 %v2737
    %v3257 = vunpack.c.l.b16 %v2738
    %v3258 = vunpack.c.l.b16 %v2739
    %v3259 = vunpack.c.l.b16 %v2740
    %v3260 = vunpack.c.l.b16 %v2741
    %v3261 = vunpack.c.l.b16 %v2742
    %v3262 = vunpack.c.l.b16 %v2743
    %v3263 = vunpack.c.l.b16 %v2744
    %v3264 = vunpack.c.l.b16 %v2745
    %v3265 = vunpack.c.l.b16 %v2746
    %v3266 = vunpack.c.l.b16 %v2747
    %v3267 = vunpack.c.l.b16 %v2748
    %v3268 = vunpack.c.l.b16 %v2749
    %v3269 = vunpack.c.l.b16 %v2750
    %v3270 = vunpack.c.l.b16 %v2751
    %v3271 = vunpack.c.l.b16 %v2752
    %v3272 = vunpack.c.l.b16 %v2753
    %v3273 = vunpack.c.l.b16 %v2754
    %v3274 = vunpack.c.l.b16 %v2755
    %v3275 = vunpack.c.l.b16 %v2756
    %v3276 = vunpack.c.l.b16 %v2757
    %v3277 = vunpack.c.l.b16 %v2758
    %v3278 = vunpack.c.l.b16 %v2759
    %v3279 = vunpack.c.l.b16 %v2760
    %v3280 = vunpack.c.l.b16 %v2761
    %v3281 = vunpack.c.l.b16 %v2762
    %v3282 = vunpack.c.l.b16 %v2763
    %v3283 = vunpack.c.l.b16 %v2764
    %v3284 = vunpack.c.l.b16 %v2765
    %v3285 = vunpack.c.l.b16 %v2766
    %v3286 = vunpack.c.l.b16 %v2767
    %v3287 = vunpack.c.l.b16 %v2768
    %v3288 = vunpack.c.l.b16 %v2769
    %v3289 = vunpack.c.l.b16 %v2770
    %v3290 = vunpack.c.l.b16 %v2771
    %v3291 = vunpack.c.l.b16 %v2772
    %v3292 = vunpack.c.l.b16 %v2773
    %v3293 = vunpack.c.l.b16 %v2774
    %v3294 = vunpack.c.l.b16 %v2775
    %v3295 = vunpack.c.l.b16 %v2776
    %v3296 = vunpack.c.l.b16 %v2777
    %v3297 = vunpack.c.l.b16 %v2778
    %v3298 = vunpack.c.l.b16 %v2779
    %v3299 = vunpack.c.l.b16 %v2780
    %v3300 = vunpack.c.l.b16 %v2781
    %v3301 = vunpack.c.l.b16 %v2782
    %v3302 = vunpack.c.l.b16 %v2783
    %v3303 = vunpack.c.l.b16 %v2784
    %v3304 = vunpack.c.l.b16 %v2785
    %v3305 = vunpack.c.l.b16 %v2786
    %v3306 = vunpack.c.l.b16 %v2787
    %v3307 = vunpack.c.l.b16 %v2788
    %v3308 = vunpack.c.l.b16 %v2789
    %v3309 = vunpack.c.l.b16 %v2790
    %v3310 = vunpack.c.l.b16 %v2791
    %v3311 = vunpack.c.l.b16 %v2792
    %v3312 = vunpack.c.l.b16 %v2793
    %v3313 = vunpack.c.l.b16 %v2794
    %v3314 = vunpack.c.l.b16 %v2795
    %v3315 = vunpack.c.l.b16 %v2796
    %v3316 = vunpack.c.l.b16 %v2797
    %v3317 = vunpack.c.l.b16 %v2798
    %v3318 = vunpack.c.l.b16 %v2799
    %v3319 = vunpack.c.l.b16 %v2800
    %v3320 = vunpack.c.l.b16 %v2801
    %v3321 = vunpack.c.l.b16 %v2802
    %v3322 = vunpack.c.l.b16 %v2803
    %v3323 = vunpack.c.l.b16 %v2804
    %v3324 = vunpack.c.l.b16 %v2805
    %v3325 = vunpack.c.l.b16 %v2806
    %v3326 = vunpack.c.l.b16 %v2807
    %v3327 = vunpack.c.l.b16 %v2808
    %v3328 = vunpack.c.l.b16 %v2809
    %v3329 = vunpack.c.l.b16 %v2810
    %v3330 = vunpack.c.l.b16 %v2811
    %v3331 = vunpack.c.l.b16 %v2812
    %v3332 = vunpack.c.l.b16 %v2813
    %v3333 = vpack.c.b16 %v3078, %v3077
    %v3334 = vpack.c.b16 %v3080, %v3079
    %v3335 = vpack.c.b16 %v3082, %v3081
    %v3336 = vpack.c.b16 %v3084, %v3083
    %v3337 = vpack.c.b16 %v3086, %v3085
    %v3338 = vpack.c.b16 %v3088, %v3087
    %v3339 = vpack.c.b16 %v3090, %v3089
    %v3340 = vpack.c.b16 %v3092, %v3091
    %v3341 = vpack.c.b16 %v3094, %v3093
    %v3342 = vpack.c.b16 %v3096, %v3095
    %v3343 = vpack.c.b16 %v3098, %v3097
    %v3344 = vpack.c.b16 %v3100, %v3099
    %v3345 = vpack.c.b16 %v3102, %v3101
    %v3346 = vpack.c.b16 %v3104, %v3103
    %v3347 = vpack.c.b16 %v3106, %v3105
    %v3348 = vpack.c.b16 %v3108, %v3107
    %v3349 = vpack.c.b16 %v3110, %v3109
    %v3350 = vpack.c.b16 %v3112, %v3111
    %v3351 = vpack.c.b16 %v3114, %v3113
    %v3352 = vpack.c.b16 %v3116, %v3115
    %v3353 = vpack.c.b16 %v3118, %v3117
    %v3354 = vpack.c.b16 %v3120, %v3119
    %v3355 = vpack.c.b16 %v3122, %v3121
    %v3356 = vpack.c.b16 %v3124, %v3123
    %v3357 = vpack.c.b16 %v3126, %v3125
    %v3358 = vpack.c.b16 %v3128, %v3127
    %v3359 = vpack.c.b16 %v3130, %v3129
    %v3360 = vpack.c.b16 %v3132, %v3131
    %v3361 = vpack.c.b16 %v3134, %v3133
    %v3362 = vpack.c.b16 %v3136, %v3135
    %v3363 = vpack.c.b16 %v3138, %v3137
    %v3364 = vpack.c.b16 %v3140, %v3139
    %v3365 = vpack.c.b16 %v3142, %v3141
    %v3366 = vpack.c.b16 %v3144, %v3143
    %v3367 = vpack.c.b16 %v3146, %v3145
    %v3368 = vpack.c.b16 %v3148, %v3147
    %v3369 = vpack.c.b16 %v3150, %v3149
    %v3370 = vpack.c.b16 %v3152, %v3151
    %v3371 = vpack.c.b16 %v3154, %v3153
    %v3372 = vpack.c.b16 %v3156, %v3155
    %v3373 = vpack.c.b16 %v3158, %v3157
    %v3374 = vpack.c.b16 %v3160, %v3159
    %v3375 = vpack.c.b16 %v3162, %v3161
    %v3376 = vpack.c.b16 %v3164, %v3163
    %v3377 = vpack.c.b16 %v3166, %v3165
    %v3378 = vpack.c.b16 %v3168, %v3167
    %v3379 = vpack.c.b16 %v3170, %v3169
    %v3380 = vpack.c.b16 %v3172, %v3171
    %v3381 = vpack.c.b16 %v3174, %v3173
    %v3382 = vpack.c.b16 %v3176, %v3175
    %v3383 = vpack.c.b16 %v3178, %v3177
    %v3384 = vpack.c.b16 %v3180, %v3179
    %v3385 = vpack.c.b16 %v3182, %v3181
    %v3386 = vpack.c.b16 %v3184, %v3183
    %v3387 = vpack.c.b16 %v3186, %v3185
    %v3388 = vpack.c.b16 %v3188, %v3187
    %v3389 = vpack.c.b16 %v3190, %v3189
    %v3390 = vpack.c.b16 %v3192, %v3191
    %v3391 = vpack.c.b16 %v3194, %v3193
    %v3392 = vpack.c.b16 %v3196, %v3195
    %v3393 = vpack.c.b16 %v3198, %v3197
    %v3394 = vpack.c.b16 %v3200, %v3199
    %v3395 = vpack.c.b16 %v3202, %v3201
    %v3396 = vpack.c.b16 %v3204, %v3203
    %v3397 = vpack.c.b16 %v3206, %v3205
    %v3398 = vpack.c.b16 %v3208, %v3207
    %v3399 = vpack.c.b16 %v3210, %v3209
    %v3400 = vpack.c.b16 %v3212, %v3211
    %v3401 = vpack.c.b16 %v3214, %v3213
    %v3402 = vpack.c.b16 %v3216, %v3215
    %v3403 = vpack.c.b16 %v3218, %v3217
    %v3404 = vpack.c.b16 %v3220, %v3219
    %v3405 = vpack.c.b16 %v3222, %v3221
    %v3406 = vpack.c.b16 %v3224, %v3223
    %v3407 = vpack.c.b16 %v3226, %v3225
    %v3408 = vpack.c.b16 %v3228, %v3227
    %v3409 = vpack.c.b16 %v3230, %v3229
    %v3410 = vpack.c.b16 %v3232, %v3231
    %v3411 = vpack.c.b16 %v3234, %v3233
    %v3412 = vpack.c.b16 %v3236, %v3235
    %v3413 = vpack.c.b16 %v3238, %v3237
    %v3414 = vpack.c.b16 %v3240, %v3239
    %v3415 = vpack.c.b16 %v3242, %v3241
    %v3416 = vpack.c.b16 %v3244, %v3243
    %v3417 = vpack.c.b16 %v3246, %v3245
    %v3418 = vpack.c.b16 %v3248, %v3247
    %v3419 = vpack.c.b16 %v3250, %v3249
    %v3420 = vpack.c.b16 %v3252, %v3251
    %v3421 = vpack.c.b16 %v3254, %v3253
    %v3422 = vpack.c.b16 %v3256, %v3255
    %v3423 = vpack.c.b16 %v3258, %v3257
    %v3424 = vpack.c.b16 %v3260, %v3259
    %v3425 = vpack.c.b16 %v3262, %v3261
    %v3426 = vpack.c.b16 %v3264, %v3263
    %v3427 = vpack.c.b16 %v3266, %v3265
    %v3428 = vpack.c.b16 %v3268, %v3267
    %v3429 = vpack.c.b16 %v3270, %v3269
    %v3430 = vpack.c.b16 %v3272, %v3271
    %v3431 = vpack.c.b16 %v3274, %v3273
    %v3432 = vpack.c.b16 %v3276, %v3275
    %v3433 = vpack.c.b16 %v3278, %v3277
    %v3434 = vpack.c.b16 %v3280, %v3279
    %v3435 = vpack.c.b16 %v3282, %v3281
    %v3436 = vpack.c.b16 %v3284, %v3283
    %v3437 = vpack.c.b16 %v3286, %v3285
    %v3438 = vpack.c.b16 %v3288, %v3287
    %v3439 = vpack.c.b16 %v3290, %v3289
    %v3440 = vpack.c.b16 %v3292, %v3291
    %v3441 = vpack.c.b16 %v3294, %v3293
    %v3442 = vpack.c.b16 %v3296, %v3295
    %v3443 = vpack.c.b16 %v3298, %v3297
    %v3444 = vpack.c.b16 %v3300, %v3299
    %v3445 = vpack.c.b16 %v3302, %v3301
    %v3446 = vpack.c.b16 %v3304, %v3303
    %v3447 = vpack.c.b16 %v3306, %v3305
    %v3448 = vpack.c.b16 %v3308, %v3307
    %v3449 = vpack.c.b16 %v3310, %v3309
    %v3450 = vpack.c.b16 %v3312, %v3311
    %v3451 = vpack.c.b16 %v3314, %v3313
    %v3452 = vpack.c.b16 %v3316, %v3315
    %v3453 = vpack.c.b16 %v3318, %v3317
    %v3454 = vpack.c.b16 %v3320, %v3319
    %v3455 = vpack.c.b16 %v3322, %v3321
    %v3456 = vpack.c.b16 %v3324, %v3323
    %v3457 = vpack.c.b16 %v3326, %v3325
    %v3458 = vpack.c.b16 %v3328, %v3327
    %v3459 = vpack.c.b16 %v3330, %v3329
    %v3460 = vpack.c.b16 %v3332, %v3331
    %3589 = vmatprep.subr.bf16.mxu0 0
    %3590 = vmatpush1.bf16.msra.mxu0 %v3333
    %3591 = vmatprep.subr.bf16.mxu0 0
    %3592 = vmatpush1.bf16.msra.mxu0 %v3334
    %3593 = vmatprep.subr.bf16.mxu0 0
    %3594 = vmatpush1.bf16.msra.mxu0 %v3335
    %3595 = vmatprep.subr.bf16.mxu0 0
    %3596 = vmatpush1.bf16.msra.mxu0 %v3336
    %3597 = vmatprep.subr.bf16.mxu0 0
    %3598 = vmatpush1.bf16.msra.mxu0 %v3337
    %3599 = vmatprep.subr.bf16.mxu0 0
    %3600 = vmatpush1.bf16.msra.mxu0 %v3338
    %3601 = vmatprep.subr.bf16.mxu0 0
    %3602 = vmatpush1.bf16.msra.mxu0 %v3339
    %3603 = vmatprep.subr.bf16.mxu0 0
    %3604 = vmatpush1.bf16.msra.mxu0 %v3340
    %3605 = vmatprep.subr.bf16.mxu0 0
    %3606 = vmatpush1.bf16.msra.mxu0 %v3341
    %3607 = vmatprep.subr.bf16.mxu0 0
    %3608 = vmatpush1.bf16.msra.mxu0 %v3342
    %3609 = vmatprep.subr.bf16.mxu0 0
    %3610 = vmatpush1.bf16.msra.mxu0 %v3343
    %3611 = vmatprep.subr.bf16.mxu0 0
    %3612 = vmatpush1.bf16.msra.mxu0 %v3344
    %3613 = vmatprep.subr.bf16.mxu0 0
    %3614 = vmatpush1.bf16.msra.mxu0 %v3345
    %3615 = vmatprep.subr.bf16.mxu0 0
    %3616 = vmatpush1.bf16.msra.mxu0 %v3346
    %3617 = vmatprep.subr.bf16.mxu0 0
    %3618 = vmatpush1.bf16.msra.mxu0 %v3347
    %3619 = vmatprep.subr.bf16.mxu0 0
    %3620 = vmatpush1.bf16.msra.mxu0 %v3348
    %3621 = vmatprep.mubr.bf16.mxu0 %v2543
    %3622 = vmatmul.mubr.bf16.gmra.mrb[0].mxu0 %v2542
    %v3623 = vpop.f32.mrb[0].mxu0
    %v3624 = vadd.f32 %v2819, %v3623
    %v3625 = vpop.f32.mrb[0].mxu0
    %v3626 = vpop.f32.mrb[0].mxu0
    %v3627 = vadd.f32 %v2819, %v3626
    %v3628 = vpop.f32.mrb[0].mxu0
    %3629 = vdwg.mxu0
    %3630 = vmatprep.subr.bf16.mxu0 0
    %3631 = vmatpush1.bf16.msra.mxu0 %v3349
    %3632 = vmatprep.subr.bf16.mxu0 0
    %3633 = vmatpush1.bf16.msra.mxu0 %v3350
    %3634 = vmatprep.subr.bf16.mxu0 0
    %3635 = vmatpush1.bf16.msra.mxu0 %v3351
    %3636 = vmatprep.subr.bf16.mxu0 0
    %3637 = vmatpush1.bf16.msra.mxu0 %v3352
    %3638 = vmatprep.subr.bf16.mxu0 0
    %3639 = vmatpush1.bf16.msra.mxu0 %v3353
    %3640 = vmatprep.subr.bf16.mxu0 0
    %3641 = vmatpush1.bf16.msra.mxu0 %v3354
    %3642 = vmatprep.subr.bf16.mxu0 0
    %3643 = vmatpush1.bf16.msra.mxu0 %v3355
    %3644 = vmatprep.subr.bf16.mxu0 0
    %3645 = vmatpush1.bf16.msra.mxu0 %v3356
    %3646 = vmatprep.subr.bf16.mxu0 0
    %3647 = vmatpush1.bf16.msra.mxu0 %v3357
    %3648 = vmatprep.subr.bf16.mxu0 0
    %3649 = vmatpush1.bf16.msra.mxu0 %v3358
    %3650 = vmatprep.subr.bf16.mxu0 0
    %3651 = vmatpush1.bf16.msra.mxu0 %v3359
    %3652 = vmatprep.subr.bf16.mxu0 0
    %3653 = vmatpush1.bf16.msra.mxu0 %v3360
    %3654 = vmatprep.subr.bf16.mxu0 0
    %3655 = vmatpush1.bf16.msra.mxu0 %v3361
    %3656 = vmatprep.subr.bf16.mxu0 0
    %3657 = vmatpush1.bf16.msra.mxu0 %v3362
    %3658 = vmatprep.subr.bf16.mxu0 0
    %3659 = vmatpush1.bf16.msra.mxu0 %v3363
    %3660 = vmatprep.subr.bf16.mxu0 0
    %3661 = vmatpush1.bf16.msra.mxu0 %v3364
    %3662 = vmatprep.mubr.bf16.mxu0 %v2545
    %3663 = vmatmul.mubr.bf16.gmra.mrb[0].mxu0 %v2544
    %v3664 = vpop.f32.mrb[0].mxu0
    %v3665 = vadd.f32 %v3624, %v3664
    %v3666 = vpop.f32.mrb[0].mxu0
    %v3667 = vpop.f32.mrb[0].mxu0
    %v3668 = vadd.f32 %v3627, %v3667
    %v3669 = vpop.f32.mrb[0].mxu0
    %3670 = vdwg.mxu0
    %3671 = vmatprep.subr.bf16.mxu0 0
    %3672 = vmatpush1.bf16.msra.mxu0 %v3365
    %3673 = vmatprep.subr.bf16.mxu0 0
    %3674 = vmatpush1.bf16.msra.mxu0 %v3366
    %3675 = vmatprep.subr.bf16.mxu0 0
    %3676 = vmatpush1.bf16.msra.mxu0 %v3367
    %3677 = vmatprep.subr.bf16.mxu0 0
    %3678 = vmatpush1.bf16.msra.mxu0 %v3368
    %3679 = vmatprep.subr.bf16.mxu0 0
    %3680 = vmatpush1.bf16.msra.mxu0 %v3369
    %3681 = vmatprep.subr.bf16.mxu0 0
    %3682 = vmatpush1.bf16.msra.mxu0 %v3370
    %3683 = vmatprep.subr.bf16.mxu0 0
    %3684 = vmatpush1.bf16.msra.mxu0 %v3371
    %3685 = vmatprep.subr.bf16.mxu0 0
    %3686 = vmatpush1.bf16.msra.mxu0 %v3372
    %3687 = vmatprep.subr.bf16.mxu0 0
    %3688 = vmatpush1.bf16.msra.mxu0 %v3373
    %3689 = vmatprep.subr.bf16.mxu0 0
    %3690 = vmatpush1.bf16.msra.mxu0 %v3374
    %3691 = vmatprep.subr.bf16.mxu0 0
    %3692 = vmatpush1.bf16.msra.mxu0 %v3375
    %3693 = vmatprep.subr.bf16.mxu0 0
    %3694 = vmatpush1.bf16.msra.mxu0 %v3376
    %3695 = vmatprep.subr.bf16.mxu0 0
    %3696 = vmatpush1.bf16.msra.mxu0 %v3377
    %3697 = vmatprep.subr.bf16.mxu0 0
    %3698 = vmatpush1.bf16.msra.mxu0 %v3378
    %3699 = vmatprep.subr.bf16.mxu0 0
    %3700 = vmatpush1.bf16.msra.mxu0 %v3379
    %3701 = vmatprep.subr.bf16.mxu0 0
    %3702 = vmatpush1.bf16.msra.mxu0 %v3380
    %3703 = vmatprep.mubr.bf16.mxu0 %v2547
    %3704 = vmatmul.mubr.bf16.gmra.mrb[0].mxu0 %v2546
    %v3705 = vpop.f32.mrb[0].mxu0
    %v3706 = vadd.f32 %v3665, %v3705
    %v3707 = vpop.f32.mrb[0].mxu0
    %v3708 = vpop.f32.mrb[0].mxu0
    %v3709 = vadd.f32 %v3668, %v3708
    %v3710 = vpop.f32.mrb[0].mxu0
    %3711 = vdwg.mxu0
    %3712 = vmatprep.subr.bf16.mxu0 0
    %3713 = vmatpush1.bf16.msra.mxu0 %v3381
    %3714 = vmatprep.subr.bf16.mxu0 0
    %3715 = vmatpush1.bf16.msra.mxu0 %v3382
    %3716 = vmatprep.subr.bf16.mxu0 0
    %3717 = vmatpush1.bf16.msra.mxu0 %v3383
    %3718 = vmatprep.subr.bf16.mxu0 0
    %3719 = vmatpush1.bf16.msra.mxu0 %v3384
    %3720 = vmatprep.subr.bf16.mxu0 0
    %3721 = vmatpush1.bf16.msra.mxu0 %v3385
    %3722 = vmatprep.subr.bf16.mxu0 0
    %3723 = vmatpush1.bf16.msra.mxu0 %v3386
    %3724 = vmatprep.subr.bf16.mxu0 0
    %3725 = vmatpush1.bf16.msra.mxu0 %v3387
    %3726 = vmatprep.subr.bf16.mxu0 0
    %3727 = vmatpush1.bf16.msra.mxu0 %v3388
    %3728 = vmatprep.subr.bf16.mxu0 0
    %3729 = vmatpush1.bf16.msra.mxu0 %v3389
    %3730 = vmatprep.subr.bf16.mxu0 0
    %3731 = vmatpush1.bf16.msra.mxu0 %v3390
    %3732 = vmatprep.subr.bf16.mxu0 0
    %3733 = vmatpush1.bf16.msra.mxu0 %v3391
    %3734 = vmatprep.subr.bf16.mxu0 0
    %3735 = vmatpush1.bf16.msra.mxu0 %v3392
    %3736 = vmatprep.subr.bf16.mxu0 0
    %3737 = vmatpush1.bf16.msra.mxu0 %v3393
    %3738 = vmatprep.subr.bf16.mxu0 0
    %3739 = vmatpush1.bf16.msra.mxu0 %v3394
    %3740 = vmatprep.subr.bf16.mxu0 0
    %3741 = vmatpush1.bf16.msra.mxu0 %v3395
    %3742 = vmatprep.subr.bf16.mxu0 0
    %3743 = vmatpush1.bf16.msra.mxu0 %v3396
    %3744 = vmatprep.mubr.bf16.mxu0 %v2549
    %3745 = vmatmul.mubr.bf16.gmra.mrb[0].mxu0 %v2548
    %v3746 = vpop.f32.mrb[0].mxu0
    %v3747 = vadd.f32 %v3706, %v3746
    %v3748 = vpop.f32.mrb[0].mxu0
    %v3749 = vpop.f32.mrb[0].mxu0
    %v3750 = vadd.f32 %v3709, %v3749
    %v3751 = vpop.f32.mrb[0].mxu0
    %3752 = vdwg.mxu0
    %3753 = vmatprep.subr.bf16.mxu0 0
    %3754 = vmatpush1.bf16.msra.mxu0 %v3397
    %3755 = vmatprep.subr.bf16.mxu0 0
    %3756 = vmatpush1.bf16.msra.mxu0 %v3398
    %3757 = vmatprep.subr.bf16.mxu0 0
    %3758 = vmatpush1.bf16.msra.mxu0 %v3399
    %3759 = vmatprep.subr.bf16.mxu0 0
    %3760 = vmatpush1.bf16.msra.mxu0 %v3400
    %3761 = vmatprep.subr.bf16.mxu0 0
    %3762 = vmatpush1.bf16.msra.mxu0 %v3401
    %3763 = vmatprep.subr.bf16.mxu0 0
    %3764 = vmatpush1.bf16.msra.mxu0 %v3402
    %3765 = vmatprep.subr.bf16.mxu0 0
    %3766 = vmatpush1.bf16.msra.mxu0 %v3403
    %3767 = vmatprep.subr.bf16.mxu0 0
    %3768 = vmatpush1.bf16.msra.mxu0 %v3404
    %3769 = vmatprep.subr.bf16.mxu0 0
    %3770 = vmatpush1.bf16.msra.mxu0 %v3405
    %3771 = vmatprep.subr.bf16.mxu0 0
    %3772 = vmatpush1.bf16.msra.mxu0 %v3406
    %3773 = vmatprep.subr.bf16.mxu0 0
    %3774 = vmatpush1.bf16.msra.mxu0 %v3407
    %3775 = vmatprep.subr.bf16.mxu0 0
    %3776 = vmatpush1.bf16.msra.mxu0 %v3408
    %3777 = vmatprep.subr.bf16.mxu0 0
    %3778 = vmatpush1.bf16.msra.mxu0 %v3409
    %3779 = vmatprep.subr.bf16.mxu0 0
    %3780 = vmatpush1.bf16.msra.mxu0 %v3410
    %3781 = vmatprep.subr.bf16.mxu0 0
    %3782 = vmatpush1.bf16.msra.mxu0 %v3411
    %3783 = vmatprep.subr.bf16.mxu0 0
    %3784 = vmatpush1.bf16.msra.mxu0 %v3412
    %3785 = vmatprep.mubr.bf16.mxu0 %v2551
    %3786 = vmatmul.mubr.bf16.gmra.mrb[0].mxu0 %v2550
    %v3787 = vpop.f32.mrb[0].mxu0
    %v3788 = vadd.f32 %v3747, %v3787
    %v3789 = vpop.f32.mrb[0].mxu0
    %v3790 = vpop.f32.mrb[0].mxu0
    %v3791 = vadd.f32 %v3750, %v3790
    %v3792 = vpop.f32.mrb[0].mxu0
    %3793 = vdwg.mxu0
    %3794 = vmatprep.subr.bf16.mxu0 0
    %3795 = vmatpush1.bf16.msra.mxu0 %v3413
    %3796 = vmatprep.subr.bf16.mxu0 0
    %3797 = vmatpush1.bf16.msra.mxu0 %v3414
    %3798 = vmatprep.subr.bf16.mxu0 0
    %3799 = vmatpush1.bf16.msra.mxu0 %v3415
    %3800 = vmatprep.subr.bf16.mxu0 0
    %3801 = vmatpush1.bf16.msra.mxu0 %v3416
    %3802 = vmatprep.subr.bf16.mxu0 0
    %3803 = vmatpush1.bf16.msra.mxu0 %v3417
    %3804 = vmatprep.subr.bf16.mxu0 0
    %3805 = vmatpush1.bf16.msra.mxu0 %v3418
    %3806 = vmatprep.subr.bf16.mxu0 0
    %3807 = vmatpush1.bf16.msra.mxu0 %v3419
    %3808 = vmatprep.subr.bf16.mxu0 0
    %3809 = vmatpush1.bf16.msra.mxu0 %v3420
    %3810 = vmatprep.subr.bf16.mxu0 0
    %3811 = vmatpush1.bf16.msra.mxu0 %v3421
    %3812 = vmatprep.subr.bf16.mxu0 0
    %3813 = vmatpush1.bf16.msra.mxu0 %v3422
    %3814 = vmatprep.subr.bf16.mxu0 0
    %3815 = vmatpush1.bf16.msra.mxu0 %v3423
    %3816 = vmatprep.subr.bf16.mxu0 0
    %3817 = vmatpush1.bf16.msra.mxu0 %v3424
    %3818 = vmatprep.subr.bf16.mxu0 0
    %3819 = vmatpush1.bf16.msra.mxu0 %v3425
    %3820 = vmatprep.subr.bf16.mxu0 0
    %3821 = vmatpush1.bf16.msra.mxu0 %v3426
    %3822 = vmatprep.subr.bf16.mxu0 0
    %3823 = vmatpush1.bf16.msra.mxu0 %v3427
    %3824 = vmatprep.subr.bf16.mxu0 0
    %3825 = vmatpush1.bf16.msra.mxu0 %v3428
    %3826 = vmatprep.mubr.bf16.mxu0 %v2553
    %3827 = vmatmul.mubr.bf16.gmra.mrb[0].mxu0 %v2552
    %v3828 = vpop.f32.mrb[0].mxu0
    %v3829 = vadd.f32 %v3788, %v3828
    %v3830 = vpop.f32.mrb[0].mxu0
    %v3831 = vpop.f32.mrb[0].mxu0
    %v3832 = vadd.f32 %v3791, %v3831
    %v3833 = vpop.f32.mrb[0].mxu0
    %3834 = vdwg.mxu0
    %3835 = vmatprep.subr.bf16.mxu0 0
    %3836 = vmatpush1.bf16.msra.mxu0 %v3429
    %3837 = vmatprep.subr.bf16.mxu0 0
    %3838 = vmatpush1.bf16.msra.mxu0 %v3430
    %3839 = vmatprep.subr.bf16.mxu0 0
    %3840 = vmatpush1.bf16.msra.mxu0 %v3431
    %3841 = vmatprep.subr.bf16.mxu0 0
    %3842 = vmatpush1.bf16.msra.mxu0 %v3432
    %3843 = vmatprep.subr.bf16.mxu0 0
    %3844 = vmatpush1.bf16.msra.mxu0 %v3433
    %3845 = vmatprep.subr.bf16.mxu0 0
    %3846 = vmatpush1.bf16.msra.mxu0 %v3434
    %3847 = vmatprep.subr.bf16.mxu0 0
    %3848 = vmatpush1.bf16.msra.mxu0 %v3435
    %3849 = vmatprep.subr.bf16.mxu0 0
    %3850 = vmatpush1.bf16.msra.mxu0 %v3436
    %3851 = vmatprep.subr.bf16.mxu0 0
    %3852 = vmatpush1.bf16.msra.mxu0 %v3437
    %3853 = vmatprep.subr.bf16.mxu0 0
    %3854 = vmatpush1.bf16.msra.mxu0 %v3438
    %3855 = vmatprep.subr.bf16.mxu0 0
    %3856 = vmatpush1.bf16.msra.mxu0 %v3439
    %3857 = vmatprep.subr.bf16.mxu0 0
    %3858 = vmatpush1.bf16.msra.mxu0 %v3440
    %3859 = vmatprep.subr.bf16.mxu0 0
    %3860 = vmatpush1.bf16.msra.mxu0 %v3441
    %3861 = vmatprep.subr.bf16.mxu0 0
    %3862 = vmatpush1.bf16.msra.mxu0 %v3442
    %3863 = vmatprep.subr.bf16.mxu0 0
    %3864 = vmatpush1.bf16.msra.mxu0 %v3443
    %3865 = vmatprep.subr.bf16.mxu0 0
    %3866 = vmatpush1.bf16.msra.mxu0 %v3444
    %3867 = vmatprep.mubr.bf16.mxu0 %v2555
    %3868 = vmatmul.mubr.bf16.gmra.mrb[0].mxu0 %v2554
    %v3869 = vpop.f32.mrb[0].mxu0
    %v3870 = vadd.f32 %v3829, %v3869
    %v3871 = vpop.f32.mrb[0].mxu0
    %v3872 = vpop.f32.mrb[0].mxu0
    %v3873 = vadd.f32 %v3832, %v3872
    %v3874 = vpop.f32.mrb[0].mxu0
    %3875 = vdwg.mxu0
    %3876 = vmatprep.subr.bf16.mxu0 0
    %3877 = vmatpush1.bf16.msra.mxu0 %v3445
    %3878 = vmatprep.subr.bf16.mxu0 0
    %3879 = vmatpush1.bf16.msra.mxu0 %v3446
    %3880 = vmatprep.subr.bf16.mxu0 0
    %3881 = vmatpush1.bf16.msra.mxu0 %v3447
    %3882 = vmatprep.subr.bf16.mxu0 0
    %3883 = vmatpush1.bf16.msra.mxu0 %v3448
    %3884 = vmatprep.subr.bf16.mxu0 0
    %3885 = vmatpush1.bf16.msra.mxu0 %v3449
    %3886 = vmatprep.subr.bf16.mxu0 0
    %3887 = vmatpush1.bf16.msra.mxu0 %v3450
    %3888 = vmatprep.subr.bf16.mxu0 0
    %3889 = vmatpush1.bf16.msra.mxu0 %v3451
    %3890 = vmatprep.subr.bf16.mxu0 0
    %3891 = vmatpush1.bf16.msra.mxu0 %v3452
    %3892 = vmatprep.subr.bf16.mxu0 0
    %3893 = vmatpush1.bf16.msra.mxu0 %v3453
    %3894 = vmatprep.subr.bf16.mxu0 0
    %3895 = vmatpush1.bf16.msra.mxu0 %v3454
    %3896 = vmatprep.subr.bf16.mxu0 0
    %3897 = vmatpush1.bf16.msra.mxu0 %v3455
    %3898 = vmatprep.subr.bf16.mxu0 0
    %3899 = vmatpush1.bf16.msra.mxu0 %v3456
    %3900 = vmatprep.subr.bf16.mxu0 0
    %3901 = vmatpush1.bf16.msra.mxu0 %v3457
    %3902 = vmatprep.subr.bf16.mxu0 0
    %3903 = vmatpush1.bf16.msra.mxu0 %v3458
    %3904 = vmatprep.subr.bf16.mxu0 0
    %3905 = vmatpush1.bf16.msra.mxu0 %v3459
    %3906 = vmatprep.subr.bf16.mxu0 0
    %3907 = vmatpush1.bf16.msra.mxu0 %v3460
    %3908 = vmatprep.mubr.bf16.mxu0 %v2557
    %3909 = vmatmul.mubr.bf16.gmra.mrb[0].mxu0 %v2556
    %v3910 = vpop.f32.mrb[0].mxu0
    %v3911 = vadd.f32 %v3870, %v3910
    %v3912 = vpop.f32.mrb[0].mxu0
    %v3913 = vpop.f32.mrb[0].mxu0
    %v3914 = vadd.f32 %v3873, %v3913
    %v3915 = vpop.f32.mrb[0].mxu0
    %3916 = vdwg.mxu0
    %v3917 = vadd.f32 %v1884, %v3911
    %v3918 = vadd.f32 %v1885, %v3914
    %v3919 = vld [vmem:[%s13] sm:$0x1]
    %v3920 = vld [vmem:[%s14] sm:$0x1]
    %v3921 = vsel %vm82, %v3917, 0.0
    %3922 = vadd.xlane.f32.xlu0 %v3921
    %v3923 = vpop.xlane.xlu0 %3922
    %v3924 = vsel %vm82, %v3918, 0.0
    %3925 = vadd.xlane.f32.xlu0 %v3924
    %v3926 = vpop.xlane.xlu0 %3925
    %v3927 = vmul.f32 %v3923, %v1849
    %v3928 = vmul.f32 %v3926, %v1849
    %v3929 = vsub.f32 %v3917, %v3927
    %v3930 = vsub.f32 %v3918, %v3928
    %v3931 = vmul.f32 %v3929, %v3929
    %v3932 = vmul.f32 %v3930, %v3930
    %v3933 = vsel %vm82, %v3931, 0.0
    %3934 = vadd.xlane.f32.xlu0 %v3933
    %v3935 = vpop.xlane.xlu0 %3934
    %v3936 = vsel %vm82, %v3932, 0.0
    %3937 = vadd.xlane.f32.xlu0 %v3936
    %v3938 = vpop.xlane.xlu0 %3937
    %v3939 = vmul.f32 %v3935, %v1849
    %v3940 = vmul.f32 %v3938, %v1849
    %v3941 = vadd.f32 %v3939, 1e-05
    %v3942 = vadd.f32 %v3940, 1e-05
    %v3943 = vrsqrt.pop %v3941
    %v3944 = vrsqrt.pop %v3942
    %v3945 = vmul.f32 %v3929, %v3943
    %v3946 = vmul.f32 %v3930, %v3944
    %v3948 = vlaneseq
    %v3949 = vshrl.u32 %v3948, 7
    %v3950 = vsub.s32 0, %v3949
    %v3951 = vrot.slane %v3919, %v3950
    %v3953 = vmul.f32 %v3945, %v3951
    %v3954 = vmul.f32 %v3946, %v3951
    %v3956 = vlaneseq
    %v3957 = vshrl.u32 %v3956, 7
    %v3958 = vsub.s32 0, %v3957
    %v3959 = vrot.slane %v3920, %v3958
    %v3961 = vadd.f32 %v3953, %v3959
    %v3962 = vadd.f32 %v3954, %v3959
    %3963 = vst.msk [vmem:[#allocation2] sm:$0xff] %vm82, %v3961
    %3964 = vst.msk [vmem:[#allocation2 + $0x8] sm:$0xff] %vm82, %v3962
    // Predicated region
    $region62: #{forward.1} parent=1 // pred_check
      _
    $region63: #{forward.1} parent=1 // pred_check_branch
      %3966 = sbr.rel (0) target = $region65
    $region64: #{forward.1} parent=1 // pred_region
      %s3968 = ssub.s32 256, 256
      %3969 = vsyncadd [#allocation3], %s3968
      %s3970 = sshll.u32 [#allocation2], 4
      %s3971 = int_to_ptr.vmem [resolvable:$true] %s3970
      %3976 = dma.vmem_to_hbm [thread:$0]  %s3971, 256, %s15, [#allocation3], 128, 128, 8
    $region65: #{forward.1} parent=1 // pred_fallthru
      _
    // Predicated region
    $region66: #{forward.1} parent=1 // pred_check
      _
    $region67: #{forward.1} parent=1 // pred_check_branch
      %3978 = sbr.rel (0) target = $region69
    $region68: #{forward.1} parent=1 // pred_region
      %3979 = dma.done [#allocation3], 256
    $region69: #{forward.1} parent=1 // pred_fallthru
      _
    %3980 = vsyncpa [#allocation3], 1

</llo_original>
